<compile_context>
chip_gen: v6e
topology: v6e:2x2x1
jax: 0.10.0
libtpu: 0.0.40
codegen_flags: <defaults>
</compile_context>

<pallas_src>
import jax
import jax.numpy as jnp
from jax import lax
from jax.experimental import pallas as pl
from jax.experimental.pallas import tpu as pltpu


# ----------------------------------------------------------------------------
# Fused HGStem kernel (one batch element per grid step)
# ----------------------------------------------------------------------------
def _build_hgstem_kernel(c1, cm, Ho1, Wo1, Hcat, Wcat, Ho3, Wo3):
    c1s = 4 * c1                # space-to-depth input channels for stem1
    M1 = Ho1 * Wo1              # stem1/stem2*/pool spatial positions
    M3 = Ho3 * Wo3              # stem3/stem4 spatial positions
    HW = Hcat * Wcat            # flattened padded-concat spatial size

    def kernel(xs_ref, w1_ref, b1_ref, w2a_ref, b2a_ref, w2b_ref, b2b_ref,
               w3_ref, b3_ref, w4_ref, b4_ref, o_ref,
               pad1_ref, pad2a_ref, cat_ref,
               col1_ref, col2a_ref, col2b_ref, col3_ref):

        def conv2x2_s1(read_patch, col_ref, w_ref, b_ref, cin):
            # 2x2 stride-1 conv: assemble the (Ho1, Wo1, 4*cin) im2col slab in
            # VMEM, then one wide-K MXU matmul + bias + ReLU.
            for t, (kh, kw) in enumerate(((0, 0), (0, 1), (1, 0), (1, 1))):
                col_ref[:, :, t * cin:(t + 1) * cin] = read_patch(kh, kw)
            col = col_ref[...].reshape(M1, 4 * cin)
            y = jnp.dot(col, w_ref[...], preferred_element_type=jnp.float32)
            return jnp.maximum(y + b_ref[...], 0.0)           # (M1, cout)

        # ---- stem1: 3x3/s2/p1 conv, pre-packed as 2x2/s1 over 4*c1 channels
        y1 = conv2x2_s1(lambda kh, kw: xs_ref[kh:kh + Ho1, kw:kw + Wo1, :],
                        col1_ref, w1_ref, b1_ref, c1s)
        # F.pad(x, [0,1,0,1]) kept in VMEM (zero slab + interior store).
        pad1_ref[...] = jnp.zeros_like(pad1_ref)
        pad1_ref[0:Ho1, 0:Wo1, :] = y1.reshape(Ho1, Wo1, cm)

        # ---- stem2a / F.pad / stem2b (2x2, s1, p0) -------------------------
        y2a = conv2x2_s1(lambda kh, kw: pad1_ref[kh:kh + Ho1, kw:kw + Wo1, :],
                         col2a_ref, w2a_ref, b2a_ref, cm)
        pad2a_ref[...] = jnp.zeros_like(pad2a_ref)
        pad2a_ref[0:Ho1, 0:Wo1, :] = y2a.reshape(Ho1, Wo1, cm // 2)
        y2b = conv2x2_s1(lambda kh, kw: pad2a_ref[kh:kh + Ho1, kw:kw + Wo1, :],
                         col2b_ref, w2b_ref, b2b_ref, cm // 2)

        # ---- maxpool(k=2, s=1, ceil) on the padded stem1 output (VPU max) --
        x1 = jnp.maximum(
            jnp.maximum(pad1_ref[0:Ho1, 0:Wo1, :],
                        pad1_ref[0:Ho1, 1:Wo1 + 1, :]),
            jnp.maximum(pad1_ref[1:Ho1 + 1, 0:Wo1, :],
                        pad1_ref[1:Ho1 + 1, 1:Wo1 + 1, :]))

        # ---- concat (disjoint channel slices of one padded slab) -----------
        cat_ref[...] = jnp.zeros_like(cat_ref)                  # stem3 pad=1
        cat_ref[1:1 + Ho1, 1:1 + Wo1, 0:cm] = x1                # x1 first
        cat_ref[1:1 + Ho1, 1:1 + Wo1, cm:2 * cm] = y2b.reshape(Ho1, Wo1, cm)

        # ---- stem3: 3x3 stride-2 conv --------------------------------------
        # Stride-2 sampling via 0/1 selection matrices on the MXU, then all 9
        # taps contracted in one wide-K (K = 9*2*cm) matmul.
        catf = cat_ref[...].reshape(HW, 2 * cm)
        ii = lax.broadcasted_iota(jnp.int32, (Ho3, Wo3, HW), 0)
        jj = lax.broadcasted_iota(jnp.int32, (Ho3, Wo3, HW), 1)
        qq = lax.broadcasted_iota(jnp.int32, (Ho3, Wo3, HW), 2)
        taps3 = [(kh, kw) for kh in range(3) for kw in range(3)]
        for t, (kh, kw) in enumerate(taps3):
            sel = (qq == (2 * ii + kh) * Wcat + (2 * jj + kw))
            sel = sel.astype(jnp.float32).reshape(M3, HW)
            col3_ref[:, t * 2 * cm:(t + 1) * 2 * cm] = jnp.dot(
                sel, catf, preferred_element_type=jnp.float32)
        y3 = jnp.dot(col3_ref[...], w3_ref[...],
                     preferred_element_type=jnp.float32)
        y3 = jnp.maximum(y3 + b3_ref[...], 0.0)                 # (M3, cm)

        # ---- stem4: 1x1 conv == plain matmul + bias + ReLU -----------------
        y4 = jnp.dot(y3, w4_ref[...], preferred_element_type=jnp.float32)
        y4 = jnp.maximum(y4 + b4_ref[...], 0.0)                 # (M3, c2)
        o_ref[...] = y4.astype(o_ref.dtype)

    return kernel


# ----------------------------------------------------------------------------
# Forward wrapper: NCHW in / NCHW out, one pallas_call
# ----------------------------------------------------------------------------
def hgstem_forward(x_nchw, params):
    N, c1, H, W = x_nchw.shape
    cm = params["b1"].shape[-1]
    c2 = params["b4"].shape[-1]

    # stem1 geometry (3x3, stride 2, pad 1)
    Hp, Wp = H + 2, W + 2
    Ho1, Wo1 = (Hp - 3) // 2 + 1, (Wp - 3) // 2 + 1
    Qh, Qw = Ho1 + 1, Wo1 + 1
    # stem3 geometry (3x3, stride 2, pad 1) on the (Ho1, Wo1) map
    Ho3, Wo3 = (Ho1 - 1) // 2 + 1, (Wo1 - 1) // 2 + 1
    Hcat = max(Ho1 + 2, 2 * Ho3 + 2)
    Wcat = max(Wo1 + 2, 2 * Wo3 + 2)
    M3 = Ho3 * Wo3

    # Input prep (tiny; fuses with the unavoidable NCHW->NHWC transpose):
    # conv pad=1 + space-to-depth so stem1 becomes a stride-1 2x2 conv.
    xpad = jnp.pad(x_nchw, ((0, 0), (0, 0),
                            (1, 2 * Qh - Hp + 1), (1, 2 * Qw - Wp + 1)))
    xs = (xpad.reshape(N, c1, Qh, 2, Qw, 2)
          .transpose(0, 2, 4, 3, 5, 1)
          .reshape(N, Qh, Qw, 4 * c1))

    kernel = _build_hgstem_kernel(c1, cm, Ho1, Wo1, Hcat, Wcat, Ho3, Wo3)

    weights = (params["w1"], params["b1"], params["w2a"], params["b2a"],
               params["w2b"], params["b2b"], params["w3"], params["b3"],
               params["w4"], params["b4"])

    in_specs = [pl.BlockSpec((None, Qh, Qw, 4 * c1), lambda n: (n, 0, 0, 0))]
    in_specs += [pl.BlockSpec(w.shape, lambda n: (0, 0)) for w in weights]

    scratch_shapes = [
        pltpu.VMEM((Ho1 + 1, Wo1 + 1, cm), jnp.float32),       # padded stem1 out
        pltpu.VMEM((Ho1 + 1, Wo1 + 1, cm // 2), jnp.float32),  # padded stem2a out
        pltpu.VMEM((Hcat, Wcat, 2 * cm), jnp.float32),         # padded concat
        pltpu.VMEM((Ho1, Wo1, 4 * 4 * c1), jnp.float32),       # stem1 im2col
        pltpu.VMEM((Ho1, Wo1, 4 * cm), jnp.float32),           # stem2a im2col
        pltpu.VMEM((Ho1, Wo1, 4 * (cm // 2)), jnp.float32),    # stem2b im2col
        pltpu.VMEM((M3, 9 * 2 * cm), jnp.float32),             # stem3 im2col
    ]

    y = pl.pallas_call(
        kernel,
        out_shape=jax.ShapeDtypeStruct((N, M3, c2), x_nchw.dtype),
        grid=(N,),
        in_specs=in_specs,
        out_specs=pl.BlockSpec((None, M3, c2), lambda n: (n, 0, 0)),
        scratch_shapes=scratch_shapes,
        compiler_params=pltpu.CompilerParams(
            dimension_semantics=("parallel",)),
    )(xs, *weights)

    return y.reshape(N, Ho3, Wo3, c2).transpose(0, 3, 1, 2)    # -> NCHW


# ----------------------------------------------------------------------------
# One-time parameter prep (BN folding + weight repack/flatten, outside jit)
# ----------------------------------------------------------------------------
def make_conv_bn_params(key, kh, kw, cin, cout, eps=1e-3):
    """Conv2d(bias=False) weight (HWIO) with eval-mode BatchNorm2d folded in."""
    k1, k2, k3, k4, k5 = jax.random.split(key, 5)
    w = jax.random.normal(k1, (kh, kw, cin, cout), jnp.float32) * 0.1
    gamma = jax.random.uniform(k2, (cout,), jnp.float32, 0.5, 1.5)
    beta = jax.random.normal(k3, (cout,), jnp.float32) * 0.1
    mean = jax.random.normal(k4, (cout,), jnp.float32) * 0.1
    var = jax.random.uniform(k5, (cout,), jnp.float32, 0.5, 1.5)
    scale = gamma / jnp.sqrt(var + eps)
    return w * scale, beta - mean * scale


def _pack_stride2_as_stride1_weight(w):
    """KxK stride-2 HWIO weight -> equivalent ceil(K/2)xceil(K/2) stride-1
    weight over 4x space-to-depth channels, flattened to matmul form."""
    K, _, Cin, Cout = w.shape
    KQ = (K + 1) // 2
    w2 = jnp.zeros((KQ, KQ, 4 * Cin, Cout), w.dtype)
    for qh in range(KQ):
        for qw in range(KQ):
            for ph in range(2):
                for pw in range(2):
                    kh, kw = 2 * qh + ph, 2 * qw + pw
                    if kh < K and kw < K:
                        s = (ph * 2 + pw) * Cin
                        w2 = w2.at[qh, qw, s:s + Cin, :].set(w[kh, kw])
    return w2.reshape(KQ * KQ * 4 * Cin, Cout)


def pack_hgstem_params(raw):
    """Hoisted weight repack: run once, NOT inside the jitted forward."""
    def flat(w):                     # HWIO -> (KH*KW*Cin, Cout), im2col order
        KH, KW, Ci, Co = w.shape
        return w.reshape(KH * KW * Ci, Co)
    w1, b1 = raw["stem1"]
    w2a, b2a = raw["stem2a"]
    w2b, b2b = raw["stem2b"]
    w3, b3 = raw["stem3"]
    w4, b4 = raw["stem4"]
    return {
        "w1": _pack_stride2_as_stride1_weight(w1), "b1": b1.reshape(1, -1),
        "w2a": flat(w2a), "b2a": b2a.reshape(1, -1),
        "w2b": flat(w2b), "b2b": b2b.reshape(1, -1),
        "w3": flat(w3), "b3": b3.reshape(1, -1),
        "w4": flat(w4), "b4": b4.reshape(1, -1),
    }


# ----------------------------------------------------------------------------
# Pure-JAX reference (XLA convs) for correctness checking
# ----------------------------------------------------------------------------
def _conv_ref(x, w, b, stride, pad):
    y = jax.lax.conv_general_dilated(
        x, w, (stride, stride), [(pad, pad), (pad, pad)],
        dimension_numbers=("NHWC", "HWIO", "NHWC"),
        precision=jax.lax.Precision.HIGHEST)
    return jax.nn.relu(y + b)


def hgstem_reference(x_nchw, raw):
    x = jnp.transpose(x_nchw, (0, 2, 3, 1))
    x = _conv_ref(x, *raw["stem1"], 2, 1)
    x = jnp.pad(x, ((0, 0), (0, 1), (0, 1), (0, 0)))
    x2 = _conv_ref(x, *raw["stem2a"], 1, 0)
    x2 = jnp.pad(x2, ((0, 0), (0, 1), (0, 1), (0, 0)))
    x2 = _conv_ref(x2, *raw["stem2b"], 1, 0)
    x1 = jax.lax.reduce_window(x, -jnp.inf, jax.lax.max,
                               (1, 2, 2, 1), (1, 1, 1, 1), "VALID")
    x = jnp.concatenate([x1, x2], axis=-1)
    x = _conv_ref(x, *raw["stem3"], 2, 1)
    x = _conv_ref(x, *raw["stem4"], 1, 0)
    return jnp.transpose(x, (0, 3, 1, 2))


if __name__ == "__main__":
    c1, cm, c2 = 4, 8, 16                          # HGStem(c1=4, cm=8, c2=16)
    key = jax.random.PRNGKey(0)
    kx, k1, k2a, k2b, k3, k4 = jax.random.split(key, 6)

    x = jax.random.normal(kx, (2, c1, 16, 16), jnp.float32)   # NCHW like torch

    raw = {
        "stem1": make_conv_bn_params(k1, 3, 3, c1, cm),
        "stem2a": make_conv_bn_params(k2a, 2, 2, cm, cm // 2),
        "stem2b": make_conv_bn_params(k2b, 2, 2, cm // 2, cm),
        "stem3": make_conv_bn_params(k3, 3, 3, cm * 2, cm),
        "stem4": make_conv_bn_params(k4, 1, 1, cm, c2),
    }
    params = pack_hgstem_params(raw)               # one-time, outside jit

    out = jax.jit(hgstem_forward)(x, params)
    out = jax.block_until_ready(out)

    ref = hgstem_reference(x, raw)
    assert out.shape == (2, c2, 4, 4), out.shape
    err = float(jnp.max(jnp.abs(out - ref)))
    assert jnp.allclose(out, ref, rtol=1e-2, atol=1e-2), err

    print("KERNEL_OK")
</pallas_src>

<mosaic_0001>
module attributes {stable_mosaic.version = 11 : i64} {
  func.func @kernel(%arg0: i32, %arg1: memref<1x9x9x16xf32, #tpu.memory_space<vmem>>, %arg2: memref<64x8xf32, #tpu.memory_space<vmem>>, %arg3: memref<1x8xf32, #tpu.memory_space<vmem>>, %arg4: memref<32x4xf32, #tpu.memory_space<vmem>>, %arg5: memref<1x4xf32, #tpu.memory_space<vmem>>, %arg6: memref<16x8xf32, #tpu.memory_space<vmem>>, %arg7: memref<1x8xf32, #tpu.memory_space<vmem>>, %arg8: memref<144x8xf32, #tpu.memory_space<vmem>>, %arg9: memref<1x8xf32, #tpu.memory_space<vmem>>, %arg10: memref<8x16xf32, #tpu.memory_space<vmem>>, %arg11: memref<1x16xf32, #tpu.memory_space<vmem>>, %arg12: memref<1x16x16xf32, #tpu.memory_space<vmem>>, %arg13: memref<9x9x8xf32, #tpu.memory_space<vmem>>, %arg14: memref<9x9x4xf32, #tpu.memory_space<vmem>>, %arg15: memref<10x10x16xf32, #tpu.memory_space<vmem>>, %arg16: memref<8x8x64xf32, #tpu.memory_space<vmem>>, %arg17: memref<8x8x32xf32, #tpu.memory_space<vmem>>, %arg18: memref<8x8x16xf32, #tpu.memory_space<vmem>>, %arg19: memref<16x144xf32, #tpu.memory_space<vmem>>) attributes {dimension_semantics = [#tpu.dimension_semantics<parallel>], iteration_bounds = array<i64: 2>, scalar_prefetch = 0 : i64, scratch_operands = 7 : i64, tpu.core_type = #tpu.core_type<tc>, window_params = [{transform_indices = @transform_0, window_bounds = array<i64: 1, 9, 9, 16>}, {pipeline_mode = #tpu.pipeline_mode<synchronous>, transform_indices = @transform_1, window_bounds = array<i64: 64, 8>}, {pipeline_mode = #tpu.pipeline_mode<synchronous>, transform_indices = @transform_2, window_bounds = array<i64: 1, 8>}, {pipeline_mode = #tpu.pipeline_mode<synchronous>, transform_indices = @transform_3, window_bounds = array<i64: 32, 4>}, {pipeline_mode = #tpu.pipeline_mode<synchronous>, transform_indices = @transform_4, window_bounds = array<i64: 1, 4>}, {pipeline_mode = #tpu.pipeline_mode<synchronous>, transform_indices = @transform_5, window_bounds = array<i64: 16, 8>}, {pipeline_mode = #tpu.pipeline_mode<synchronous>, transform_indices = @transform_6, window_bounds = array<i64: 1, 8>}, {pipeline_mode = #tpu.pipeline_mode<synchronous>, transform_indices = @transform_7, window_bounds = array<i64: 144, 8>}, {pipeline_mode = #tpu.pipeline_mode<synchronous>, transform_indices = @transform_8, window_bounds = array<i64: 1, 8>}, {pipeline_mode = #tpu.pipeline_mode<synchronous>, transform_indices = @transform_9, window_bounds = array<i64: 8, 16>}, {pipeline_mode = #tpu.pipeline_mode<synchronous>, transform_indices = @transform_10, window_bounds = array<i64: 1, 16>}, {transform_indices = @transform_11, window_bounds = array<i64: 1, 16, 16>}]} {
    %c0 = arith.constant 0 : index
    %c0_0 = arith.constant 0 : index
    %c0_1 = arith.constant 0 : index
    %c0_2 = arith.constant 0 : index
    %0 = vector.load %arg1[%c0, %c0_0, %c0_1, %c0_2] : memref<1x9x9x16xf32, #tpu.memory_space<vmem>>, vector<1x8x8x16xf32>
    %1 = vector.shape_cast %0 : vector<1x8x8x16xf32> to vector<8x8x16xf32>
    %c0_3 = arith.constant 0 : index
    %c0_4 = arith.constant 0 : index
    %c0_5 = arith.constant 0 : index
    %2 = vector.load %arg16[%c0_3, %c0_4, %c0_5] : memref<8x8x64xf32, #tpu.memory_space<vmem>>, vector<8x8x16xf32>
    tpu.vector_store %arg16[%c0_3, %c0_4, %c0_5], %1 {strides = array<i32>} : memref<8x8x64xf32, #tpu.memory_space<vmem>>, vector<8x8x16xf32>,
    %c0_6 = arith.constant 0 : index
    %c0_7 = arith.constant 0 : index
    %c1 = arith.constant 1 : index
    %c0_8 = arith.constant 0 : index
    %3 = vector.load %arg1[%c0_6, %c0_7, %c1, %c0_8] : memref<1x9x9x16xf32, #tpu.memory_space<vmem>>, vector<1x8x8x16xf32>
    %4 = vector.shape_cast %3 : vector<1x8x8x16xf32> to vector<8x8x16xf32>
    %c0_9 = arith.constant 0 : index
    %c0_10 = arith.constant 0 : index
    %c16 = arith.constant 16 : index
    %5 = vector.load %arg16[%c0_9, %c0_10, %c16] : memref<8x8x64xf32, #tpu.memory_space<vmem>>, vector<8x8x16xf32>
    tpu.vector_store %arg16[%c0_9, %c0_10, %c16], %4 {strides = array<i32>} : memref<8x8x64xf32, #tpu.memory_space<vmem>>, vector<8x8x16xf32>,
    %c0_11 = arith.constant 0 : index
    %c1_12 = arith.constant 1 : index
    %c0_13 = arith.constant 0 : index
    %c0_14 = arith.constant 0 : index
    %6 = vector.load %arg1[%c0_11, %c1_12, %c0_13, %c0_14] : memref<1x9x9x16xf32, #tpu.memory_space<vmem>>, vector<1x8x8x16xf32>
    %7 = vector.shape_cast %6 : vector<1x8x8x16xf32> to vector<8x8x16xf32>
    %c0_15 = arith.constant 0 : index
    %c0_16 = arith.constant 0 : index
    %c32 = arith.constant 32 : index
    %8 = vector.load %arg16[%c0_15, %c0_16, %c32] : memref<8x8x64xf32, #tpu.memory_space<vmem>>, vector<8x8x16xf32>
    tpu.vector_store %arg16[%c0_15, %c0_16, %c32], %7 {strides = array<i32>} : memref<8x8x64xf32, #tpu.memory_space<vmem>>, vector<8x8x16xf32>,
    %c0_17 = arith.constant 0 : index
    %c1_18 = arith.constant 1 : index
    %c1_19 = arith.constant 1 : index
    %c0_20 = arith.constant 0 : index
    %9 = vector.load %arg1[%c0_17, %c1_18, %c1_19, %c0_20] : memref<1x9x9x16xf32, #tpu.memory_space<vmem>>, vector<1x8x8x16xf32>
    %10 = vector.shape_cast %9 : vector<1x8x8x16xf32> to vector<8x8x16xf32>
    %c0_21 = arith.constant 0 : index
    %c0_22 = arith.constant 0 : index
    %c48 = arith.constant 48 : index
    %11 = vector.load %arg16[%c0_21, %c0_22, %c48] : memref<8x8x64xf32, #tpu.memory_space<vmem>>, vector<8x8x16xf32>
    tpu.vector_store %arg16[%c0_21, %c0_22, %c48], %10 {strides = array<i32>} : memref<8x8x64xf32, #tpu.memory_space<vmem>>, vector<8x8x16xf32>,
    %c0_23 = arith.constant 0 : index
    %c0_24 = arith.constant 0 : index
    %c0_25 = arith.constant 0 : index
    %12 = vector.load %arg16[%c0_23, %c0_24, %c0_25] : memref<8x8x64xf32, #tpu.memory_space<vmem>>, vector<8x8x64xf32>
    %13 = vector.shape_cast %12 : vector<8x8x64xf32> to vector<64x64xf32>
    %c0_26 = arith.constant 0 : index
    %c0_27 = arith.constant 0 : index
    %14 = vector.load %arg2[%c0_26, %c0_27] : memref<64x8xf32, #tpu.memory_space<vmem>>, vector<64x8xf32>
    %cst = arith.constant dense<0.000000e+00> : vector<64x8xf32>
    %15 = tpu.matmul %13, %14, %cst {dimension_numbers = #tpu.dot_dimension_numbers<[1], [0], [0], [1], [0, 0, 1, 1], [], []>} : vector<64x64xf32>, vector<64x8xf32>, vector<64x8xf32> -> vector<64x8xf32>
    %c0_28 = arith.constant 0 : index
    %c0_29 = arith.constant 0 : index
    %16 = vector.load %arg3[%c0_28, %c0_29] : memref<1x8xf32, #tpu.memory_space<vmem>>, vector<1x8xf32>
    %17 = vector.broadcast %16 : vector<1x8xf32> to vector<64x8xf32>
    %18 = arith.addf %15, %17 : vector<64x8xf32>
    %cst_30 = arith.constant 0.000000e+00 : f32
    %19 = vector.broadcast %cst_30 : f32 to vector<64x8xf32>
    %20 = arith.maximumf %18, %19 : vector<64x8xf32>
    %cst_31 = arith.constant 0.000000e+00 : f32
    %21 = vector.broadcast %cst_31 : f32 to vector<9x9x8xf32>
    %c0_32 = arith.constant 0 : index
    %c0_33 = arith.constant 0 : index
    %c0_34 = arith.constant 0 : index
    %22 = vector.load %arg13[%c0_32, %c0_33, %c0_34] : memref<9x9x8xf32, #tpu.memory_space<vmem>>, vector<9x9x8xf32>
    tpu.vector_store %arg13[%c0_32, %c0_33, %c0_34], %21 {strides = array<i32>} : memref<9x9x8xf32, #tpu.memory_space<vmem>>, vector<9x9x8xf32>,
    %23 = vector.shape_cast %20 : vector<64x8xf32> to vector<8x8x8xf32>
    %c0_35 = arith.constant 0 : index
    %c0_36 = arith.constant 0 : index
    %c0_37 = arith.constant 0 : index
    %24 = vector.load %arg13[%c0_35, %c0_36, %c0_37] : memref<9x9x8xf32, #tpu.memory_space<vmem>>, vector<8x8x8xf32>
    tpu.vector_store %arg13[%c0_35, %c0_36, %c0_37], %23 {strides = array<i32>} : memref<9x9x8xf32, #tpu.memory_space<vmem>>, vector<8x8x8xf32>,
    %c0_38 = arith.constant 0 : index
    %c0_39 = arith.constant 0 : index
    %c0_40 = arith.constant 0 : index
    %25 = vector.load %arg13[%c0_38, %c0_39, %c0_40] : memref<9x9x8xf32, #tpu.memory_space<vmem>>, vector<8x8x8xf32>
    %c0_41 = arith.constant 0 : index
    %c0_42 = arith.constant 0 : index
    %c0_43 = arith.constant 0 : index
    %26 = vector.load %arg17[%c0_41, %c0_42, %c0_43] : memref<8x8x32xf32, #tpu.memory_space<vmem>>, vector<8x8x8xf32>
    tpu.vector_store %arg17[%c0_41, %c0_42, %c0_43], %25 {strides = array<i32>} : memref<8x8x32xf32, #tpu.memory_space<vmem>>, vector<8x8x8xf32>,
    %c0_44 = arith.constant 0 : index
    %c1_45 = arith.constant 1 : index
    %c0_46 = arith.constant 0 : index
    %27 = vector.load %arg13[%c0_44, %c1_45, %c0_46] : memref<9x9x8xf32, #tpu.memory_space<vmem>>, vector<8x8x8xf32>
    %c0_47 = arith.constant 0 : index
    %c0_48 = arith.constant 0 : index
    %c8 = arith.constant 8 : index
    %28 = vector.load %arg17[%c0_47, %c0_48, %c8] : memref<8x8x32xf32, #tpu.memory_space<vmem>>, vector<8x8x8xf32>
    tpu.vector_store %arg17[%c0_47, %c0_48, %c8], %27 {strides = array<i32>} : memref<8x8x32xf32, #tpu.memory_space<vmem>>, vector<8x8x8xf32>,
    %c1_49 = arith.constant 1 : index
    %c0_50 = arith.constant 0 : index
    %c0_51 = arith.constant 0 : index
    %29 = vector.load %arg13[%c1_49, %c0_50, %c0_51] : memref<9x9x8xf32, #tpu.memory_space<vmem>>, vector<8x8x8xf32>
    %c0_52 = arith.constant 0 : index
    %c0_53 = arith.constant 0 : index
    %c16_54 = arith.constant 16 : index
    %30 = vector.load %arg17[%c0_52, %c0_53, %c16_54] : memref<8x8x32xf32, #tpu.memory_space<vmem>>, vector<8x8x8xf32>
    tpu.vector_store %arg17[%c0_52, %c0_53, %c16_54], %29 {strides = array<i32>} : memref<8x8x32xf32, #tpu.memory_space<vmem>>, vector<8x8x8xf32>,
    %c1_55 = arith.constant 1 : index
    %c1_56 = arith.constant 1 : index
    %c0_57 = arith.constant 0 : index
    %31 = vector.load %arg13[%c1_55, %c1_56, %c0_57] : memref<9x9x8xf32, #tpu.memory_space<vmem>>, vector<8x8x8xf32>
    %c0_58 = arith.constant 0 : index
    %c0_59 = arith.constant 0 : index
    %c24 = arith.constant 24 : index
    %32 = vector.load %arg17[%c0_58, %c0_59, %c24] : memref<8x8x32xf32, #tpu.memory_space<vmem>>, vector<8x8x8xf32>
    tpu.vector_store %arg17[%c0_58, %c0_59, %c24], %31 {strides = array<i32>} : memref<8x8x32xf32, #tpu.memory_space<vmem>>, vector<8x8x8xf32>,
    %c0_60 = arith.constant 0 : index
    %c0_61 = arith.constant 0 : index
    %c0_62 = arith.constant 0 : index
    %33 = vector.load %arg17[%c0_60, %c0_61, %c0_62] : memref<8x8x32xf32, #tpu.memory_space<vmem>>, vector<8x8x32xf32>
    %34 = vector.shape_cast %33 : vector<8x8x32xf32> to vector<64x32xf32>
    %c0_63 = arith.constant 0 : index
    %c0_64 = arith.constant 0 : index
    %35 = vector.load %arg4[%c0_63, %c0_64] : memref<32x4xf32, #tpu.memory_space<vmem>>, vector<32x4xf32>
    %cst_65 = arith.constant dense<0.000000e+00> : vector<64x4xf32>
    %36 = tpu.matmul %34, %35, %cst_65 {dimension_numbers = #tpu.dot_dimension_numbers<[1], [0], [0], [1], [0, 0, 1, 1], [], []>} : vector<64x32xf32>, vector<32x4xf32>, vector<64x4xf32> -> vector<64x4xf32>
    %c0_66 = arith.constant 0 : index
    %c0_67 = arith.constant 0 : index
    %37 = vector.load %arg5[%c0_66, %c0_67] : memref<1x4xf32, #tpu.memory_space<vmem>>, vector<1x4xf32>
    %38 = vector.broadcast %37 : vector<1x4xf32> to vector<64x4xf32>
    %39 = arith.addf %36, %38 : vector<64x4xf32>
    %cst_68 = arith.constant 0.000000e+00 : f32
    %40 = vector.broadcast %cst_68 : f32 to vector<64x4xf32>
    %41 = arith.maximumf %39, %40 : vector<64x4xf32>
    %cst_69 = arith.constant 0.000000e+00 : f32
    %42 = vector.broadcast %cst_69 : f32 to vector<9x9x4xf32>
    %c0_70 = arith.constant 0 : index
    %c0_71 = arith.constant 0 : index
    %c0_72 = arith.constant 0 : index
    %43 = vector.load %arg14[%c0_70, %c0_71, %c0_72] : memref<9x9x4xf32, #tpu.memory_space<vmem>>, vector<9x9x4xf32>
    tpu.vector_store %arg14[%c0_70, %c0_71, %c0_72], %42 {strides = array<i32>} : memref<9x9x4xf32, #tpu.memory_space<vmem>>, vector<9x9x4xf32>,
    %44 = vector.shape_cast %41 : vector<64x4xf32> to vector<8x8x4xf32>
    %c0_73 = arith.constant 0 : index
    %c0_74 = arith.constant 0 : index
    %c0_75 = arith.constant 0 : index
    %45 = vector.load %arg14[%c0_73, %c0_74, %c0_75] : memref<9x9x4xf32, #tpu.memory_space<vmem>>, vector<8x8x4xf32>
    tpu.vector_store %arg14[%c0_73, %c0_74, %c0_75], %44 {strides = array<i32>} : memref<9x9x4xf32, #tpu.memory_space<vmem>>, vector<8x8x4xf32>,
    %c0_76 = arith.constant 0 : index
    %c0_77 = arith.constant 0 : index
    %c0_78 = arith.constant 0 : index
    %46 = vector.load %arg14[%c0_76, %c0_77, %c0_78] : memref<9x9x4xf32, #tpu.memory_space<vmem>>, vector<8x8x4xf32>
    %c0_79 = arith.constant 0 : index
    %c0_80 = arith.constant 0 : index
    %c0_81 = arith.constant 0 : index
    %47 = vector.load %arg18[%c0_79, %c0_80, %c0_81] : memref<8x8x16xf32, #tpu.memory_space<vmem>>, vector<8x8x4xf32>
    tpu.vector_store %arg18[%c0_79, %c0_80, %c0_81], %46 {strides = array<i32>} : memref<8x8x16xf32, #tpu.memory_space<vmem>>, vector<8x8x4xf32>,
    %c0_82 = arith.constant 0 : index
    %c1_83 = arith.constant 1 : index
    %c0_84 = arith.constant 0 : index
    %48 = vector.load %arg14[%c0_82, %c1_83, %c0_84] : memref<9x9x4xf32, #tpu.memory_space<vmem>>, vector<8x8x4xf32>
    %c0_85 = arith.constant 0 : index
    %c0_86 = arith.constant 0 : index
    %c4 = arith.constant 4 : index
    %49 = vector.load %arg18[%c0_85, %c0_86, %c4] : memref<8x8x16xf32, #tpu.memory_space<vmem>>, vector<8x8x4xf32>
    tpu.vector_store %arg18[%c0_85, %c0_86, %c4], %48 {strides = array<i32>} : memref<8x8x16xf32, #tpu.memory_space<vmem>>, vector<8x8x4xf32>,
    %c1_87 = arith.constant 1 : index
    %c0_88 = arith.constant 0 : index
    %c0_89 = arith.constant 0 : index
    %50 = vector.load %arg14[%c1_87, %c0_88, %c0_89] : memref<9x9x4xf32, #tpu.memory_space<vmem>>, vector<8x8x4xf32>
    %c0_90 = arith.constant 0 : index
    %c0_91 = arith.constant 0 : index
    %c8_92 = arith.constant 8 : index
    %51 = vector.load %arg18[%c0_90, %c0_91, %c8_92] : memref<8x8x16xf32, #tpu.memory_space<vmem>>, vector<8x8x4xf32>
    tpu.vector_store %arg18[%c0_90, %c0_91, %c8_92], %50 {strides = array<i32>} : memref<8x8x16xf32, #tpu.memory_space<vmem>>, vector<8x8x4xf32>,
    %c1_93 = arith.constant 1 : index
    %c1_94 = arith.constant 1 : index
    %c0_95 = arith.constant 0 : index
    %52 = vector.load %arg14[%c1_93, %c1_94, %c0_95] : memref<9x9x4xf32, #tpu.memory_space<vmem>>, vector<8x8x4xf32>
    %c0_96 = arith.constant 0 : index
    %c0_97 = arith.constant 0 : index
    %c12 = arith.constant 12 : index
    %53 = vector.load %arg18[%c0_96, %c0_97, %c12] : memref<8x8x16xf32, #tpu.memory_space<vmem>>, vector<8x8x4xf32>
    tpu.vector_store %arg18[%c0_96, %c0_97, %c12], %52 {strides = array<i32>} : memref<8x8x16xf32, #tpu.memory_space<vmem>>, vector<8x8x4xf32>,
    %c0_98 = arith.constant 0 : index
    %c0_99 = arith.constant 0 : index
    %c0_100 = arith.constant 0 : index
    %54 = vector.load %arg18[%c0_98, %c0_99, %c0_100] : memref<8x8x16xf32, #tpu.memory_space<vmem>>, vector<8x8x16xf32>
    %55 = vector.shape_cast %54 : vector<8x8x16xf32> to vector<64x16xf32>
    %c0_101 = arith.constant 0 : index
    %c0_102 = arith.constant 0 : index
    %56 = vector.load %arg6[%c0_101, %c0_102] : memref<16x8xf32, #tpu.memory_space<vmem>>, vector<16x8xf32>
    %cst_103 = arith.constant dense<0.000000e+00> : vector<64x8xf32>
    %57 = tpu.matmul %55, %56, %cst_103 {dimension_numbers = #tpu.dot_dimension_numbers<[1], [0], [0], [1], [0, 0, 1, 1], [], []>} : vector<64x16xf32>, vector<16x8xf32>, vector<64x8xf32> -> vector<64x8xf32>
    %c0_104 = arith.constant 0 : index
    %c0_105 = arith.constant 0 : index
    %58 = vector.load %arg7[%c0_104, %c0_105] : memref<1x8xf32, #tpu.memory_space<vmem>>, vector<1x8xf32>
    %59 = vector.broadcast %58 : vector<1x8xf32> to vector<64x8xf32>
    %60 = arith.addf %57, %59 : vector<64x8xf32>
    %cst_106 = arith.constant 0.000000e+00 : f32
    %61 = vector.broadcast %cst_106 : f32 to vector<64x8xf32>
    %62 = arith.maximumf %60, %61 : vector<64x8xf32>
    %c0_107 = arith.constant 0 : index
    %c0_108 = arith.constant 0 : index
    %c0_109 = arith.constant 0 : index
    %63 = vector.load %arg13[%c0_107, %c0_108, %c0_109] : memref<9x9x8xf32, #tpu.memory_space<vmem>>, vector<8x8x8xf32>
    %c0_110 = arith.constant 0 : index
    %c1_111 = arith.constant 1 : index
    %c0_112 = arith.constant 0 : index
    %64 = vector.load %arg13[%c0_110, %c1_111, %c0_112] : memref<9x9x8xf32, #tpu.memory_space<vmem>>, vector<8x8x8xf32>
    %65 = arith.maximumf %63, %64 : vector<8x8x8xf32>
    %c1_113 = arith.constant 1 : index
    %c0_114 = arith.constant 0 : index
    %c0_115 = arith.constant 0 : index
    %66 = vector.load %arg13[%c1_113, %c0_114, %c0_115] : memref<9x9x8xf32, #tpu.memory_space<vmem>>, vector<8x8x8xf32>
    %c1_116 = arith.constant 1 : index
    %c1_117 = arith.constant 1 : index
    %c0_118 = arith.constant 0 : index
    %67 = vector.load %arg13[%c1_116, %c1_117, %c0_118] : memref<9x9x8xf32, #tpu.memory_space<vmem>>, vector<8x8x8xf32>
    %68 = arith.maximumf %66, %67 : vector<8x8x8xf32>
    %69 = arith.maximumf %65, %68 : vector<8x8x8xf32>
    %cst_119 = arith.constant 0.000000e+00 : f32
    %70 = vector.broadcast %cst_119 : f32 to vector<10x10x16xf32>
    %c0_120 = arith.constant 0 : index
    %c0_121 = arith.constant 0 : index
    %c0_122 = arith.constant 0 : index
    %71 = vector.load %arg15[%c0_120, %c0_121, %c0_122] : memref<10x10x16xf32, #tpu.memory_space<vmem>>, vector<10x10x16xf32>
    tpu.vector_store %arg15[%c0_120, %c0_121, %c0_122], %70 {strides = array<i32>} : memref<10x10x16xf32, #tpu.memory_space<vmem>>, vector<10x10x16xf32>,
    %c1_123 = arith.constant 1 : index
    %c1_124 = arith.constant 1 : index
    %c0_125 = arith.constant 0 : index
    %72 = vector.load %arg15[%c1_123, %c1_124, %c0_125] : memref<10x10x16xf32, #tpu.memory_space<vmem>>, vector<8x8x8xf32>
    tpu.vector_store %arg15[%c1_123, %c1_124, %c0_125], %69 {strides = array<i32>} : memref<10x10x16xf32, #tpu.memory_space<vmem>>, vector<8x8x8xf32>,
    %73 = vector.shape_cast %62 : vector<64x8xf32> to vector<8x8x8xf32>
    %c1_126 = arith.constant 1 : index
    %c1_127 = arith.constant 1 : index
    %c8_128 = arith.constant 8 : index
    %74 = vector.load %arg15[%c1_126, %c1_127, %c8_128] : memref<10x10x16xf32, #tpu.memory_space<vmem>>, vector<8x8x8xf32>
    tpu.vector_store %arg15[%c1_126, %c1_127, %c8_128], %73 {strides = array<i32>} : memref<10x10x16xf32, #tpu.memory_space<vmem>>, vector<8x8x8xf32>,
    %c0_129 = arith.constant 0 : index
    %c0_130 = arith.constant 0 : index
    %c0_131 = arith.constant 0 : index
    %75 = vector.load %arg15[%c0_129, %c0_130, %c0_131] : memref<10x10x16xf32, #tpu.memory_space<vmem>>, vector<10x10x16xf32>
    %76 = vector.shape_cast %75 : vector<10x10x16xf32> to vector<100x16xf32>
    %77 = tpu.iota {dimensions = array<i32: 0>} : vector<4x4x100xi32>
    %78 = tpu.iota {dimensions = array<i32: 1>} : vector<4x4x100xi32>
    %79 = tpu.iota {dimensions = array<i32: 2>} : vector<4x4x100xi32>
    %c2_i32 = arith.constant 2 : i32
    %80 = vector.broadcast %c2_i32 : i32 to vector<4x4x100xi32>
    %81 = arith.muli %80, %77 : vector<4x4x100xi32>
    %c0_i32 = arith.constant 0 : i32
    %82 = vector.broadcast %c0_i32 : i32 to vector<4x4x100xi32>
    %83 = arith.addi %81, %82 : vector<4x4x100xi32>
    %c10_i32 = arith.constant 10 : i32
    %84 = vector.broadcast %c10_i32 : i32 to vector<4x4x100xi32>
    %85 = arith.muli %83, %84 : vector<4x4x100xi32>
    %c2_i32_132 = arith.constant 2 : i32
    %86 = vector.broadcast %c2_i32_132 : i32 to vector<4x4x100xi32>
    %87 = arith.muli %86, %78 : vector<4x4x100xi32>
    %c0_i32_133 = arith.constant 0 : i32
    %88 = vector.broadcast %c0_i32_133 : i32 to vector<4x4x100xi32>
    %89 = arith.addi %87, %88 : vector<4x4x100xi32>
    %90 = arith.addi %85, %89 : vector<4x4x100xi32>
    %91 = arith.cmpi eq, %79, %90 : vector<4x4x100xi32>
    %92 = arith.extui %91 : vector<4x4x100xi1> to vector<4x4x100xi32>
    %93 = arith.sitofp %92 : vector<4x4x100xi32> to vector<4x4x100xf32>
    %94 = vector.shape_cast %93 : vector<4x4x100xf32> to vector<16x100xf32>
    %cst_134 = arith.constant dense<0.000000e+00> : vector<16x16xf32>
    %95 = tpu.matmul %94, %76, %cst_134 {dimension_numbers = #tpu.dot_dimension_numbers<[1], [0], [0], [1], [0, 0, 1, 1], [], []>} : vector<16x100xf32>, vector<100x16xf32>, vector<16x16xf32> -> vector<16x16xf32>
    %c0_135 = arith.constant 0 : index
    %c0_136 = arith.constant 0 : index
    %96 = vector.load %arg19[%c0_135, %c0_136] : memref<16x144xf32, #tpu.memory_space<vmem>>, vector<16x16xf32>
    tpu.vector_store %arg19[%c0_135, %c0_136], %95 {strides = array<i32>} : memref<16x144xf32, #tpu.memory_space<vmem>>, vector<16x16xf32>,
    %c2_i32_137 = arith.constant 2 : i32
    %97 = vector.broadcast %c2_i32_137 : i32 to vector<4x4x100xi32>
    %98 = arith.muli %97, %77 : vector<4x4x100xi32>
    %c0_i32_138 = arith.constant 0 : i32
    %99 = vector.broadcast %c0_i32_138 : i32 to vector<4x4x100xi32>
    %100 = arith.addi %98, %99 : vector<4x4x100xi32>
    %c10_i32_139 = arith.constant 10 : i32
    %101 = vector.broadcast %c10_i32_139 : i32 to vector<4x4x100xi32>
    %102 = arith.muli %100, %101 : vector<4x4x100xi32>
    %c2_i32_140 = arith.constant 2 : i32
    %103 = vector.broadcast %c2_i32_140 : i32 to vector<4x4x100xi32>
    %104 = arith.muli %103, %78 : vector<4x4x100xi32>
    %c1_i32 = arith.constant 1 : i32
    %105 = vector.broadcast %c1_i32 : i32 to vector<4x4x100xi32>
    %106 = arith.addi %104, %105 : vector<4x4x100xi32>
    %107 = arith.addi %102, %106 : vector<4x4x100xi32>
    %108 = arith.cmpi eq, %79, %107 : vector<4x4x100xi32>
    %109 = arith.extui %108 : vector<4x4x100xi1> to vector<4x4x100xi32>
    %110 = arith.sitofp %109 : vector<4x4x100xi32> to vector<4x4x100xf32>
    %111 = vector.shape_cast %110 : vector<4x4x100xf32> to vector<16x100xf32>
    %cst_141 = arith.constant dense<0.000000e+00> : vector<16x16xf32>
    %112 = tpu.matmul %111, %76, %cst_141 {dimension_numbers = #tpu.dot_dimension_numbers<[1], [0], [0], [1], [0, 0, 1, 1], [], []>} : vector<16x100xf32>, vector<100x16xf32>, vector<16x16xf32> -> vector<16x16xf32>
    %c0_142 = arith.constant 0 : index
    %c16_143 = arith.constant 16 : index
    %113 = vector.load %arg19[%c0_142, %c16_143] : memref<16x144xf32, #tpu.memory_space<vmem>>, vector<16x16xf32>
    tpu.vector_store %arg19[%c0_142, %c16_143], %112 {strides = array<i32>} : memref<16x144xf32, #tpu.memory_space<vmem>>, vector<16x16xf32>,
    %c2_i32_144 = arith.constant 2 : i32
    %114 = vector.broadcast %c2_i32_144 : i32 to vector<4x4x100xi32>
    %115 = arith.muli %114, %77 : vector<4x4x100xi32>
    %c0_i32_145 = arith.constant 0 : i32
    %116 = vector.broadcast %c0_i32_145 : i32 to vector<4x4x100xi32>
    %117 = arith.addi %115, %116 : vector<4x4x100xi32>
    %c10_i32_146 = arith.constant 10 : i32
    %118 = vector.broadcast %c10_i32_146 : i32 to vector<4x4x100xi32>
    %119 = arith.muli %117, %118 : vector<4x4x100xi32>
    %c2_i32_147 = arith.constant 2 : i32
    %120 = vector.broadcast %c2_i32_147 : i32 to vector<4x4x100xi32>
    %121 = arith.muli %120, %78 : vector<4x4x100xi32>
    %c2_i32_148 = arith.constant 2 : i32
    %122 = vector.broadcast %c2_i32_148 : i32 to vector<4x4x100xi32>
    %123 = arith.addi %121, %122 : vector<4x4x100xi32>
    %124 = arith.addi %119, %123 : vector<4x4x100xi32>
    %125 = arith.cmpi eq, %79, %124 : vector<4x4x100xi32>
    %126 = arith.extui %125 : vector<4x4x100xi1> to vector<4x4x100xi32>
    %127 = arith.sitofp %126 : vector<4x4x100xi32> to vector<4x4x100xf32>
    %128 = vector.shape_cast %127 : vector<4x4x100xf32> to vector<16x100xf32>
    %cst_149 = arith.constant dense<0.000000e+00> : vector<16x16xf32>
    %129 = tpu.matmul %128, %76, %cst_149 {dimension_numbers = #tpu.dot_dimension_numbers<[1], [0], [0], [1], [0, 0, 1, 1], [], []>} : vector<16x100xf32>, vector<100x16xf32>, vector<16x16xf32> -> vector<16x16xf32>
    %c0_150 = arith.constant 0 : index
    %c32_151 = arith.constant 32 : index
    %130 = vector.load %arg19[%c0_150, %c32_151] : memref<16x144xf32, #tpu.memory_space<vmem>>, vector<16x16xf32>
    tpu.vector_store %arg19[%c0_150, %c32_151], %129 {strides = array<i32>} : memref<16x144xf32, #tpu.memory_space<vmem>>, vector<16x16xf32>,
    %c2_i32_152 = arith.constant 2 : i32
    %131 = vector.broadcast %c2_i32_152 : i32 to vector<4x4x100xi32>
    %132 = arith.muli %131, %77 : vector<4x4x100xi32>
    %c1_i32_153 = arith.constant 1 : i32
    %133 = vector.broadcast %c1_i32_153 : i32 to vector<4x4x100xi32>
    %134 = arith.addi %132, %133 : vector<4x4x100xi32>
    %c10_i32_154 = arith.constant 10 : i32
    %135 = vector.broadcast %c10_i32_154 : i32 to vector<4x4x100xi32>
    %136 = arith.muli %134, %135 : vector<4x4x100xi32>
    %c2_i32_155 = arith.constant 2 : i32
    %137 = vector.broadcast %c2_i32_155 : i32 to vector<4x4x100xi32>
    %138 = arith.muli %137, %78 : vector<4x4x100xi32>
    %c0_i32_156 = arith.constant 0 : i32
    %139 = vector.broadcast %c0_i32_156 : i32 to vector<4x4x100xi32>
    %140 = arith.addi %138, %139 : vector<4x4x100xi32>
    %141 = arith.addi %136, %140 : vector<4x4x100xi32>
    %142 = arith.cmpi eq, %79, %141 : vector<4x4x100xi32>
    %143 = arith.extui %142 : vector<4x4x100xi1> to vector<4x4x100xi32>
    %144 = arith.sitofp %143 : vector<4x4x100xi32> to vector<4x4x100xf32>
    %145 = vector.shape_cast %144 : vector<4x4x100xf32> to vector<16x100xf32>
    %cst_157 = arith.constant dense<0.000000e+00> : vector<16x16xf32>
    %146 = tpu.matmul %145, %76, %cst_157 {dimension_numbers = #tpu.dot_dimension_numbers<[1], [0], [0], [1], [0, 0, 1, 1], [], []>} : vector<16x100xf32>, vector<100x16xf32>, vector<16x16xf32> -> vector<16x16xf32>
    %c0_158 = arith.constant 0 : index
    %c48_159 = arith.constant 48 : index
    %147 = vector.load %arg19[%c0_158, %c48_159] : memref<16x144xf32, #tpu.memory_space<vmem>>, vector<16x16xf32>
    tpu.vector_store %arg19[%c0_158, %c48_159], %146 {strides = array<i32>} : memref<16x144xf32, #tpu.memory_space<vmem>>, vector<16x16xf32>,
    %c2_i32_160 = arith.constant 2 : i32
    %148 = vector.broadcast %c2_i32_160 : i32 to vector<4x4x100xi32>
    %149 = arith.muli %148, %77 : vector<4x4x100xi32>
    %c1_i32_161 = arith.constant 1 : i32
    %150 = vector.broadcast %c1_i32_161 : i32 to vector<4x4x100xi32>
    %151 = arith.addi %149, %150 : vector<4x4x100xi32>
    %c10_i32_162 = arith.constant 10 : i32
    %152 = vector.broadcast %c10_i32_162 : i32 to vector<4x4x100xi32>
    %153 = arith.muli %151, %152 : vector<4x4x100xi32>
    %c2_i32_163 = arith.constant 2 : i32
    %154 = vector.broadcast %c2_i32_163 : i32 to vector<4x4x100xi32>
    %155 = arith.muli %154, %78 : vector<4x4x100xi32>
    %c1_i32_164 = arith.constant 1 : i32
    %156 = vector.broadcast %c1_i32_164 : i32 to vector<4x4x100xi32>
    %157 = arith.addi %155, %156 : vector<4x4x100xi32>
    %158 = arith.addi %153, %157 : vector<4x4x100xi32>
    %159 = arith.cmpi eq, %79, %158 : vector<4x4x100xi32>
    %160 = arith.extui %159 : vector<4x4x100xi1> to vector<4x4x100xi32>
    %161 = arith.sitofp %160 : vector<4x4x100xi32> to vector<4x4x100xf32>
    %162 = vector.shape_cast %161 : vector<4x4x100xf32> to vector<16x100xf32>
    %cst_165 = arith.constant dense<0.000000e+00> : vector<16x16xf32>
    %163 = tpu.matmul %162, %76, %cst_165 {dimension_numbers = #tpu.dot_dimension_numbers<[1], [0], [0], [1], [0, 0, 1, 1], [], []>} : vector<16x100xf32>, vector<100x16xf32>, vector<16x16xf32> -> vector<16x16xf32>
    %c0_166 = arith.constant 0 : index
    %c64 = arith.constant 64 : index
    %164 = vector.load %arg19[%c0_166, %c64] : memref<16x144xf32, #tpu.memory_space<vmem>>, vector<16x16xf32>
    tpu.vector_store %arg19[%c0_166, %c64], %163 {strides = array<i32>} : memref<16x144xf32, #tpu.memory_space<vmem>>, vector<16x16xf32>,
    %c2_i32_167 = arith.constant 2 : i32
    %165 = vector.broadcast %c2_i32_167 : i32 to vector<4x4x100xi32>
    %166 = arith.muli %165, %77 : vector<4x4x100xi32>
    %c1_i32_168 = arith.constant 1 : i32
    %167 = vector.broadcast %c1_i32_168 : i32 to vector<4x4x100xi32>
    %168 = arith.addi %166, %167 : vector<4x4x100xi32>
    %c10_i32_169 = arith.constant 10 : i32
    %169 = vector.broadcast %c10_i32_169 : i32 to vector<4x4x100xi32>
    %170 = arith.muli %168, %169 : vector<4x4x100xi32>
    %c2_i32_170 = arith.constant 2 : i32
    %171 = vector.broadcast %c2_i32_170 : i32 to vector<4x4x100xi32>
    %172 = arith.muli %171, %78 : vector<4x4x100xi32>
    %c2_i32_171 = arith.constant 2 : i32
    %173 = vector.broadcast %c2_i32_171 : i32 to vector<4x4x100xi32>
    %174 = arith.addi %172, %173 : vector<4x4x100xi32>
    %175 = arith.addi %170, %174 : vector<4x4x100xi32>
    %176 = arith.cmpi eq, %79, %175 : vector<4x4x100xi32>
    %177 = arith.extui %176 : vector<4x4x100xi1> to vector<4x4x100xi32>
    %178 = arith.sitofp %177 : vector<4x4x100xi32> to vector<4x4x100xf32>
    %179 = vector.shape_cast %178 : vector<4x4x100xf32> to vector<16x100xf32>
    %cst_172 = arith.constant dense<0.000000e+00> : vector<16x16xf32>
    %180 = tpu.matmul %179, %76, %cst_172 {dimension_numbers = #tpu.dot_dimension_numbers<[1], [0], [0], [1], [0, 0, 1, 1], [], []>} : vector<16x100xf32>, vector<100x16xf32>, vector<16x16xf32> -> vector<16x16xf32>
    %c0_173 = arith.constant 0 : index
    %c80 = arith.constant 80 : index
    %181 = vector.load %arg19[%c0_173, %c80] : memref<16x144xf32, #tpu.memory_space<vmem>>, vector<16x16xf32>
    tpu.vector_store %arg19[%c0_173, %c80], %180 {strides = array<i32>} : memref<16x144xf32, #tpu.memory_space<vmem>>, vector<16x16xf32>,
    %c2_i32_174 = arith.constant 2 : i32
    %182 = vector.broadcast %c2_i32_174 : i32 to vector<4x4x100xi32>
    %183 = arith.muli %182, %77 : vector<4x4x100xi32>
    %c2_i32_175 = arith.constant 2 : i32
    %184 = vector.broadcast %c2_i32_175 : i32 to vector<4x4x100xi32>
    %185 = arith.addi %183, %184 : vector<4x4x100xi32>
    %c10_i32_176 = arith.constant 10 : i32
    %186 = vector.broadcast %c10_i32_176 : i32 to vector<4x4x100xi32>
    %187 = arith.muli %185, %186 : vector<4x4x100xi32>
    %c2_i32_177 = arith.constant 2 : i32
    %188 = vector.broadcast %c2_i32_177 : i32 to vector<4x4x100xi32>
    %189 = arith.muli %188, %78 : vector<4x4x100xi32>
    %c0_i32_178 = arith.constant 0 : i32
    %190 = vector.broadcast %c0_i32_178 : i32 to vector<4x4x100xi32>
    %191 = arith.addi %189, %190 : vector<4x4x100xi32>
    %192 = arith.addi %187, %191 : vector<4x4x100xi32>
    %193 = arith.cmpi eq, %79, %192 : vector<4x4x100xi32>
    %194 = arith.extui %193 : vector<4x4x100xi1> to vector<4x4x100xi32>
    %195 = arith.sitofp %194 : vector<4x4x100xi32> to vector<4x4x100xf32>
    %196 = vector.shape_cast %195 : vector<4x4x100xf32> to vector<16x100xf32>
    %cst_179 = arith.constant dense<0.000000e+00> : vector<16x16xf32>
    %197 = tpu.matmul %196, %76, %cst_179 {dimension_numbers = #tpu.dot_dimension_numbers<[1], [0], [0], [1], [0, 0, 1, 1], [], []>} : vector<16x100xf32>, vector<100x16xf32>, vector<16x16xf32> -> vector<16x16xf32>
    %c0_180 = arith.constant 0 : index
    %c96 = arith.constant 96 : index
    %198 = vector.load %arg19[%c0_180, %c96] : memref<16x144xf32, #tpu.memory_space<vmem>>, vector<16x16xf32>
    tpu.vector_store %arg19[%c0_180, %c96], %197 {strides = array<i32>} : memref<16x144xf32, #tpu.memory_space<vmem>>, vector<16x16xf32>,
    %c2_i32_181 = arith.constant 2 : i32
    %199 = vector.broadcast %c2_i32_181 : i32 to vector<4x4x100xi32>
    %200 = arith.muli %199, %77 : vector<4x4x100xi32>
    %c2_i32_182 = arith.constant 2 : i32
    %201 = vector.broadcast %c2_i32_182 : i32 to vector<4x4x100xi32>
    %202 = arith.addi %200, %201 : vector<4x4x100xi32>
    %c10_i32_183 = arith.constant 10 : i32
    %203 = vector.broadcast %c10_i32_183 : i32 to vector<4x4x100xi32>
    %204 = arith.muli %202, %203 : vector<4x4x100xi32>
    %c2_i32_184 = arith.constant 2 : i32
    %205 = vector.broadcast %c2_i32_184 : i32 to vector<4x4x100xi32>
    %206 = arith.muli %205, %78 : vector<4x4x100xi32>
    %c1_i32_185 = arith.constant 1 : i32
    %207 = vector.broadcast %c1_i32_185 : i32 to vector<4x4x100xi32>
    %208 = arith.addi %206, %207 : vector<4x4x100xi32>
    %209 = arith.addi %204, %208 : vector<4x4x100xi32>
    %210 = arith.cmpi eq, %79, %209 : vector<4x4x100xi32>
    %211 = arith.extui %210 : vector<4x4x100xi1> to vector<4x4x100xi32>
    %212 = arith.sitofp %211 : vector<4x4x100xi32> to vector<4x4x100xf32>
    %213 = vector.shape_cast %212 : vector<4x4x100xf32> to vector<16x100xf32>
    %cst_186 = arith.constant dense<0.000000e+00> : vector<16x16xf32>
    %214 = tpu.matmul %213, %76, %cst_186 {dimension_numbers = #tpu.dot_dimension_numbers<[1], [0], [0], [1], [0, 0, 1, 1], [], []>} : vector<16x100xf32>, vector<100x16xf32>, vector<16x16xf32> -> vector<16x16xf32>
    %c0_187 = arith.constant 0 : index
    %c112 = arith.constant 112 : index
    %215 = vector.load %arg19[%c0_187, %c112] : memref<16x144xf32, #tpu.memory_space<vmem>>, vector<16x16xf32>
    tpu.vector_store %arg19[%c0_187, %c112], %214 {strides = array<i32>} : memref<16x144xf32, #tpu.memory_space<vmem>>, vector<16x16xf32>,
    %c2_i32_188 = arith.constant 2 : i32
    %216 = vector.broadcast %c2_i32_188 : i32 to vector<4x4x100xi32>
    %217 = arith.muli %216, %77 : vector<4x4x100xi32>
    %c2_i32_189 = arith.constant 2 : i32
    %218 = vector.broadcast %c2_i32_189 : i32 to vector<4x4x100xi32>
    %219 = arith.addi %217, %218 : vector<4x4x100xi32>
    %c10_i32_190 = arith.constant 10 : i32
    %220 = vector.broadcast %c10_i32_190 : i32 to vector<4x4x100xi32>
    %221 = arith.muli %219, %220 : vector<4x4x100xi32>
    %c2_i32_191 = arith.constant 2 : i32
    %222 = vector.broadcast %c2_i32_191 : i32 to vector<4x4x100xi32>
    %223 = arith.muli %222, %78 : vector<4x4x100xi32>
    %c2_i32_192 = arith.constant 2 : i32
    %224 = vector.broadcast %c2_i32_192 : i32 to vector<4x4x100xi32>
    %225 = arith.addi %223, %224 : vector<4x4x100xi32>
    %226 = arith.addi %221, %225 : vector<4x4x100xi32>
    %227 = arith.cmpi eq, %79, %226 : vector<4x4x100xi32>
    %228 = arith.extui %227 : vector<4x4x100xi1> to vector<4x4x100xi32>
    %229 = arith.sitofp %228 : vector<4x4x100xi32> to vector<4x4x100xf32>
    %230 = vector.shape_cast %229 : vector<4x4x100xf32> to vector<16x100xf32>
    %cst_193 = arith.constant dense<0.000000e+00> : vector<16x16xf32>
    %231 = tpu.matmul %230, %76, %cst_193 {dimension_numbers = #tpu.dot_dimension_numbers<[1], [0], [0], [1], [0, 0, 1, 1], [], []>} : vector<16x100xf32>, vector<100x16xf32>, vector<16x16xf32> -> vector<16x16xf32>
    %c0_194 = arith.constant 0 : index
    %c128 = arith.constant 128 : index
    %232 = vector.load %arg19[%c0_194, %c128] : memref<16x144xf32, #tpu.memory_space<vmem>>, vector<16x16xf32>
    tpu.vector_store %arg19[%c0_194, %c128], %231 {strides = array<i32>} : memref<16x144xf32, #tpu.memory_space<vmem>>, vector<16x16xf32>,
    %c0_195 = arith.constant 0 : index
    %c0_196 = arith.constant 0 : index
    %233 = vector.load %arg19[%c0_195, %c0_196] : memref<16x144xf32, #tpu.memory_space<vmem>>, vector<16x144xf32>
    %c0_197 = arith.constant 0 : index
    %c0_198 = arith.constant 0 : index
    %234 = vector.load %arg8[%c0_197, %c0_198] : memref<144x8xf32, #tpu.memory_space<vmem>>, vector<144x8xf32>
    %cst_199 = arith.constant dense<0.000000e+00> : vector<16x8xf32>
    %235 = tpu.matmul %233, %234, %cst_199 {dimension_numbers = #tpu.dot_dimension_numbers<[1], [0], [0], [1], [0, 0, 1, 1], [], []>} : vector<16x144xf32>, vector<144x8xf32>, vector<16x8xf32> -> vector<16x8xf32>
    %c0_200 = arith.constant 0 : index
    %c0_201 = arith.constant 0 : index
    %236 = vector.load %arg9[%c0_200, %c0_201] : memref<1x8xf32, #tpu.memory_space<vmem>>, vector<1x8xf32>
    %237 = vector.broadcast %236 : vector<1x8xf32> to vector<16x8xf32>
    %238 = arith.addf %235, %237 : vector<16x8xf32>
    %cst_202 = arith.constant 0.000000e+00 : f32
    %239 = vector.broadcast %cst_202 : f32 to vector<16x8xf32>
    %240 = arith.maximumf %238, %239 : vector<16x8xf32>
    %c0_203 = arith.constant 0 : index
    %c0_204 = arith.constant 0 : index
    %241 = vector.load %arg10[%c0_203, %c0_204] : memref<8x16xf32, #tpu.memory_space<vmem>>, vector<8x16xf32>
    %cst_205 = arith.constant dense<0.000000e+00> : vector<16x16xf32>
    %242 = tpu.matmul %240, %241, %cst_205 {dimension_numbers = #tpu.dot_dimension_numbers<[1], [0], [0], [1], [0, 0, 1, 1], [], []>} : vector<16x8xf32>, vector<8x16xf32>, vector<16x16xf32> -> vector<16x16xf32>
    %c0_206 = arith.constant 0 : index
    %c0_207 = arith.constant 0 : index
    %243 = vector.load %arg11[%c0_206, %c0_207] : memref<1x16xf32, #tpu.memory_space<vmem>>, vector<1x16xf32>
    %244 = vector.broadcast %243 : vector<1x16xf32> to vector<16x16xf32>
    %245 = arith.addf %242, %244 : vector<16x16xf32>
    %cst_208 = arith.constant 0.000000e+00 : f32
    %246 = vector.broadcast %cst_208 : f32 to vector<16x16xf32>
    %247 = arith.maximumf %245, %246 : vector<16x16xf32>
    %c0_209 = arith.constant 0 : index
    %c0_210 = arith.constant 0 : index
    %c0_211 = arith.constant 0 : index
    %248 = vector.load %arg12[%c0_209, %c0_210, %c0_211] : memref<1x16x16xf32, #tpu.memory_space<vmem>>, vector<1x16x16xf32>
    %249 = vector.shape_cast %248 : vector<1x16x16xf32> to vector<16x16xf32>
    %250 = vector.shape_cast %247 : vector<16x16xf32> to vector<1x16x16xf32>
    tpu.vector_store %arg12[%c0_209, %c0_210, %c0_211], %250 {strides = array<i32>} : memref<1x16x16xf32, #tpu.memory_space<vmem>>, vector<1x16x16xf32>,
    return
  }
  func.func @transform_0(%arg0: i32) -> (i32, i32, i32, i32) {
    %c0_i32 = arith.constant 0 : i32
    %c0_i32_0 = arith.constant 0 : i32
    %c0_i32_1 = arith.constant 0 : i32
    %c0_i32_2 = arith.constant 0 : i32
    return %arg0, %c0_i32, %c0_i32_0, %c0_i32_1 : i32, i32, i32, i32
  }
  func.func @transform_1(%arg0: i32) -> (i32, i32) {
    %c0_i32 = arith.constant 0 : i32
    %c0_i32_0 = arith.constant 0 : i32
    %c0_i32_1 = arith.constant 0 : i32
    return %c0_i32, %c0_i32_0 : i32, i32
  }
  func.func @transform_2(%arg0: i32) -> (i32, i32) {
    %c0_i32 = arith.constant 0 : i32
    %c0_i32_0 = arith.constant 0 : i32
    %c0_i32_1 = arith.constant 0 : i32
    return %c0_i32, %c0_i32_0 : i32, i32
  }
  func.func @transform_3(%arg0: i32) -> (i32, i32) {
    %c0_i32 = arith.constant 0 : i32
    %c0_i32_0 = arith.constant 0 : i32
    %c0_i32_1 = arith.constant 0 : i32
    return %c0_i32, %c0_i32_0 : i32, i32
  }
  func.func @transform_4(%arg0: i32) -> (i32, i32) {
    %c0_i32 = arith.constant 0 : i32
    %c0_i32_0 = arith.constant 0 : i32
    %c0_i32_1 = arith.constant 0 : i32
    return %c0_i32, %c0_i32_0 : i32, i32
  }
  func.func @transform_5(%arg0: i32) -> (i32, i32) {
    %c0_i32 = arith.constant 0 : i32
    %c0_i32_0 = arith.constant 0 : i32
    %c0_i32_1 = arith.constant 0 : i32
    return %c0_i32, %c0_i32_0 : i32, i32
  }
  func.func @transform_6(%arg0: i32) -> (i32, i32) {
    %c0_i32 = arith.constant 0 : i32
    %c0_i32_0 = arith.constant 0 : i32
    %c0_i32_1 = arith.constant 0 : i32
    return %c0_i32, %c0_i32_0 : i32, i32
  }
  func.func @transform_7(%arg0: i32) -> (i32, i32) {
    %c0_i32 = arith.constant 0 : i32
    %c0_i32_0 = arith.constant 0 : i32
    %c0_i32_1 = arith.constant 0 : i32
    return %c0_i32, %c0_i32_0 : i32, i32
  }
  func.func @transform_8(%arg0: i32) -> (i32, i32) {
    %c0_i32 = arith.constant 0 : i32
    %c0_i32_0 = arith.constant 0 : i32
    %c0_i32_1 = arith.constant 0 : i32
    return %c0_i32, %c0_i32_0 : i32, i32
  }
  func.func @transform_9(%arg0: i32) -> (i32, i32) {
    %c0_i32 = arith.constant 0 : i32
    %c0_i32_0 = arith.constant 0 : i32
    %c0_i32_1 = arith.constant 0 : i32
    return %c0_i32, %c0_i32_0 : i32, i32
  }
  func.func @transform_10(%arg0: i32) -> (i32, i32) {
    %c0_i32 = arith.constant 0 : i32
    %c0_i32_0 = arith.constant 0 : i32
    %c0_i32_1 = arith.constant 0 : i32
    return %c0_i32, %c0_i32_0 : i32, i32
  }
  func.func @transform_11(%arg0: i32) -> (i32, i32, i32) {
    %c0_i32 = arith.constant 0 : i32
    %c0_i32_0 = arith.constant 0 : i32
    %c0_i32_1 = arith.constant 0 : i32
    return %arg0, %c0_i32, %c0_i32_0 : i32, i32, i32
  }
}

</mosaic_0001>

<llo_original>
// kernel: hgstem_forward.1
$region0: #{hgstem_forward.1}
  #allocation0 [shape = 'u32[]', space=smem, size = 0x4, offset = 0x4, fixed_abs, tag = 'smem constant byte address 0x4 - core index']
  #allocation1 [shape = 'u32[144,128]{1,0:T(1,128)}', space=vmem, size = 0x12000, scoped, tag = 'internal scratch']
  #allocation2 [shape = 'f32[9,9,8]{2,1,0:T(8,128)}', space=vmem, size = 0x12000, scoped, tag = 'scratch operand']
  #allocation3 [shape = 'f32[9,9,4]{2,1,0:T(8,128)}', space=vmem, size = 0x12000, scoped, tag = 'scratch operand']
  #allocation4 [shape = 'f32[10,10,16]{2,1,0:T(8,128)}', space=vmem, size = 0x14000, scoped, tag = 'scratch operand']
  #allocation5 [shape = 'f32[8,8,64]{2,1,0:T(8,128)}', space=vmem, size = 0x8000, scoped, tag = 'scratch operand']
  #allocation6 [shape = 'f32[8,8,32]{2,1,0:T(8,128)}', space=vmem, size = 0x8000, scoped, tag = 'scratch operand']
  #allocation7 [shape = 'f32[8,8,16]{2,1,0:T(8,128)}', space=vmem, size = 0x8000, scoped, tag = 'scratch operand']
  #allocation8 [shape = 'f32[16,144]{1,0:T(8,128)}', space=vmem, size = 0x4000, scoped, tag = 'scratch operand']
  %s0 = inlined_call_operand.vmem [shape: f32[2,9,9,16], index: 0, kind: input, shape index: {}]
  %s1 = inlined_call_operand.vmem [shape: f32[64,8], index: 1, kind: input, shape index: {}]
  %s2 = inlined_call_operand.vmem [shape: f32[1,8], index: 2, kind: input, shape index: {}]
  %s3 = inlined_call_operand.vmem [shape: f32[32,4], index: 3, kind: input, shape index: {}]
  %s4 = inlined_call_operand.vmem [shape: f32[1,4], index: 4, kind: input, shape index: {}]
  %s5 = inlined_call_operand.vmem [shape: f32[16,8], index: 5, kind: input, shape index: {}]
  %s6 = inlined_call_operand.vmem [shape: f32[1,8], index: 6, kind: input, shape index: {}]
  %s7 = inlined_call_operand.vmem [shape: f32[144,8], index: 7, kind: input, shape index: {}]
  %s8 = inlined_call_operand.vmem [shape: f32[1,8], index: 8, kind: input, shape index: {}]
  %s9 = inlined_call_operand.vmem [shape: f32[8,16], index: 9, kind: input, shape index: {}]
  %s10 = inlined_call_operand.vmem [shape: f32[1,16], index: 10, kind: input, shape index: {}]
  %s11 = inlined_call_operand.hbm [shape: f32[2,16,16], index: 11, kind: output, shape index: {}]
  %s12 = sld [smem:[#allocation0]]
  $region77: #{hgstem_forward.1} parent=0
    _
  %s14 = ssub.s32 1, %s12
  %s15 = scalar_select 0, %s14, %s12
  $region1: #{hgstem_forward.1} parent=0
    #allocation9 [shape = 'u8[16384]{0}', space=vmem, size = 0x4000, scoped, tag = 'output window, operand 0']
    #allocation10 [shape = 's32[2]{0}', space=sflag, size = 0x8, scoped, tag = 'scoped memory for hgstem_forward.1']
    %16 = vsyncpa [#allocation10], 0
    %s17 = scalar_lea.sflag [#allocation10], 1
    %18 = vsyncpa %s17, 0
    loop: start=0, step=1, limit=4
    $region2: #{hgstem_forward.1} parent=1 // loop_pre_header
      _
    $region3: #{hgstem_forward.1} parent=1 // loop_header
      %s20 = sphi 0, %s24
      %p21 = scmp.ge.s32.totalorder %s20, 4
      %s30 = sphi 0, %s32
      %s33 = sphi 0, %s30
      %s34 = sphi 0, %s33
      %s50 = sphi 0, %s34
      %s54 = sphi 0, %s54
      %s56 = sphi 0, %s54
      %s57 = sphi 0, %s56
      %s71 = sphi 0, %s57
      %s75 = sphi 0, %s75
      %s77 = sphi 0, %s75
      %s78 = sphi 0, %s77
      %s92 = sphi 0, %s78
      %s96 = sphi 0, %s96
      %s98 = sphi 0, %s96
      %s99 = sphi 0, %s98
      %s113 = sphi 0, %s99
      %s117 = sphi 0, %s117
      %s119 = sphi 0, %s117
      %s120 = sphi 0, %s119
      %s134 = sphi 0, %s120
      %s138 = sphi 0, %s138
      %s140 = sphi 0, %s138
      %s141 = sphi 0, %s140
      %s155 = sphi 0, %s141
      %s159 = sphi 0, %s159
      %s161 = sphi 0, %s159
      %s162 = sphi 0, %s161
      %s176 = sphi 0, %s162
      %s180 = sphi 0, %s180
      %s182 = sphi 0, %s180
      %s183 = sphi 0, %s182
      %s197 = sphi 0, %s183
      %s201 = sphi 0, %s201
      %s203 = sphi 0, %s201
      %s204 = sphi 0, %s203
      %s218 = sphi 0, %s204
      %s222 = sphi 0, %s222
      %s224 = sphi 0, %s222
      %s225 = sphi 0, %s224
      %s239 = sphi 0, %s225
      %s243 = sphi 0, %s243
      %s245 = sphi 0, %s243
      %s246 = sphi 0, %s245
      %s260 = sphi 0, %s246
      %s266 = sphi 0, %s268
      %s269 = sphi 0, %s266
      %s270 = sphi 0, %s269
      %s286 = sphi 0, %s270
    $region4: #{hgstem_forward.1} parent=1 // loop_header_branch
      %23 = sbr.rel (%p21) target = $region8
    $region5: #{hgstem_forward.1} parent=1 // loop_body
      %s25 = ssub.s32 %s20, 1
      %s26 = ssub.s32 %s20, 2
      %s27 = sadd.s32 %s20, 1
      %s28 = ssub.s32 %s20, %s27
      %p29 = scmp.eq.s32.totalorder %s28, 0
      %s31 = sadd.s32 %s30, 1
      %s32 = scalar_select %p29, %s30, %s31
      %p35 = pneg %p29
      %p36 = scmp.eq.s32.totalorder %s20, 1
      %p37 = por %p35, %p36
      %p38 = scmp.ne.s32.totalorder %s30, %s33
      %p39 = scmp.eq.s32.totalorder %s20, 0
      %p40 = por %p38, %p39
      %p41 = scmp.ne.s32.totalorder %s30, %s33
      %p42 = scmp.eq.s32.totalorder %s25, 1
      %p43 = por %p41, %p42
      %p44 = scmp.ne.s32.totalorder %s33, %s34
      %p45 = scmp.eq.s32.totalorder %s25, 0
      %p46 = por %p44, %p45
      %p47 = scmp.ne.s32.totalorder %s33, %s34
      %p48 = scmp.eq.s32.totalorder %s26, 1
      %p49 = por %p47, %p48
      %p51 = scmp.ne.s32.totalorder %s34, %s50
      %p52 = scmp.eq.s32.totalorder %s26, 0
      %p53 = por %p51, %p52
      %s55 = sadd.s32 %s54, 1
      %p58 = scmp.eq.s32.totalorder %s20, 1
      %p59 = scmp.ne.s32.totalorder %s54, %s56
      %p60 = scmp.eq.s32.totalorder %s20, 0
      %p61 = por %p59, %p60
      %p62 = scmp.ne.s32.totalorder %s54, %s56
      %p63 = scmp.eq.s32.totalorder %s25, 1
      %p64 = por %p62, %p63
      %p65 = scmp.ne.s32.totalorder %s56, %s57
      %p66 = scmp.eq.s32.totalorder %s25, 0
      %p67 = por %p65, %p66
      %p68 = scmp.ne.s32.totalorder %s56, %s57
      %p69 = scmp.eq.s32.totalorder %s26, 1
      %p70 = por %p68, %p69
      %p72 = scmp.ne.s32.totalorder %s57, %s71
      %p73 = scmp.eq.s32.totalorder %s26, 0
      %p74 = por %p72, %p73
      %s76 = sadd.s32 %s75, 1
      %p79 = scmp.eq.s32.totalorder %s20, 1
      %p80 = scmp.ne.s32.totalorder %s75, %s77
      %p81 = scmp.eq.s32.totalorder %s20, 0
      %p82 = por %p80, %p81
      %p83 = scmp.ne.s32.totalorder %s75, %s77
      %p84 = scmp.eq.s32.totalorder %s25, 1
      %p85 = por %p83, %p84
      %p86 = scmp.ne.s32.totalorder %s77, %s78
      %p87 = scmp.eq.s32.totalorder %s25, 0
      %p88 = por %p86, %p87
      %p89 = scmp.ne.s32.totalorder %s77, %s78
      %p90 = scmp.eq.s32.totalorder %s26, 1
      %p91 = por %p89, %p90
      %p93 = scmp.ne.s32.totalorder %s78, %s92
      %p94 = scmp.eq.s32.totalorder %s26, 0
      %p95 = por %p93, %p94
      %s97 = sadd.s32 %s96, 1
      %p100 = scmp.eq.s32.totalorder %s20, 1
      %p101 = scmp.ne.s32.totalorder %s96, %s98
      %p102 = scmp.eq.s32.totalorder %s20, 0
      %p103 = por %p101, %p102
      %p104 = scmp.ne.s32.totalorder %s96, %s98
      %p105 = scmp.eq.s32.totalorder %s25, 1
      %p106 = por %p104, %p105
      %p107 = scmp.ne.s32.totalorder %s98, %s99
      %p108 = scmp.eq.s32.totalorder %s25, 0
      %p109 = por %p107, %p108
      %p110 = scmp.ne.s32.totalorder %s98, %s99
      %p111 = scmp.eq.s32.totalorder %s26, 1
      %p112 = por %p110, %p111
      %p114 = scmp.ne.s32.totalorder %s99, %s113
      %p115 = scmp.eq.s32.totalorder %s26, 0
      %p116 = por %p114, %p115
      %s118 = sadd.s32 %s117, 1
      %p121 = scmp.eq.s32.totalorder %s20, 1
      %p122 = scmp.ne.s32.totalorder %s117, %s119
      %p123 = scmp.eq.s32.totalorder %s20, 0
      %p124 = por %p122, %p123
      %p125 = scmp.ne.s32.totalorder %s117, %s119
      %p126 = scmp.eq.s32.totalorder %s25, 1
      %p127 = por %p125, %p126
      %p128 = scmp.ne.s32.totalorder %s119, %s120
      %p129 = scmp.eq.s32.totalorder %s25, 0
      %p130 = por %p128, %p129
      %p131 = scmp.ne.s32.totalorder %s119, %s120
      %p132 = scmp.eq.s32.totalorder %s26, 1
      %p133 = por %p131, %p132
      %p135 = scmp.ne.s32.totalorder %s120, %s134
      %p136 = scmp.eq.s32.totalorder %s26, 0
      %p137 = por %p135, %p136
      %s139 = sadd.s32 %s138, 1
      %p142 = scmp.eq.s32.totalorder %s20, 1
      %p143 = scmp.ne.s32.totalorder %s138, %s140
      %p144 = scmp.eq.s32.totalorder %s20, 0
      %p145 = por %p143, %p144
      %p146 = scmp.ne.s32.totalorder %s138, %s140
      %p147 = scmp.eq.s32.totalorder %s25, 1
      %p148 = por %p146, %p147
      %p149 = scmp.ne.s32.totalorder %s140, %s141
      %p150 = scmp.eq.s32.totalorder %s25, 0
      %p151 = por %p149, %p150
      %p152 = scmp.ne.s32.totalorder %s140, %s141
      %p153 = scmp.eq.s32.totalorder %s26, 1
      %p154 = por %p152, %p153
      %p156 = scmp.ne.s32.totalorder %s141, %s155
      %p157 = scmp.eq.s32.totalorder %s26, 0
      %p158 = por %p156, %p157
      %s160 = sadd.s32 %s159, 1
      %p163 = scmp.eq.s32.totalorder %s20, 1
      %p164 = scmp.ne.s32.totalorder %s159, %s161
      %p165 = scmp.eq.s32.totalorder %s20, 0
      %p166 = por %p164, %p165
      %p167 = scmp.ne.s32.totalorder %s159, %s161
      %p168 = scmp.eq.s32.totalorder %s25, 1
      %p169 = por %p167, %p168
      %p170 = scmp.ne.s32.totalorder %s161, %s162
      %p171 = scmp.eq.s32.totalorder %s25, 0
      %p172 = por %p170, %p171
      %p173 = scmp.ne.s32.totalorder %s161, %s162
      %p174 = scmp.eq.s32.totalorder %s26, 1
      %p175 = por %p173, %p174
      %p177 = scmp.ne.s32.totalorder %s162, %s176
      %p178 = scmp.eq.s32.totalorder %s26, 0
      %p179 = por %p177, %p178
      %s181 = sadd.s32 %s180, 1
      %p184 = scmp.eq.s32.totalorder %s20, 1
      %p185 = scmp.ne.s32.totalorder %s180, %s182
      %p186 = scmp.eq.s32.totalorder %s20, 0
      %p187 = por %p185, %p186
      %p188 = scmp.ne.s32.totalorder %s180, %s182
      %p189 = scmp.eq.s32.totalorder %s25, 1
      %p190 = por %p188, %p189
      %p191 = scmp.ne.s32.totalorder %s182, %s183
      %p192 = scmp.eq.s32.totalorder %s25, 0
      %p193 = por %p191, %p192
      %p194 = scmp.ne.s32.totalorder %s182, %s183
      %p195 = scmp.eq.s32.totalorder %s26, 1
      %p196 = por %p194, %p195
      %p198 = scmp.ne.s32.totalorder %s183, %s197
      %p199 = scmp.eq.s32.totalorder %s26, 0
      %p200 = por %p198, %p199
      %s202 = sadd.s32 %s201, 1
      %p205 = scmp.eq.s32.totalorder %s20, 1
      %p206 = scmp.ne.s32.totalorder %s201, %s203
      %p207 = scmp.eq.s32.totalorder %s20, 0
      %p208 = por %p206, %p207
      %p209 = scmp.ne.s32.totalorder %s201, %s203
      %p210 = scmp.eq.s32.totalorder %s25, 1
      %p211 = por %p209, %p210
      %p212 = scmp.ne.s32.totalorder %s203, %s204
      %p213 = scmp.eq.s32.totalorder %s25, 0
      %p214 = por %p212, %p213
      %p215 = scmp.ne.s32.totalorder %s203, %s204
      %p216 = scmp.eq.s32.totalorder %s26, 1
      %p217 = por %p215, %p216
      %p219 = scmp.ne.s32.totalorder %s204, %s218
      %p220 = scmp.eq.s32.totalorder %s26, 0
      %p221 = por %p219, %p220
      %s223 = sadd.s32 %s222, 1
      %p226 = scmp.eq.s32.totalorder %s20, 1
      %p227 = scmp.ne.s32.totalorder %s222, %s224
      %p228 = scmp.eq.s32.totalorder %s20, 0
      %p229 = por %p227, %p228
      %p230 = scmp.ne.s32.totalorder %s222, %s224
      %p231 = scmp.eq.s32.totalorder %s25, 1
      %p232 = por %p230, %p231
      %p233 = scmp.ne.s32.totalorder %s224, %s225
      %p234 = scmp.eq.s32.totalorder %s25, 0
      %p235 = por %p233, %p234
      %p236 = scmp.ne.s32.totalorder %s224, %s225
      %p237 = scmp.eq.s32.totalorder %s26, 1
      %p238 = por %p236, %p237
      %p240 = scmp.ne.s32.totalorder %s225, %s239
      %p241 = scmp.eq.s32.totalorder %s26, 0
      %p242 = por %p240, %p241
      %s244 = sadd.s32 %s243, 1
      %p247 = scmp.eq.s32.totalorder %s20, 1
      %p248 = scmp.ne.s32.totalorder %s243, %s245
      %p249 = scmp.eq.s32.totalorder %s20, 0
      %p250 = por %p248, %p249
      %p251 = scmp.ne.s32.totalorder %s243, %s245
      %p252 = scmp.eq.s32.totalorder %s25, 1
      %p253 = por %p251, %p252
      %p254 = scmp.ne.s32.totalorder %s245, %s246
      %p255 = scmp.eq.s32.totalorder %s25, 0
      %p256 = por %p254, %p255
      %p257 = scmp.ne.s32.totalorder %s245, %s246
      %p258 = scmp.eq.s32.totalorder %s26, 1
      %p259 = por %p257, %p258
      %p261 = scmp.ne.s32.totalorder %s246, %s260
      %p262 = scmp.eq.s32.totalorder %s26, 0
      %p263 = por %p261, %p262
      %s264 = ssub.s32 %s20, %s27
      %p265 = scmp.eq.s32.totalorder %s264, 0
      %s267 = sadd.s32 %s266, 1
      %s268 = scalar_select %p265, %s266, %s267
      %p271 = pneg %p265
      %p272 = scmp.eq.s32.totalorder %s20, 1
      %p273 = por %p271, %p272
      %p274 = scmp.ne.s32.totalorder %s266, %s269
      %p275 = scmp.eq.s32.totalorder %s20, 0
      %p276 = por %p274, %p275
      %p277 = scmp.ne.s32.totalorder %s266, %s269
      %p278 = scmp.eq.s32.totalorder %s25, 1
      %p279 = por %p277, %p278
      %p280 = scmp.ne.s32.totalorder %s269, %s270
      %p281 = scmp.eq.s32.totalorder %s25, 0
      %p282 = por %p280, %p281
      %p283 = scmp.ne.s32.totalorder %s269, %s270
      %p284 = scmp.eq.s32.totalorder %s26, 1
      %p285 = por %p283, %p284
      %p287 = scmp.ne.s32.totalorder %s270, %s286
      %p288 = scmp.eq.s32.totalorder %s26, 0
      %p289 = por %p287, %p288
      %p290 = scmp.le.s32.totalorder 1, %s20
      %p291 = scmp.lt.s32.totalorder %s20, 3
      %p292 = pnand %p290, %p291
      %p293 = pneg %p292
      // Predicated region
      $region9: #{hgstem_forward.1} parent=5 // pred_check
        _
      $region10: #{hgstem_forward.1} parent=5 // pred_check_branch
        %295 = sbr.rel (%p292) target = $region12
      $region11: #{hgstem_forward.1} parent=5 // pred_region
        %s296 = ssub.s32 %s20, 1
        // Predicated region
        $region13: #{hgstem_forward.1} parent=11 // pred_check
          %p297 = pneg %p67
        $region14: #{hgstem_forward.1} parent=11 // pred_check_branch
          %299 = sbr.rel (%p297) target = $region16
        $region15: #{hgstem_forward.1} parent=11 // pred_region
          _
        $region16: #{hgstem_forward.1} parent=11 // pred_fallthru
          _
        // Predicated region
        $region17: #{hgstem_forward.1} parent=11 // pred_check
          %p300 = pneg %p88
        $region18: #{hgstem_forward.1} parent=11 // pred_check_branch
          %302 = sbr.rel (%p300) target = $region20
        $region19: #{hgstem_forward.1} parent=11 // pred_region
          _
        $region20: #{hgstem_forward.1} parent=11 // pred_fallthru
          _
        // Predicated region
        $region21: #{hgstem_forward.1} parent=11 // pred_check
          %p303 = pneg %p109
        $region22: #{hgstem_forward.1} parent=11 // pred_check_branch
          %305 = sbr.rel (%p303) target = $region24
        $region23: #{hgstem_forward.1} parent=11 // pred_region
          _
        $region24: #{hgstem_forward.1} parent=11 // pred_fallthru
          _
        // Predicated region
        $region25: #{hgstem_forward.1} parent=11 // pred_check
          %p306 = pneg %p130
        $region26: #{hgstem_forward.1} parent=11 // pred_check_branch
          %308 = sbr.rel (%p306) target = $region28
        $region27: #{hgstem_forward.1} parent=11 // pred_region
          _
        $region28: #{hgstem_forward.1} parent=11 // pred_fallthru
          _
        // Predicated region
        $region29: #{hgstem_forward.1} parent=11 // pred_check
          %p309 = pneg %p151
        $region30: #{hgstem_forward.1} parent=11 // pred_check_branch
          %311 = sbr.rel (%p309) target = $region32
        $region31: #{hgstem_forward.1} parent=11 // pred_region
          _
        $region32: #{hgstem_forward.1} parent=11 // pred_fallthru
          _
        // Predicated region
        $region33: #{hgstem_forward.1} parent=11 // pred_check
          %p312 = pneg %p172
        $region34: #{hgstem_forward.1} parent=11 // pred_check_branch
          %314 = sbr.rel (%p312) target = $region36
        $region35: #{hgstem_forward.1} parent=11 // pred_region
          _
        $region36: #{hgstem_forward.1} parent=11 // pred_fallthru
          _
        // Predicated region
        $region37: #{hgstem_forward.1} parent=11 // pred_check
          %p315 = pneg %p193
        $region38: #{hgstem_forward.1} parent=11 // pred_check_branch
          %317 = sbr.rel (%p315) target = $region40
        $region39: #{hgstem_forward.1} parent=11 // pred_region
          _
        $region40: #{hgstem_forward.1} parent=11 // pred_fallthru
          _
        // Predicated region
        $region41: #{hgstem_forward.1} parent=11 // pred_check
          %p318 = pneg %p214
        $region42: #{hgstem_forward.1} parent=11 // pred_check_branch
          %320 = sbr.rel (%p318) target = $region44
        $region43: #{hgstem_forward.1} parent=11 // pred_region
          _
        $region44: #{hgstem_forward.1} parent=11 // pred_fallthru
          _
        // Predicated region
        $region45: #{hgstem_forward.1} parent=11 // pred_check
          %p321 = pneg %p235
        $region46: #{hgstem_forward.1} parent=11 // pred_check_branch
          %323 = sbr.rel (%p321) target = $region48
        $region47: #{hgstem_forward.1} parent=11 // pred_region
          _
        $region48: #{hgstem_forward.1} parent=11 // pred_fallthru
          _
        // Predicated region
        $region49: #{hgstem_forward.1} parent=11 // pred_check
          %p324 = pneg %p256
        $region50: #{hgstem_forward.1} parent=11 // pred_check_branch
          %326 = sbr.rel (%p324) target = $region52
        $region51: #{hgstem_forward.1} parent=11 // pred_region
          _
        $region52: #{hgstem_forward.1} parent=11 // pred_fallthru
          _
      $region12: #{hgstem_forward.1} parent=5 // pred_fallthru
        _
      %p327 = scmp.lt.s32.totalorder %s20, 2
      // Predicated region
      $region53: #{hgstem_forward.1} parent=5 // pred_check
        %p328 = pneg %p327
      $region54: #{hgstem_forward.1} parent=5 // pred_check_branch
        %330 = sbr.rel (%p328) target = $region56
      $region55: #{hgstem_forward.1} parent=5 // pred_region
        // Predicated region
        $region57: #{hgstem_forward.1} parent=55 // pred_check
          %p331 = pneg %p40
        $region58: #{hgstem_forward.1} parent=55 // pred_check_branch
          %333 = sbr.rel (%p331) target = $region60
        $region59: #{hgstem_forward.1} parent=55 // pred_region
          %p334 = scmp.lt.s32.totalorder %s20, 1
          %s335 = scalar_select %p334, %s20, 1
          %s336 = smul.addr %s335, 18
          %s337 = smul.addr %s336, 8
          %s338 = scalar_lea.vmem %s0, %s337
        $region60: #{hgstem_forward.1} parent=55 // pred_fallthru
          _
      $region56: #{hgstem_forward.1} parent=5 // pred_fallthru
        _
      %p339 = scmp.le.s32.totalorder 1, %s20
      %p340 = scmp.lt.s32.totalorder %s20, 3
      %p341 = pnand %p339, %p340
      %p342 = pneg %p341
      // Predicated region
      $region61: #{hgstem_forward.1} parent=5 // pred_check
        _
      $region62: #{hgstem_forward.1} parent=5 // pred_check_branch
        %344 = sbr.rel (%p341) target = $region64
      $region63: #{hgstem_forward.1} parent=5 // pred_region
        %s345 = ssub.s32 %s20, 1
        %p346 = scmp.lt.s32.totalorder %s25, 1
        %s347 = scalar_select %p346, %s25, 1
        %s348 = smul.addr %s347, 18
        %s349 = smul.addr %s348, 8
        %s350 = scalar_lea.vmem %s0, %s349
        %p351 = pneg %p46
        %p352 = pneg %p43
        %p353 = pneg %p67
        %p354 = pneg %p64
        %p355 = pneg %p88
        %p356 = pneg %p85
        %p357 = pneg %p109
        %p358 = pneg %p106
        %p359 = pneg %p130
        %p360 = pneg %p127
        %p361 = pneg %p151
        %p362 = pneg %p148
        %p363 = pneg %p172
        %p364 = pneg %p169
        %p365 = pneg %p193
        %p366 = pneg %p190
        %p367 = pneg %p214
        %p368 = pneg %p211
        %p369 = pneg %p235
        %p370 = pneg %p232
        %p371 = pneg %p256
        %p372 = pneg %p253
        %p373 = pneg %p282
        %p374 = pneg %p279
        %s375 = sand.u32 %s269, 1
        %s376 = scalar_lea.sflag [#allocation10], %s375
        %s377 = sand.u32 %s269, 1
        %s378 = smul.addr %s377, 16
        %s379 = scalar_lea.vmem [#allocation9], %s378
        %p380 = scmp.lt.s32.totalorder %s25, 1
        %s381 = scalar_select %p380, %s25, 1
        %s382 = smul.addr %s381, 18
        %s383 = smul.addr %s382, 8
        %s384 = scalar_lea.vmem %s0, %s383
        %v385 = vld [vmem:[%s384] sm:$0xff]
        %v386 = vld [vmem:[%s384 + $0x10] sm:$0xff]
        %v387 = vld [vmem:[%s384 + $0x20] sm:$0xff]
        %v388 = vld [vmem:[%s384 + $0x30] sm:$0xff]
        %v389 = vld [vmem:[%s384 + $0x40] sm:$0xff]
        %v390 = vld [vmem:[%s384 + $0x50] sm:$0xff]
        %v391 = vld [vmem:[%s384 + $0x60] sm:$0xff]
        %v392 = vld [vmem:[%s384 + $0x70] sm:$0xff]
        %vm393 = vcmask 130048
        %394 = vst.msk [vmem:[#allocation5] sm:$0xff] %vm393, %v385
        %395 = vst.msk [vmem:[#allocation5 + $0x8] sm:$0xff] %vm393, %v386
        %396 = vst.msk [vmem:[#allocation5 + $0x10] sm:$0xff] %vm393, %v387
        %397 = vst.msk [vmem:[#allocation5 + $0x18] sm:$0xff] %vm393, %v388
        %398 = vst.msk [vmem:[#allocation5 + $0x20] sm:$0xff] %vm393, %v389
        %399 = vst.msk [vmem:[#allocation5 + $0x28] sm:$0xff] %vm393, %v390
        %400 = vst.msk [vmem:[#allocation5 + $0x30] sm:$0xff] %vm393, %v391
        %401 = vst.msk [vmem:[#allocation5 + $0x38] sm:$0xff] %vm393, %v392
        %v402 = vld [vmem:[%s384 + $0x1] sm:$0xff]
        %v403 = vld [vmem:[%s384 + $0x11] sm:$0xff]
        %v404 = vld [vmem:[%s384 + $0x21] sm:$0xff]
        %v405 = vld [vmem:[%s384 + $0x31] sm:$0xff]
        %v406 = vld [vmem:[%s384 + $0x41] sm:$0xff]
        %v407 = vld [vmem:[%s384 + $0x51] sm:$0xff]
        %v408 = vld [vmem:[%s384 + $0x61] sm:$0xff]
        %v409 = vld [vmem:[%s384 + $0x71] sm:$0xff]
        %418 = vrot.lane.b32.xlu0 %v402, 16
        %v419 = vpop.permute.xlu0 %418
        %420 = vrot.lane.b32.xlu0 %v403, 16
        %v421 = vpop.permute.xlu0 %420
        %422 = vrot.lane.b32.xlu0 %v404, 16
        %v423 = vpop.permute.xlu0 %422
        %424 = vrot.lane.b32.xlu0 %v405, 16
        %v425 = vpop.permute.xlu0 %424
        %426 = vrot.lane.b32.xlu0 %v406, 16
        %v427 = vpop.permute.xlu0 %426
        %428 = vrot.lane.b32.xlu0 %v407, 16
        %v429 = vpop.permute.xlu0 %428
        %430 = vrot.lane.b32.xlu0 %v408, 16
        %v431 = vpop.permute.xlu0 %430
        %432 = vrot.lane.b32.xlu0 %v409, 16
        %v433 = vpop.permute.xlu0 %432
        %vm442 = vcmask 261248
        %443 = vst.msk [vmem:[#allocation5] sm:$0xff] %vm442, %v419
        %444 = vst.msk [vmem:[#allocation5 + $0x8] sm:$0xff] %vm442, %v421
        %445 = vst.msk [vmem:[#allocation5 + $0x10] sm:$0xff] %vm442, %v423
        %446 = vst.msk [vmem:[#allocation5 + $0x18] sm:$0xff] %vm442, %v425
        %447 = vst.msk [vmem:[#allocation5 + $0x20] sm:$0xff] %vm442, %v427
        %448 = vst.msk [vmem:[#allocation5 + $0x28] sm:$0xff] %vm442, %v429
        %449 = vst.msk [vmem:[#allocation5 + $0x30] sm:$0xff] %vm442, %v431
        %450 = vst.msk [vmem:[#allocation5 + $0x38] sm:$0xff] %vm442, %v433
        %s451 = scalar_lea.vmem %s384, 16
        %v452 = vld [vmem:[%s451] sm:$0xff]
        %v453 = vld [vmem:[%s451 + $0x10] sm:$0xff]
        %v454 = vld [vmem:[%s451 + $0x20] sm:$0xff]
        %v455 = vld [vmem:[%s451 + $0x30] sm:$0xff]
        %v456 = vld [vmem:[%s451 + $0x40] sm:$0xff]
        %v457 = vld [vmem:[%s451 + $0x50] sm:$0xff]
        %v458 = vld [vmem:[%s451 + $0x60] sm:$0xff]
        %v459 = vld [vmem:[%s451 + $0x70] sm:$0xff]
        %468 = vrot.lane.b32.xlu0 %v452, 32
        %v469 = vpop.permute.xlu0 %468
        %470 = vrot.lane.b32.xlu0 %v453, 32
        %v471 = vpop.permute.xlu0 %470
        %472 = vrot.lane.b32.xlu0 %v454, 32
        %v473 = vpop.permute.xlu0 %472
        %474 = vrot.lane.b32.xlu0 %v455, 32
        %v475 = vpop.permute.xlu0 %474
        %476 = vrot.lane.b32.xlu0 %v456, 32
        %v477 = vpop.permute.xlu0 %476
        %478 = vrot.lane.b32.xlu0 %v457, 32
        %v479 = vpop.permute.xlu0 %478
        %480 = vrot.lane.b32.xlu0 %v458, 32
        %v481 = vpop.permute.xlu0 %480
        %482 = vrot.lane.b32.xlu0 %v459, 32
        %v483 = vpop.permute.xlu0 %482
        %vm492 = vcmask 392448
        %493 = vst.msk [vmem:[#allocation5] sm:$0xff] %vm492, %v469
        %494 = vst.msk [vmem:[#allocation5 + $0x8] sm:$0xff] %vm492, %v471
        %495 = vst.msk [vmem:[#allocation5 + $0x10] sm:$0xff] %vm492, %v473
        %496 = vst.msk [vmem:[#allocation5 + $0x18] sm:$0xff] %vm492, %v475
        %497 = vst.msk [vmem:[#allocation5 + $0x20] sm:$0xff] %vm492, %v477
        %498 = vst.msk [vmem:[#allocation5 + $0x28] sm:$0xff] %vm492, %v479
        %499 = vst.msk [vmem:[#allocation5 + $0x30] sm:$0xff] %vm492, %v481
        %500 = vst.msk [vmem:[#allocation5 + $0x38] sm:$0xff] %vm492, %v483
        %v501 = vld [vmem:[%s451 + $0x1] sm:$0xff]
        %v502 = vld [vmem:[%s451 + $0x11] sm:$0xff]
        %v503 = vld [vmem:[%s451 + $0x21] sm:$0xff]
        %v504 = vld [vmem:[%s451 + $0x31] sm:$0xff]
        %v505 = vld [vmem:[%s451 + $0x41] sm:$0xff]
        %v506 = vld [vmem:[%s451 + $0x51] sm:$0xff]
        %v507 = vld [vmem:[%s451 + $0x61] sm:$0xff]
        %v508 = vld [vmem:[%s451 + $0x71] sm:$0xff]
        %517 = vrot.lane.b32.xlu0 %v501, 48
        %v518 = vpop.permute.xlu0 %517
        %519 = vrot.lane.b32.xlu0 %v502, 48
        %v520 = vpop.permute.xlu0 %519
        %521 = vrot.lane.b32.xlu0 %v503, 48
        %v522 = vpop.permute.xlu0 %521
        %523 = vrot.lane.b32.xlu0 %v504, 48
        %v524 = vpop.permute.xlu0 %523
        %525 = vrot.lane.b32.xlu0 %v505, 48
        %v526 = vpop.permute.xlu0 %525
        %527 = vrot.lane.b32.xlu0 %v506, 48
        %v528 = vpop.permute.xlu0 %527
        %529 = vrot.lane.b32.xlu0 %v507, 48
        %v530 = vpop.permute.xlu0 %529
        %531 = vrot.lane.b32.xlu0 %v508, 48
        %v532 = vpop.permute.xlu0 %531
        %vm541 = vcmask 523648
        %542 = vst.msk [vmem:[#allocation5] sm:$0xff] %vm541, %v518
        %543 = vst.msk [vmem:[#allocation5 + $0x8] sm:$0xff] %vm541, %v520
        %544 = vst.msk [vmem:[#allocation5 + $0x10] sm:$0xff] %vm541, %v522
        %545 = vst.msk [vmem:[#allocation5 + $0x18] sm:$0xff] %vm541, %v524
        %546 = vst.msk [vmem:[#allocation5 + $0x20] sm:$0xff] %vm541, %v526
        %547 = vst.msk [vmem:[#allocation5 + $0x28] sm:$0xff] %vm541, %v528
        %548 = vst.msk [vmem:[#allocation5 + $0x30] sm:$0xff] %vm541, %v530
        %549 = vst.msk [vmem:[#allocation5 + $0x38] sm:$0xff] %vm541, %v532
        %v550 = vld [vmem:[#allocation5] sm:$0xff]
        %v551 = vld [vmem:[#allocation5 + $0x8] sm:$0xff]
        %v552 = vld [vmem:[#allocation5 + $0x10] sm:$0xff]
        %v553 = vld [vmem:[#allocation5 + $0x18] sm:$0xff]
        %v554 = vld [vmem:[#allocation5 + $0x20] sm:$0xff]
        %v555 = vld [vmem:[#allocation5 + $0x28] sm:$0xff]
        %v556 = vld [vmem:[#allocation5 + $0x30] sm:$0xff]
        %v557 = vld [vmem:[#allocation5 + $0x38] sm:$0xff]
        %v558 = vld [vmem:[%s1] sm:$0xff]
        %v559 = vld [vmem:[%s1 + $0x8] sm:$0xff]
        %v560 = vld [vmem:[%s1 + $0x10] sm:$0xff]
        %v561 = vld [vmem:[%s1 + $0x18] sm:$0xff]
        %v562 = vld [vmem:[%s1 + $0x20] sm:$0xff]
        %v563 = vld [vmem:[%s1 + $0x28] sm:$0xff]
        %v564 = vld [vmem:[%s1 + $0x30] sm:$0xff]
        %v565 = vld [vmem:[%s1 + $0x38] sm:$0xff]
        %v566 = vld [vmem:[%s2] sm:$0x1]
        %v568 = vlaneseq
        %v569 = vshrl.u32 %v568, 7
        %v570 = vsub.s32 0, %v569
        %v571 = vrot.slane %v566, %v570
        %vm573 = vcmask 523264
        %v575 = vsel %vm573, %v550, 0
        %v578 = vsel %vm573, %v551, 0
        %v581 = vsel %vm573, %v552, 0
        %v584 = vsel %vm573, %v553, 0
        %v587 = vsel %vm573, %v554, 0
        %v590 = vsel %vm573, %v555, 0
        %v593 = vsel %vm573, %v556, 0
        %v596 = vsel %vm573, %v557, 0
        %598 = vmatprep.subr.mxu0 0.0
        %599 = vmatpush1.msra.mxu0 0.0
        %600 = vmatprep.subr.mxu0 0.0
        %601 = vmatpush1.msra.mxu0 0.0
        %602 = vmatprep.subr.mxu0 0.0
        %603 = vmatpush1.msra.mxu0 0.0
        %604 = vmatprep.subr.mxu0 0.0
        %605 = vmatpush1.msra.mxu0 0.0
        %606 = vmatprep.subr.mxu0 0.0
        %607 = vmatpush1.msra.mxu0 0.0
        %608 = vmatprep.subr.mxu0 0.0
        %609 = vmatpush1.msra.mxu0 0.0
        %610 = vmatprep.subr.mxu0 0.0
        %611 = vmatpush1.msra.mxu0 0.0
        %612 = vmatprep.subr.mxu0 0.0
        %613 = vmatpush1.msra.mxu0 0.0
        %614 = vmatprep.subr.mxu0 0.0
        %615 = vmatpush1.msra.mxu0 %v565
        %616 = vmatprep.subr.mxu0 0.0
        %617 = vmatpush1.msra.mxu0 %v564
        %618 = vmatprep.subr.mxu0 0.0
        %619 = vmatpush1.msra.mxu0 %v563
        %620 = vmatprep.subr.mxu0 0.0
        %621 = vmatpush1.msra.mxu0 %v562
        %622 = vmatprep.subr.mxu0 0.0
        %623 = vmatpush1.msra.mxu0 %v561
        %624 = vmatprep.subr.mxu0 0.0
        %625 = vmatpush1.msra.mxu0 %v560
        %626 = vmatprep.subr.mxu0 0.0
        %627 = vmatpush1.msra.mxu0 %v559
        %628 = vmatprep.subr.mxu0 0.0
        %629 = vmatpush1.msra.mxu0 %v558
        %630 = vmatprep.subr.mxu0 0.0
        %631 = vmatpush2.msra.mxu0 0.0
        %632 = vmatprep.subr.mxu0 0.0
        %633 = vmatpush2.msra.mxu0 0.0
        %634 = vmatprep.subr.mxu0 0.0
        %635 = vmatpush2.msra.mxu0 0.0
        %636 = vmatprep.subr.mxu0 0.0
        %637 = vmatpush2.msra.mxu0 0.0
        %638 = vmatprep.subr.mxu0 0.0
        %639 = vmatpush2.msra.mxu0 0.0
        %640 = vmatprep.subr.mxu0 0.0
        %641 = vmatpush2.msra.mxu0 0.0
        %642 = vmatprep.subr.mxu0 0.0
        %643 = vmatpush2.msra.mxu0 0.0
        %644 = vmatprep.subr.mxu0 0.0
        %645 = vmatpush2.msra.mxu0 0.0
        %646 = vmatprep.subr.mxu0 0.0
        %647 = vmatpush2.msra.mxu0 0.0
        %648 = vmatprep.subr.mxu0 0.0
        %649 = vmatpush2.msra.mxu0 0.0
        %650 = vmatprep.subr.mxu0 0.0
        %651 = vmatpush2.msra.mxu0 0.0
        %652 = vmatprep.subr.mxu0 0.0
        %653 = vmatpush2.msra.mxu0 0.0
        %654 = vmatprep.subr.mxu0 0.0
        %655 = vmatpush2.msra.mxu0 0.0
        %656 = vmatprep.subr.mxu0 0.0
        %657 = vmatpush2.msra.mxu0 0.0
        %658 = vmatprep.subr.mxu0 0.0
        %659 = vmatpush2.msra.mxu0 0.0
        %660 = vmatprep.subr.mxu0 0.0
        %661 = vmatpush2.msra.mxu0 0.0
        %662 = vmatprep.mubr.f32.mxu0 0.0
        %663 = vmatmul.mubr.f32.gmra.mxu0 %v575
        %v664 = vpop.f32.mrf.mxu0
        %v665 = vadd.f32 %v571, %v664
        %v666 = vpop.f32.mrf.mxu0
        %667 = vmatprep.mubr.f32.mxu0 0.0
        %668 = vmatmul.mubr.f32.gmra.mxu0 %v578
        %v669 = vpop.f32.mrf.mxu0
        %v670 = vadd.f32 %v571, %v669
        %v671 = vpop.f32.mrf.mxu0
        %672 = vmatprep.mubr.f32.mxu0 0.0
        %673 = vmatmul.mubr.f32.gmra.mxu0 %v581
        %v674 = vpop.f32.mrf.mxu0
        %v675 = vadd.f32 %v571, %v674
        %v676 = vpop.f32.mrf.mxu0
        %677 = vmatprep.mubr.f32.mxu0 0.0
        %678 = vmatmul.mubr.f32.gmra.mxu0 %v584
        %v679 = vpop.f32.mrf.mxu0
        %v680 = vadd.f32 %v571, %v679
        %v681 = vpop.f32.mrf.mxu0
        %682 = vmatprep.mubr.f32.mxu0 0.0
        %683 = vmatmul.mubr.f32.gmra.mxu0 %v587
        %v684 = vpop.f32.mrf.mxu0
        %v685 = vadd.f32 %v571, %v684
        %v686 = vpop.f32.mrf.mxu0
        %687 = vmatprep.mubr.f32.mxu0 0.0
        %688 = vmatmul.mubr.f32.gmra.mxu0 %v590
        %v689 = vpop.f32.mrf.mxu0
        %v690 = vadd.f32 %v571, %v689
        %v691 = vpop.f32.mrf.mxu0
        %692 = vmatprep.mubr.f32.mxu0 0.0
        %693 = vmatmul.mubr.f32.gmra.mxu0 %v593
        %v694 = vpop.f32.mrf.mxu0
        %v695 = vadd.f32 %v571, %v694
        %v696 = vpop.f32.mrf.mxu0
        %697 = vmatprep.mubr.f32.mxu0 0.0
        %698 = vmatmul.mubr.f32.gmra.mxu0 %v596
        %v699 = vpop.f32.mrf.mxu0
        %v700 = vadd.f32 %v571, %v699
        %v701 = vpop.f32.mrf.mxu0
        %702 = vdwg.mxu0
        %v703 = vmax.f32 %v665, 0.0
        %v704 = vmax.f32 %v670, 0.0
        %v705 = vmax.f32 %v675, 0.0
        %v706 = vmax.f32 %v680, 0.0
        %v707 = vmax.f32 %v685, 0.0
        %v708 = vmax.f32 %v690, 0.0
        %v709 = vmax.f32 %v695, 0.0
        %v710 = vmax.f32 %v700, 0.0
        %vm711 = vcmask 64512
        %712 = vst.msk [vmem:[#allocation2] sm:$0xff] %vm711, 0.0
        %vm713 = vcmask 57344
        %714 = vst.msk [vmem:[#allocation2 + $0x8] sm:$0x1] %vm713, 0.0
        %715 = vst.msk [vmem:[#allocation2 + $0x10] sm:$0xff] %vm711, 0.0
        %716 = vst.msk [vmem:[#allocation2 + $0x18] sm:$0x1] %vm713, 0.0
        %717 = vst.msk [vmem:[#allocation2 + $0x20] sm:$0xff] %vm711, 0.0
        %718 = vst.msk [vmem:[#allocation2 + $0x28] sm:$0x1] %vm713, 0.0
        %719 = vst.msk [vmem:[#allocation2 + $0x30] sm:$0xff] %vm711, 0.0
        %720 = vst.msk [vmem:[#allocation2 + $0x38] sm:$0x1] %vm713, 0.0
        %721 = vst.msk [vmem:[#allocation2 + $0x40] sm:$0xff] %vm711, 0.0
        %722 = vst.msk [vmem:[#allocation2 + $0x48] sm:$0x1] %vm713, 0.0
        %723 = vst.msk [vmem:[#allocation2 + $0x50] sm:$0xff] %vm711, 0.0
        %724 = vst.msk [vmem:[#allocation2 + $0x58] sm:$0x1] %vm713, 0.0
        %725 = vst.msk [vmem:[#allocation2 + $0x60] sm:$0xff] %vm711, 0.0
        %726 = vst.msk [vmem:[#allocation2 + $0x68] sm:$0x1] %vm713, 0.0
        %727 = vst.msk [vmem:[#allocation2 + $0x70] sm:$0xff] %vm711, 0.0
        %728 = vst.msk [vmem:[#allocation2 + $0x78] sm:$0x1] %vm713, 0.0
        %729 = vst.msk [vmem:[#allocation2 + $0x80] sm:$0xff] %vm711, 0.0
        %730 = vst.msk [vmem:[#allocation2 + $0x88] sm:$0x1] %vm713, 0.0
        %731 = vst.msk [vmem:[#allocation2] sm:$0xff] %vm711, %v703
        %732 = vst.msk [vmem:[#allocation2 + $0x10] sm:$0xff] %vm711, %v704
        %733 = vst.msk [vmem:[#allocation2 + $0x20] sm:$0xff] %vm711, %v705
        %734 = vst.msk [vmem:[#allocation2 + $0x30] sm:$0xff] %vm711, %v706
        %735 = vst.msk [vmem:[#allocation2 + $0x40] sm:$0xff] %vm711, %v707
        %736 = vst.msk [vmem:[#allocation2 + $0x50] sm:$0xff] %vm711, %v708
        %737 = vst.msk [vmem:[#allocation2 + $0x60] sm:$0xff] %vm711, %v709
        %738 = vst.msk [vmem:[#allocation2 + $0x70] sm:$0xff] %vm711, %v710
        %v739 = vld [vmem:[#allocation2] sm:$0xff]
        %v740 = vld [vmem:[#allocation2 + $0x10] sm:$0xff]
        %v741 = vld [vmem:[#allocation2 + $0x20] sm:$0xff]
        %v742 = vld [vmem:[#allocation2 + $0x30] sm:$0xff]
        %v743 = vld [vmem:[#allocation2 + $0x40] sm:$0xff]
        %v744 = vld [vmem:[#allocation2 + $0x50] sm:$0xff]
        %v745 = vld [vmem:[#allocation2 + $0x60] sm:$0xff]
        %v746 = vld [vmem:[#allocation2 + $0x70] sm:$0xff]
        %747 = vst.msk [vmem:[#allocation6] sm:$0xff] %vm711, %v739
        %748 = vst.msk [vmem:[#allocation6 + $0x8] sm:$0xff] %vm711, %v740
        %749 = vst.msk [vmem:[#allocation6 + $0x10] sm:$0xff] %vm711, %v741
        %750 = vst.msk [vmem:[#allocation6 + $0x18] sm:$0xff] %vm711, %v742
        %751 = vst.msk [vmem:[#allocation6 + $0x20] sm:$0xff] %vm711, %v743
        %752 = vst.msk [vmem:[#allocation6 + $0x28] sm:$0xff] %vm711, %v744
        %753 = vst.msk [vmem:[#allocation6 + $0x30] sm:$0xff] %vm711, %v745
        %754 = vst.msk [vmem:[#allocation6 + $0x38] sm:$0xff] %vm711, %v746
        %v755 = vld [vmem:[#allocation2 + $0x1] sm:$0xff]
        %v756 = vld [vmem:[#allocation2 + $0x11] sm:$0xff]
        %v757 = vld [vmem:[#allocation2 + $0x21] sm:$0xff]
        %v758 = vld [vmem:[#allocation2 + $0x31] sm:$0xff]
        %v759 = vld [vmem:[#allocation2 + $0x41] sm:$0xff]
        %v760 = vld [vmem:[#allocation2 + $0x51] sm:$0xff]
        %v761 = vld [vmem:[#allocation2 + $0x61] sm:$0xff]
        %v762 = vld [vmem:[#allocation2 + $0x71] sm:$0xff]
        %771 = vrot.lane.b32.xlu0 %v755, 8
        %v772 = vpop.permute.xlu0 %771
        %773 = vrot.lane.b32.xlu0 %v756, 8
        %v774 = vpop.permute.xlu0 %773
        %775 = vrot.lane.b32.xlu0 %v757, 8
        %v776 = vpop.permute.xlu0 %775
        %777 = vrot.lane.b32.xlu0 %v758, 8
        %v778 = vpop.permute.xlu0 %777
        %779 = vrot.lane.b32.xlu0 %v759, 8
        %v780 = vpop.permute.xlu0 %779
        %781 = vrot.lane.b32.xlu0 %v760, 8
        %v782 = vpop.permute.xlu0 %781
        %783 = vrot.lane.b32.xlu0 %v761, 8
        %v784 = vpop.permute.xlu0 %783
        %785 = vrot.lane.b32.xlu0 %v762, 8
        %v786 = vpop.permute.xlu0 %785
        %vm795 = vcmask 130112
        %796 = vst.msk [vmem:[#allocation6] sm:$0xff] %vm795, %v772
        %797 = vst.msk [vmem:[#allocation6 + $0x8] sm:$0xff] %vm795, %v774
        %798 = vst.msk [vmem:[#allocation6 + $0x10] sm:$0xff] %vm795, %v776
        %799 = vst.msk [vmem:[#allocation6 + $0x18] sm:$0xff] %vm795, %v778
        %800 = vst.msk [vmem:[#allocation6 + $0x20] sm:$0xff] %vm795, %v780
        %801 = vst.msk [vmem:[#allocation6 + $0x28] sm:$0xff] %vm795, %v782
        %802 = vst.msk [vmem:[#allocation6 + $0x30] sm:$0xff] %vm795, %v784
        %803 = vst.msk [vmem:[#allocation6 + $0x38] sm:$0xff] %vm795, %v786
        %s804 = scalar_lea.vmem [#allocation2], 16
        %v805 = vld [vmem:[%s804] sm:$0xff]
        %v806 = vld [vmem:[%s804 + $0x10] sm:$0xff]
        %v807 = vld [vmem:[%s804 + $0x20] sm:$0xff]
        %v808 = vld [vmem:[%s804 + $0x30] sm:$0xff]
        %v809 = vld [vmem:[%s804 + $0x40] sm:$0xff]
        %v810 = vld [vmem:[%s804 + $0x50] sm:$0xff]
        %v811 = vld [vmem:[%s804 + $0x60] sm:$0xff]
        %v812 = vld [vmem:[%s804 + $0x70] sm:$0xff]
        %821 = vrot.lane.b32.xlu0 %v805, 16
        %v822 = vpop.permute.xlu0 %821
        %823 = vrot.lane.b32.xlu0 %v806, 16
        %v824 = vpop.permute.xlu0 %823
        %825 = vrot.lane.b32.xlu0 %v807, 16
        %v826 = vpop.permute.xlu0 %825
        %827 = vrot.lane.b32.xlu0 %v808, 16
        %v828 = vpop.permute.xlu0 %827
        %829 = vrot.lane.b32.xlu0 %v809, 16
        %v830 = vpop.permute.xlu0 %829
        %831 = vrot.lane.b32.xlu0 %v810, 16
        %v832 = vpop.permute.xlu0 %831
        %833 = vrot.lane.b32.xlu0 %v811, 16
        %v834 = vpop.permute.xlu0 %833
        %835 = vrot.lane.b32.xlu0 %v812, 16
        %v836 = vpop.permute.xlu0 %835
        %vm845 = vcmask 195712
        %846 = vst.msk [vmem:[#allocation6] sm:$0xff] %vm845, %v822
        %847 = vst.msk [vmem:[#allocation6 + $0x8] sm:$0xff] %vm845, %v824
        %848 = vst.msk [vmem:[#allocation6 + $0x10] sm:$0xff] %vm845, %v826
        %849 = vst.msk [vmem:[#allocation6 + $0x18] sm:$0xff] %vm845, %v828
        %850 = vst.msk [vmem:[#allocation6 + $0x20] sm:$0xff] %vm845, %v830
        %851 = vst.msk [vmem:[#allocation6 + $0x28] sm:$0xff] %vm845, %v832
        %852 = vst.msk [vmem:[#allocation6 + $0x30] sm:$0xff] %vm845, %v834
        %853 = vst.msk [vmem:[#allocation6 + $0x38] sm:$0xff] %vm845, %v836
        %v854 = vld [vmem:[%s804 + $0x1] sm:$0xff]
        %v855 = vld [vmem:[%s804 + $0x11] sm:$0xff]
        %v856 = vld [vmem:[%s804 + $0x21] sm:$0xff]
        %v857 = vld [vmem:[%s804 + $0x31] sm:$0xff]
        %v858 = vld [vmem:[%s804 + $0x41] sm:$0xff]
        %v859 = vld [vmem:[%s804 + $0x51] sm:$0xff]
        %v860 = vld [vmem:[%s804 + $0x61] sm:$0xff]
        %v861 = vld [vmem:[%s804 + $0x71] sm:$0xff]
        %870 = vrot.lane.b32.xlu0 %v854, 24
        %v871 = vpop.permute.xlu0 %870
        %872 = vrot.lane.b32.xlu0 %v855, 24
        %v873 = vpop.permute.xlu0 %872
        %874 = vrot.lane.b32.xlu0 %v856, 24
        %v875 = vpop.permute.xlu0 %874
        %876 = vrot.lane.b32.xlu0 %v857, 24
        %v877 = vpop.permute.xlu0 %876
        %878 = vrot.lane.b32.xlu0 %v858, 24
        %v879 = vpop.permute.xlu0 %878
        %880 = vrot.lane.b32.xlu0 %v859, 24
        %v881 = vpop.permute.xlu0 %880
        %882 = vrot.lane.b32.xlu0 %v860, 24
        %v883 = vpop.permute.xlu0 %882
        %884 = vrot.lane.b32.xlu0 %v861, 24
        %v885 = vpop.permute.xlu0 %884
        %vm894 = vcmask 261312
        %895 = vst.msk [vmem:[#allocation6] sm:$0xff] %vm894, %v871
        %896 = vst.msk [vmem:[#allocation6 + $0x8] sm:$0xff] %vm894, %v873
        %897 = vst.msk [vmem:[#allocation6 + $0x10] sm:$0xff] %vm894, %v875
        %898 = vst.msk [vmem:[#allocation6 + $0x18] sm:$0xff] %vm894, %v877
        %899 = vst.msk [vmem:[#allocation6 + $0x20] sm:$0xff] %vm894, %v879
        %900 = vst.msk [vmem:[#allocation6 + $0x28] sm:$0xff] %vm894, %v881
        %901 = vst.msk [vmem:[#allocation6 + $0x30] sm:$0xff] %vm894, %v883
        %902 = vst.msk [vmem:[#allocation6 + $0x38] sm:$0xff] %vm894, %v885
        %v903 = vld [vmem:[#allocation6] sm:$0xff]
        %v904 = vld [vmem:[#allocation6 + $0x8] sm:$0xff]
        %v905 = vld [vmem:[#allocation6 + $0x10] sm:$0xff]
        %v906 = vld [vmem:[#allocation6 + $0x18] sm:$0xff]
        %v907 = vld [vmem:[#allocation6 + $0x20] sm:$0xff]
        %v908 = vld [vmem:[#allocation6 + $0x28] sm:$0xff]
        %v909 = vld [vmem:[#allocation6 + $0x30] sm:$0xff]
        %v910 = vld [vmem:[#allocation6 + $0x38] sm:$0xff]
        %v911 = vld [vmem:[%s3] sm:$0xff]
        %v912 = vld [vmem:[%s3 + $0x8] sm:$0xff]
        %v913 = vld [vmem:[%s3 + $0x10] sm:$0xff]
        %v914 = vld [vmem:[%s3 + $0x18] sm:$0xff]
        %v915 = vld [vmem:[%s4] sm:$0x1]
        %v917 = vlaneseq
        %v918 = vshrl.u32 %v917, 7
        %v919 = vsub.s32 0, %v918
        %v920 = vrot.slane %v915, %v919
        %vm922 = vcmask 261120
        %v924 = vsel %vm922, %v903, 0
        %v927 = vsel %vm922, %v904, 0
        %v930 = vsel %vm922, %v905, 0
        %v933 = vsel %vm922, %v906, 0
        %v936 = vsel %vm922, %v907, 0
        %v939 = vsel %vm922, %v908, 0
        %v942 = vsel %vm922, %v909, 0
        %v945 = vsel %vm922, %v910, 0
        %947 = vmatprep.subr.mxu0 0.0
        %948 = vmatpush1.msra.mxu0 0.0
        %949 = vmatprep.subr.mxu0 0.0
        %950 = vmatpush1.msra.mxu0 0.0
        %951 = vmatprep.subr.mxu0 0.0
        %952 = vmatpush1.msra.mxu0 0.0
        %953 = vmatprep.subr.mxu0 0.0
        %954 = vmatpush1.msra.mxu0 0.0
        %955 = vmatprep.subr.mxu0 0.0
        %956 = vmatpush1.msra.mxu0 0.0
        %957 = vmatprep.subr.mxu0 0.0
        %958 = vmatpush1.msra.mxu0 0.0
        %959 = vmatprep.subr.mxu0 0.0
        %960 = vmatpush1.msra.mxu0 0.0
        %961 = vmatprep.subr.mxu0 0.0
        %962 = vmatpush1.msra.mxu0 0.0
        %963 = vmatprep.subr.mxu0 0.0
        %964 = vmatpush1.msra.mxu0 0.0
        %965 = vmatprep.subr.mxu0 0.0
        %966 = vmatpush1.msra.mxu0 0.0
        %967 = vmatprep.subr.mxu0 0.0
        %968 = vmatpush1.msra.mxu0 0.0
        %969 = vmatprep.subr.mxu0 0.0
        %970 = vmatpush1.msra.mxu0 0.0
        %971 = vmatprep.subr.mxu0 0.0
        %972 = vmatpush1.msra.mxu0 %v914
        %973 = vmatprep.subr.mxu0 0.0
        %974 = vmatpush1.msra.mxu0 %v913
        %975 = vmatprep.subr.mxu0 0.0
        %976 = vmatpush1.msra.mxu0 %v912
        %977 = vmatprep.subr.mxu0 0.0
        %978 = vmatpush1.msra.mxu0 %v911
        %979 = vmatprep.subr.mxu0 0.0
        %980 = vmatpush2.msra.mxu0 0.0
        %981 = vmatprep.subr.mxu0 0.0
        %982 = vmatpush2.msra.mxu0 0.0
        %983 = vmatprep.subr.mxu0 0.0
        %984 = vmatpush2.msra.mxu0 0.0
        %985 = vmatprep.subr.mxu0 0.0
        %986 = vmatpush2.msra.mxu0 0.0
        %987 = vmatprep.subr.mxu0 0.0
        %988 = vmatpush2.msra.mxu0 0.0
        %989 = vmatprep.subr.mxu0 0.0
        %990 = vmatpush2.msra.mxu0 0.0
        %991 = vmatprep.subr.mxu0 0.0
        %992 = vmatpush2.msra.mxu0 0.0
        %993 = vmatprep.subr.mxu0 0.0
        %994 = vmatpush2.msra.mxu0 0.0
        %995 = vmatprep.subr.mxu0 0.0
        %996 = vmatpush2.msra.mxu0 0.0
        %997 = vmatprep.subr.mxu0 0.0
        %998 = vmatpush2.msra.mxu0 0.0
        %999 = vmatprep.subr.mxu0 0.0
        %1000 = vmatpush2.msra.mxu0 0.0
        %1001 = vmatprep.subr.mxu0 0.0
        %1002 = vmatpush2.msra.mxu0 0.0
        %1003 = vmatprep.subr.mxu0 0.0
        %1004 = vmatpush2.msra.mxu0 0.0
        %1005 = vmatprep.subr.mxu0 0.0
        %1006 = vmatpush2.msra.mxu0 0.0
        %1007 = vmatprep.subr.mxu0 0.0
        %1008 = vmatpush2.msra.mxu0 0.0
        %1009 = vmatprep.subr.mxu0 0.0
        %1010 = vmatpush2.msra.mxu0 0.0
        %1011 = vmatprep.mubr.f32.mxu0 0.0
        %1012 = vmatmul.mubr.f32.gmra.mxu0 %v924
        %v1013 = vpop.f32.mrf.mxu0
        %v1014 = vadd.f32 %v920, %v1013
        %v1015 = vpop.f32.mrf.mxu0
        %1016 = vmatprep.mubr.f32.mxu0 0.0
        %1017 = vmatmul.mubr.f32.gmra.mxu0 %v927
        %v1018 = vpop.f32.mrf.mxu0
        %v1019 = vadd.f32 %v920, %v1018
        %v1020 = vpop.f32.mrf.mxu0
        %1021 = vmatprep.mubr.f32.mxu0 0.0
        %1022 = vmatmul.mubr.f32.gmra.mxu0 %v930
        %v1023 = vpop.f32.mrf.mxu0
        %v1024 = vadd.f32 %v920, %v1023
        %v1025 = vpop.f32.mrf.mxu0
        %1026 = vmatprep.mubr.f32.mxu0 0.0
        %1027 = vmatmul.mubr.f32.gmra.mxu0 %v933
        %v1028 = vpop.f32.mrf.mxu0
        %v1029 = vadd.f32 %v920, %v1028
        %v1030 = vpop.f32.mrf.mxu0
        %1031 = vmatprep.mubr.f32.mxu0 0.0
        %1032 = vmatmul.mubr.f32.gmra.mxu0 %v936
        %v1033 = vpop.f32.mrf.mxu0
        %v1034 = vadd.f32 %v920, %v1033
        %v1035 = vpop.f32.mrf.mxu0
        %1036 = vmatprep.mubr.f32.mxu0 0.0
        %1037 = vmatmul.mubr.f32.gmra.mxu0 %v939
        %v1038 = vpop.f32.mrf.mxu0
        %v1039 = vadd.f32 %v920, %v1038
        %v1040 = vpop.f32.mrf.mxu0
        %1041 = vmatprep.mubr.f32.mxu0 0.0
        %1042 = vmatmul.mubr.f32.gmra.mxu0 %v942
        %v1043 = vpop.f32.mrf.mxu0
        %v1044 = vadd.f32 %v920, %v1043
        %v1045 = vpop.f32.mrf.mxu0
        %1046 = vmatprep.mubr.f32.mxu0 0.0
        %1047 = vmatmul.mubr.f32.gmra.mxu0 %v945
        %v1048 = vpop.f32.mrf.mxu0
        %v1049 = vadd.f32 %v920, %v1048
        %v1050 = vpop.f32.mrf.mxu0
        %1051 = vdwg.mxu0
        %v1052 = vmax.f32 %v1014, 0.0
        %v1053 = vmax.f32 %v1019, 0.0
        %v1054 = vmax.f32 %v1024, 0.0
        %v1055 = vmax.f32 %v1029, 0.0
        %v1056 = vmax.f32 %v1034, 0.0
        %v1057 = vmax.f32 %v1039, 0.0
        %v1058 = vmax.f32 %v1044, 0.0
        %v1059 = vmax.f32 %v1049, 0.0
        %vm1060 = vcmask 31744
        %1061 = vst.msk [vmem:[#allocation3] sm:$0xff] %vm1060, 0.0
        %vm1062 = vcmask 24576
        %1063 = vst.msk [vmem:[#allocation3 + $0x8] sm:$0x1] %vm1062, 0.0
        %1064 = vst.msk [vmem:[#allocation3 + $0x10] sm:$0xff] %vm1060, 0.0
        %1065 = vst.msk [vmem:[#allocation3 + $0x18] sm:$0x1] %vm1062, 0.0
        %1066 = vst.msk [vmem:[#allocation3 + $0x20] sm:$0xff] %vm1060, 0.0
        %1067 = vst.msk [vmem:[#allocation3 + $0x28] sm:$0x1] %vm1062, 0.0
        %1068 = vst.msk [vmem:[#allocation3 + $0x30] sm:$0xff] %vm1060, 0.0
        %1069 = vst.msk [vmem:[#allocation3 + $0x38] sm:$0x1] %vm1062, 0.0
        %1070 = vst.msk [vmem:[#allocation3 + $0x40] sm:$0xff] %vm1060, 0.0
        %1071 = vst.msk [vmem:[#allocation3 + $0x48] sm:$0x1] %vm1062, 0.0
        %1072 = vst.msk [vmem:[#allocation3 + $0x50] sm:$0xff] %vm1060, 0.0
        %1073 = vst.msk [vmem:[#allocation3 + $0x58] sm:$0x1] %vm1062, 0.0
        %1074 = vst.msk [vmem:[#allocation3 + $0x60] sm:$0xff] %vm1060, 0.0
        %1075 = vst.msk [vmem:[#allocation3 + $0x68] sm:$0x1] %vm1062, 0.0
        %1076 = vst.msk [vmem:[#allocation3 + $0x70] sm:$0xff] %vm1060, 0.0
        %1077 = vst.msk [vmem:[#allocation3 + $0x78] sm:$0x1] %vm1062, 0.0
        %1078 = vst.msk [vmem:[#allocation3 + $0x80] sm:$0xff] %vm1060, 0.0
        %1079 = vst.msk [vmem:[#allocation3 + $0x88] sm:$0x1] %vm1062, 0.0
        %1080 = vst.msk [vmem:[#allocation3] sm:$0xff] %vm1060, %v1052
        %1081 = vst.msk [vmem:[#allocation3 + $0x10] sm:$0xff] %vm1060, %v1053
        %1082 = vst.msk [vmem:[#allocation3 + $0x20] sm:$0xff] %vm1060, %v1054
        %1083 = vst.msk [vmem:[#allocation3 + $0x30] sm:$0xff] %vm1060, %v1055
        %1084 = vst.msk [vmem:[#allocation3 + $0x40] sm:$0xff] %vm1060, %v1056
        %1085 = vst.msk [vmem:[#allocation3 + $0x50] sm:$0xff] %vm1060, %v1057
        %1086 = vst.msk [vmem:[#allocation3 + $0x60] sm:$0xff] %vm1060, %v1058
        %1087 = vst.msk [vmem:[#allocation3 + $0x70] sm:$0xff] %vm1060, %v1059
        %v1088 = vld [vmem:[#allocation3] sm:$0xff]
        %v1089 = vld [vmem:[#allocation3 + $0x10] sm:$0xff]
        %v1090 = vld [vmem:[#allocation3 + $0x20] sm:$0xff]
        %v1091 = vld [vmem:[#allocation3 + $0x30] sm:$0xff]
        %v1092 = vld [vmem:[#allocation3 + $0x40] sm:$0xff]
        %v1093 = vld [vmem:[#allocation3 + $0x50] sm:$0xff]
        %v1094 = vld [vmem:[#allocation3 + $0x60] sm:$0xff]
        %v1095 = vld [vmem:[#allocation3 + $0x70] sm:$0xff]
        %1096 = vst.msk [vmem:[#allocation7] sm:$0xff] %vm1060, %v1088
        %1097 = vst.msk [vmem:[#allocation7 + $0x8] sm:$0xff] %vm1060, %v1089
        %1098 = vst.msk [vmem:[#allocation7 + $0x10] sm:$0xff] %vm1060, %v1090
        %1099 = vst.msk [vmem:[#allocation7 + $0x18] sm:$0xff] %vm1060, %v1091
        %1100 = vst.msk [vmem:[#allocation7 + $0x20] sm:$0xff] %vm1060, %v1092
        %1101 = vst.msk [vmem:[#allocation7 + $0x28] sm:$0xff] %vm1060, %v1093
        %1102 = vst.msk [vmem:[#allocation7 + $0x30] sm:$0xff] %vm1060, %v1094
        %1103 = vst.msk [vmem:[#allocation7 + $0x38] sm:$0xff] %vm1060, %v1095
        %v1104 = vld [vmem:[#allocation3 + $0x1] sm:$0xff]
        %v1105 = vld [vmem:[#allocation3 + $0x11] sm:$0xff]
        %v1106 = vld [vmem:[#allocation3 + $0x21] sm:$0xff]
        %v1107 = vld [vmem:[#allocation3 + $0x31] sm:$0xff]
        %v1108 = vld [vmem:[#allocation3 + $0x41] sm:$0xff]
        %v1109 = vld [vmem:[#allocation3 + $0x51] sm:$0xff]
        %v1110 = vld [vmem:[#allocation3 + $0x61] sm:$0xff]
        %v1111 = vld [vmem:[#allocation3 + $0x71] sm:$0xff]
        %1120 = vrot.lane.b32.xlu0 %v1104, 4
        %v1121 = vpop.permute.xlu0 %1120
        %1122 = vrot.lane.b32.xlu0 %v1105, 4
        %v1123 = vpop.permute.xlu0 %1122
        %1124 = vrot.lane.b32.xlu0 %v1106, 4
        %v1125 = vpop.permute.xlu0 %1124
        %1126 = vrot.lane.b32.xlu0 %v1107, 4
        %v1127 = vpop.permute.xlu0 %1126
        %1128 = vrot.lane.b32.xlu0 %v1108, 4
        %v1129 = vpop.permute.xlu0 %1128
        %1130 = vrot.lane.b32.xlu0 %v1109, 4
        %v1131 = vpop.permute.xlu0 %1130
        %1132 = vrot.lane.b32.xlu0 %v1110, 4
        %v1133 = vpop.permute.xlu0 %1132
        %1134 = vrot.lane.b32.xlu0 %v1111, 4
        %v1135 = vpop.permute.xlu0 %1134
        %vm1144 = vcmask 64544
        %1145 = vst.msk [vmem:[#allocation7] sm:$0xff] %vm1144, %v1121
        %1146 = vst.msk [vmem:[#allocation7 + $0x8] sm:$0xff] %vm1144, %v1123
        %1147 = vst.msk [vmem:[#allocation7 + $0x10] sm:$0xff] %vm1144, %v1125
        %1148 = vst.msk [vmem:[#allocation7 + $0x18] sm:$0xff] %vm1144, %v1127
        %1149 = vst.msk [vmem:[#allocation7 + $0x20] sm:$0xff] %vm1144, %v1129
        %1150 = vst.msk [vmem:[#allocation7 + $0x28] sm:$0xff] %vm1144, %v1131
        %1151 = vst.msk [vmem:[#allocation7 + $0x30] sm:$0xff] %vm1144, %v1133
        %1152 = vst.msk [vmem:[#allocation7 + $0x38] sm:$0xff] %vm1144, %v1135
        %s1153 = scalar_lea.vmem [#allocation3], 16
        %v1154 = vld [vmem:[%s1153] sm:$0xff]
        %v1155 = vld [vmem:[%s1153 + $0x10] sm:$0xff]
        %v1156 = vld [vmem:[%s1153 + $0x20] sm:$0xff]
        %v1157 = vld [vmem:[%s1153 + $0x30] sm:$0xff]
        %v1158 = vld [vmem:[%s1153 + $0x40] sm:$0xff]
        %v1159 = vld [vmem:[%s1153 + $0x50] sm:$0xff]
        %v1160 = vld [vmem:[%s1153 + $0x60] sm:$0xff]
        %v1161 = vld [vmem:[%s1153 + $0x70] sm:$0xff]
        %1170 = vrot.lane.b32.xlu0 %v1154, 8
        %v1171 = vpop.permute.xlu0 %1170
        %1172 = vrot.lane.b32.xlu0 %v1155, 8
        %v1173 = vpop.permute.xlu0 %1172
        %1174 = vrot.lane.b32.xlu0 %v1156, 8
        %v1175 = vpop.permute.xlu0 %1174
        %1176 = vrot.lane.b32.xlu0 %v1157, 8
        %v1177 = vpop.permute.xlu0 %1176
        %1178 = vrot.lane.b32.xlu0 %v1158, 8
        %v1179 = vpop.permute.xlu0 %1178
        %1180 = vrot.lane.b32.xlu0 %v1159, 8
        %v1181 = vpop.permute.xlu0 %1180
        %1182 = vrot.lane.b32.xlu0 %v1160, 8
        %v1183 = vpop.permute.xlu0 %1182
        %1184 = vrot.lane.b32.xlu0 %v1161, 8
        %v1185 = vpop.permute.xlu0 %1184
        %vm1194 = vcmask 97344
        %1195 = vst.msk [vmem:[#allocation7] sm:$0xff] %vm1194, %v1171
        %1196 = vst.msk [vmem:[#allocation7 + $0x8] sm:$0xff] %vm1194, %v1173
        %1197 = vst.msk [vmem:[#allocation7 + $0x10] sm:$0xff] %vm1194, %v1175
        %1198 = vst.msk [vmem:[#allocation7 + $0x18] sm:$0xff] %vm1194, %v1177
        %1199 = vst.msk [vmem:[#allocation7 + $0x20] sm:$0xff] %vm1194, %v1179
        %1200 = vst.msk [vmem:[#allocation7 + $0x28] sm:$0xff] %vm1194, %v1181
        %1201 = vst.msk [vmem:[#allocation7 + $0x30] sm:$0xff] %vm1194, %v1183
        %1202 = vst.msk [vmem:[#allocation7 + $0x38] sm:$0xff] %vm1194, %v1185
        %v1203 = vld [vmem:[%s1153 + $0x1] sm:$0xff]
        %v1204 = vld [vmem:[%s1153 + $0x11] sm:$0xff]
        %v1205 = vld [vmem:[%s1153 + $0x21] sm:$0xff]
        %v1206 = vld [vmem:[%s1153 + $0x31] sm:$0xff]
        %v1207 = vld [vmem:[%s1153 + $0x41] sm:$0xff]
        %v1208 = vld [vmem:[%s1153 + $0x51] sm:$0xff]
        %v1209 = vld [vmem:[%s1153 + $0x61] sm:$0xff]
        %v1210 = vld [vmem:[%s1153 + $0x71] sm:$0xff]
        %1219 = vrot.lane.b32.xlu0 %v1203, 12
        %v1220 = vpop.permute.xlu0 %1219
        %1221 = vrot.lane.b32.xlu0 %v1204, 12
        %v1222 = vpop.permute.xlu0 %1221
        %1223 = vrot.lane.b32.xlu0 %v1205, 12
        %v1224 = vpop.permute.xlu0 %1223
        %1225 = vrot.lane.b32.xlu0 %v1206, 12
        %v1226 = vpop.permute.xlu0 %1225
        %1227 = vrot.lane.b32.xlu0 %v1207, 12
        %v1228 = vpop.permute.xlu0 %1227
        %1229 = vrot.lane.b32.xlu0 %v1208, 12
        %v1230 = vpop.permute.xlu0 %1229
        %1231 = vrot.lane.b32.xlu0 %v1209, 12
        %v1232 = vpop.permute.xlu0 %1231
        %1233 = vrot.lane.b32.xlu0 %v1210, 12
        %v1234 = vpop.permute.xlu0 %1233
        %vm1243 = vcmask 130144
        %1244 = vst.msk [vmem:[#allocation7] sm:$0xff] %vm1243, %v1220
        %1245 = vst.msk [vmem:[#allocation7 + $0x8] sm:$0xff] %vm1243, %v1222
        %1246 = vst.msk [vmem:[#allocation7 + $0x10] sm:$0xff] %vm1243, %v1224
        %1247 = vst.msk [vmem:[#allocation7 + $0x18] sm:$0xff] %vm1243, %v1226
        %1248 = vst.msk [vmem:[#allocation7 + $0x20] sm:$0xff] %vm1243, %v1228
        %1249 = vst.msk [vmem:[#allocation7 + $0x28] sm:$0xff] %vm1243, %v1230
        %1250 = vst.msk [vmem:[#allocation7 + $0x30] sm:$0xff] %vm1243, %v1232
        %1251 = vst.msk [vmem:[#allocation7 + $0x38] sm:$0xff] %vm1243, %v1234
        %v1252 = vld [vmem:[#allocation7] sm:$0xff]
        %v1253 = vld [vmem:[#allocation7 + $0x8] sm:$0xff]
        %v1254 = vld [vmem:[#allocation7 + $0x10] sm:$0xff]
        %v1255 = vld [vmem:[#allocation7 + $0x18] sm:$0xff]
        %v1256 = vld [vmem:[#allocation7 + $0x20] sm:$0xff]
        %v1257 = vld [vmem:[#allocation7 + $0x28] sm:$0xff]
        %v1258 = vld [vmem:[#allocation7 + $0x30] sm:$0xff]
        %v1259 = vld [vmem:[#allocation7 + $0x38] sm:$0xff]
        %v1260 = vld [vmem:[%s5] sm:$0xff]
        %v1261 = vld [vmem:[%s5 + $0x8] sm:$0xff]
        %v1262 = vld [vmem:[%s6] sm:$0x1]
        %v1264 = vlaneseq
        %v1265 = vshrl.u32 %v1264, 7
        %v1266 = vsub.s32 0, %v1265
        %v1267 = vrot.slane %v1262, %v1266
        %v1270 = vsel %vm393, %v1252, 0
        %v1273 = vsel %vm393, %v1253, 0
        %v1276 = vsel %vm393, %v1254, 0
        %v1279 = vsel %vm393, %v1255, 0
        %v1282 = vsel %vm393, %v1256, 0
        %v1285 = vsel %vm393, %v1257, 0
        %v1288 = vsel %vm393, %v1258, 0
        %v1291 = vsel %vm393, %v1259, 0
        %1293 = vmatprep.subr.mxu0 0.0
        %1294 = vmatpush1.msra.mxu0 0.0
        %1295 = vmatprep.subr.mxu0 0.0
        %1296 = vmatpush1.msra.mxu0 0.0
        %1297 = vmatprep.subr.mxu0 0.0
        %1298 = vmatpush1.msra.mxu0 0.0
        %1299 = vmatprep.subr.mxu0 0.0
        %1300 = vmatpush1.msra.mxu0 0.0
        %1301 = vmatprep.subr.mxu0 0.0
        %1302 = vmatpush1.msra.mxu0 0.0
        %1303 = vmatprep.subr.mxu0 0.0
        %1304 = vmatpush1.msra.mxu0 0.0
        %1305 = vmatprep.subr.mxu0 0.0
        %1306 = vmatpush1.msra.mxu0 0.0
        %1307 = vmatprep.subr.mxu0 0.0
        %1308 = vmatpush1.msra.mxu0 0.0
        %1309 = vmatprep.subr.mxu0 0.0
        %1310 = vmatpush1.msra.mxu0 0.0
        %1311 = vmatprep.subr.mxu0 0.0
        %1312 = vmatpush1.msra.mxu0 0.0
        %1313 = vmatprep.subr.mxu0 0.0
        %1314 = vmatpush1.msra.mxu0 0.0
        %1315 = vmatprep.subr.mxu0 0.0
        %1316 = vmatpush1.msra.mxu0 0.0
        %1317 = vmatprep.subr.mxu0 0.0
        %1318 = vmatpush1.msra.mxu0 0.0
        %1319 = vmatprep.subr.mxu0 0.0
        %1320 = vmatpush1.msra.mxu0 0.0
        %1321 = vmatprep.subr.mxu0 0.0
        %1322 = vmatpush1.msra.mxu0 %v1261
        %1323 = vmatprep.subr.mxu0 0.0
        %1324 = vmatpush1.msra.mxu0 %v1260
        %1325 = vmatprep.subr.mxu0 0.0
        %1326 = vmatpush2.msra.mxu0 0.0
        %1327 = vmatprep.subr.mxu0 0.0
        %1328 = vmatpush2.msra.mxu0 0.0
        %1329 = vmatprep.subr.mxu0 0.0
        %1330 = vmatpush2.msra.mxu0 0.0
        %1331 = vmatprep.subr.mxu0 0.0
        %1332 = vmatpush2.msra.mxu0 0.0
        %1333 = vmatprep.subr.mxu0 0.0
        %1334 = vmatpush2.msra.mxu0 0.0
        %1335 = vmatprep.subr.mxu0 0.0
        %1336 = vmatpush2.msra.mxu0 0.0
        %1337 = vmatprep.subr.mxu0 0.0
        %1338 = vmatpush2.msra.mxu0 0.0
        %1339 = vmatprep.subr.mxu0 0.0
        %1340 = vmatpush2.msra.mxu0 0.0
        %1341 = vmatprep.subr.mxu0 0.0
        %1342 = vmatpush2.msra.mxu0 0.0
        %1343 = vmatprep.subr.mxu0 0.0
        %1344 = vmatpush2.msra.mxu0 0.0
        %1345 = vmatprep.subr.mxu0 0.0
        %1346 = vmatpush2.msra.mxu0 0.0
        %1347 = vmatprep.subr.mxu0 0.0
        %1348 = vmatpush2.msra.mxu0 0.0
        %1349 = vmatprep.subr.mxu0 0.0
        %1350 = vmatpush2.msra.mxu0 0.0
        %1351 = vmatprep.subr.mxu0 0.0
        %1352 = vmatpush2.msra.mxu0 0.0
        %1353 = vmatprep.subr.mxu0 0.0
        %1354 = vmatpush2.msra.mxu0 0.0
        %1355 = vmatprep.subr.mxu0 0.0
        %1356 = vmatpush2.msra.mxu0 0.0
        %1357 = vmatprep.mubr.f32.mxu0 0.0
        %1358 = vmatmul.mubr.f32.gmra.mxu0 %v1270
        %v1359 = vpop.f32.mrf.mxu0
        %v1360 = vadd.f32 %v1267, %v1359
        %v1361 = vpop.f32.mrf.mxu0
        %1362 = vmatprep.mubr.f32.mxu0 0.0
        %1363 = vmatmul.mubr.f32.gmra.mxu0 %v1273
        %v1364 = vpop.f32.mrf.mxu0
        %v1365 = vadd.f32 %v1267, %v1364
        %v1366 = vpop.f32.mrf.mxu0
        %1367 = vmatprep.mubr.f32.mxu0 0.0
        %1368 = vmatmul.mubr.f32.gmra.mxu0 %v1276
        %v1369 = vpop.f32.mrf.mxu0
        %v1370 = vadd.f32 %v1267, %v1369
        %v1371 = vpop.f32.mrf.mxu0
        %1372 = vmatprep.mubr.f32.mxu0 0.0
        %1373 = vmatmul.mubr.f32.gmra.mxu0 %v1279
        %v1374 = vpop.f32.mrf.mxu0
        %v1375 = vadd.f32 %v1267, %v1374
        %v1376 = vpop.f32.mrf.mxu0
        %1377 = vmatprep.mubr.f32.mxu0 0.0
        %1378 = vmatmul.mubr.f32.gmra.mxu0 %v1282
        %v1379 = vpop.f32.mrf.mxu0
        %v1380 = vadd.f32 %v1267, %v1379
        %v1381 = vpop.f32.mrf.mxu0
        %1382 = vmatprep.mubr.f32.mxu0 0.0
        %1383 = vmatmul.mubr.f32.gmra.mxu0 %v1285
        %v1384 = vpop.f32.mrf.mxu0
        %v1385 = vadd.f32 %v1267, %v1384
        %v1386 = vpop.f32.mrf.mxu0
        %1387 = vmatprep.mubr.f32.mxu0 0.0
        %1388 = vmatmul.mubr.f32.gmra.mxu0 %v1288
        %v1389 = vpop.f32.mrf.mxu0
        %v1390 = vadd.f32 %v1267, %v1389
        %v1391 = vpop.f32.mrf.mxu0
        %1392 = vmatprep.mubr.f32.mxu0 0.0
        %1393 = vmatmul.mubr.f32.gmra.mxu0 %v1291
        %v1394 = vpop.f32.mrf.mxu0
        %v1395 = vadd.f32 %v1267, %v1394
        %v1396 = vpop.f32.mrf.mxu0
        %1397 = vdwg.mxu0
        %v1398 = vmax.f32 %v1360, 0.0
        %v1399 = vmax.f32 %v1365, 0.0
        %v1400 = vmax.f32 %v1370, 0.0
        %v1401 = vmax.f32 %v1375, 0.0
        %v1402 = vmax.f32 %v1380, 0.0
        %v1403 = vmax.f32 %v1385, 0.0
        %v1404 = vmax.f32 %v1390, 0.0
        %v1405 = vmax.f32 %v1395, 0.0
        %v1406 = vld [vmem:[#allocation2] sm:$0xff]
        %v1407 = vld [vmem:[#allocation2 + $0x10] sm:$0xff]
        %v1408 = vld [vmem:[#allocation2 + $0x20] sm:$0xff]
        %v1409 = vld [vmem:[#allocation2 + $0x30] sm:$0xff]
        %v1410 = vld [vmem:[#allocation2 + $0x40] sm:$0xff]
        %v1411 = vld [vmem:[#allocation2 + $0x50] sm:$0xff]
        %v1412 = vld [vmem:[#allocation2 + $0x60] sm:$0xff]
        %v1413 = vld [vmem:[#allocation2 + $0x70] sm:$0xff]
        %v1414 = vld [vmem:[#allocation2 + $0x1] sm:$0xff]
        %v1415 = vld [vmem:[#allocation2 + $0x11] sm:$0xff]
        %v1416 = vld [vmem:[#allocation2 + $0x21] sm:$0xff]
        %v1417 = vld [vmem:[#allocation2 + $0x31] sm:$0xff]
        %v1418 = vld [vmem:[#allocation2 + $0x41] sm:$0xff]
        %v1419 = vld [vmem:[#allocation2 + $0x51] sm:$0xff]
        %v1420 = vld [vmem:[#allocation2 + $0x61] sm:$0xff]
        %v1421 = vld [vmem:[#allocation2 + $0x71] sm:$0xff]
        %v1422 = vmax.f32 %v1406, %v1414
        %v1423 = vmax.f32 %v1407, %v1415
        %v1424 = vmax.f32 %v1408, %v1416
        %v1425 = vmax.f32 %v1409, %v1417
        %v1426 = vmax.f32 %v1410, %v1418
        %v1427 = vmax.f32 %v1411, %v1419
        %v1428 = vmax.f32 %v1412, %v1420
        %v1429 = vmax.f32 %v1413, %v1421
        %v1430 = vld [vmem:[%s804] sm:$0xff]
        %v1431 = vld [vmem:[%s804 + $0x10] sm:$0xff]
        %v1432 = vld [vmem:[%s804 + $0x20] sm:$0xff]
        %v1433 = vld [vmem:[%s804 + $0x30] sm:$0xff]
        %v1434 = vld [vmem:[%s804 + $0x40] sm:$0xff]
        %v1435 = vld [vmem:[%s804 + $0x50] sm:$0xff]
        %v1436 = vld [vmem:[%s804 + $0x60] sm:$0xff]
        %v1437 = vld [vmem:[%s804 + $0x70] sm:$0xff]
        %v1438 = vld [vmem:[%s804 + $0x1] sm:$0xff]
        %v1439 = vld [vmem:[%s804 + $0x11] sm:$0xff]
        %v1440 = vld [vmem:[%s804 + $0x21] sm:$0xff]
        %v1441 = vld [vmem:[%s804 + $0x31] sm:$0xff]
        %v1442 = vld [vmem:[%s804 + $0x41] sm:$0xff]
        %v1443 = vld [vmem:[%s804 + $0x51] sm:$0xff]
        %v1444 = vld [vmem:[%s804 + $0x61] sm:$0xff]
        %v1445 = vld [vmem:[%s804 + $0x71] sm:$0xff]
        %v1446 = vmax.f32 %v1430, %v1438
        %v1447 = vmax.f32 %v1431, %v1439
        %v1448 = vmax.f32 %v1432, %v1440
        %v1449 = vmax.f32 %v1433, %v1441
        %v1450 = vmax.f32 %v1434, %v1442
        %v1451 = vmax.f32 %v1435, %v1443
        %v1452 = vmax.f32 %v1436, %v1444
        %v1453 = vmax.f32 %v1437, %v1445
        %v1454 = vmax.f32 %v1422, %v1446
        %v1455 = vmax.f32 %v1423, %v1447
        %v1456 = vmax.f32 %v1424, %v1448
        %v1457 = vmax.f32 %v1425, %v1449
        %v1458 = vmax.f32 %v1426, %v1450
        %v1459 = vmax.f32 %v1427, %v1451
        %v1460 = vmax.f32 %v1428, %v1452
        %v1461 = vmax.f32 %v1429, %v1453
        %1462 = vst.msk [vmem:[#allocation4] sm:$0xff] %vm393, 0.0
        %vm1463 = vcmask 123904
        %1464 = vst.msk [vmem:[#allocation4 + $0x8] sm:$0x3] %vm1463, 0.0
        %1465 = vst.msk [vmem:[#allocation4 + $0x10] sm:$0xff] %vm393, 0.0
        %1466 = vst.msk [vmem:[#allocation4 + $0x18] sm:$0x3] %vm1463, 0.0
        %1467 = vst.msk [vmem:[#allocation4 + $0x20] sm:$0xff] %vm393, 0.0
        %1468 = vst.msk [vmem:[#allocation4 + $0x28] sm:$0x3] %vm1463, 0.0
        %1469 = vst.msk [vmem:[#allocation4 + $0x30] sm:$0xff] %vm393, 0.0
        %1470 = vst.msk [vmem:[#allocation4 + $0x38] sm:$0x3] %vm1463, 0.0
        %1471 = vst.msk [vmem:[#allocation4 + $0x40] sm:$0xff] %vm393, 0.0
        %1472 = vst.msk [vmem:[#allocation4 + $0x48] sm:$0x3] %vm1463, 0.0
        %1473 = vst.msk [vmem:[#allocation4 + $0x50] sm:$0xff] %vm393, 0.0
        %1474 = vst.msk [vmem:[#allocation4 + $0x58] sm:$0x3] %vm1463, 0.0
        %1475 = vst.msk [vmem:[#allocation4 + $0x60] sm:$0xff] %vm393, 0.0
        %1476 = vst.msk [vmem:[#allocation4 + $0x68] sm:$0x3] %vm1463, 0.0
        %1477 = vst.msk [vmem:[#allocation4 + $0x70] sm:$0xff] %vm393, 0.0
        %1478 = vst.msk [vmem:[#allocation4 + $0x78] sm:$0x3] %vm1463, 0.0
        %1479 = vst.msk [vmem:[#allocation4 + $0x80] sm:$0xff] %vm393, 0.0
        %1480 = vst.msk [vmem:[#allocation4 + $0x88] sm:$0x3] %vm1463, 0.0
        %1481 = vst.msk [vmem:[#allocation4 + $0x90] sm:$0xff] %vm393, 0.0
        %1482 = vst.msk [vmem:[#allocation4 + $0x98] sm:$0x3] %vm1463, 0.0
        %s1483 = scalar_lea.vmem [#allocation4], 16
        %1484 = vst.msk [vmem:[%s1483 + $0x1] sm:$0xff] %vm711, %v1454
        %1485 = vst.msk [vmem:[%s1483 + $0x11] sm:$0xff] %vm711, %v1455
        %1486 = vst.msk [vmem:[%s1483 + $0x21] sm:$0xff] %vm711, %v1456
        %1487 = vst.msk [vmem:[%s1483 + $0x31] sm:$0xff] %vm711, %v1457
        %1488 = vst.msk [vmem:[%s1483 + $0x41] sm:$0xff] %vm711, %v1458
        %1489 = vst.msk [vmem:[%s1483 + $0x51] sm:$0xff] %vm711, %v1459
        %1490 = vst.msk [vmem:[%s1483 + $0x61] sm:$0xff] %vm711, %v1460
        %1491 = vst.msk [vmem:[%s1483 + $0x71] sm:$0xff] %vm711, %v1461
        %1500 = vrot.lane.b32.xlu0 %v1398, 8
        %v1501 = vpop.permute.xlu0 %1500
        %1502 = vrot.lane.b32.xlu0 %v1399, 8
        %v1503 = vpop.permute.xlu0 %1502
        %1504 = vrot.lane.b32.xlu0 %v1400, 8
        %v1505 = vpop.permute.xlu0 %1504
        %1506 = vrot.lane.b32.xlu0 %v1401, 8
        %v1507 = vpop.permute.xlu0 %1506
        %1508 = vrot.lane.b32.xlu0 %v1402, 8
        %v1509 = vpop.permute.xlu0 %1508
        %1510 = vrot.lane.b32.xlu0 %v1403, 8
        %v1511 = vpop.permute.xlu0 %1510
        %1512 = vrot.lane.b32.xlu0 %v1404, 8
        %v1513 = vpop.permute.xlu0 %1512
        %1514 = vrot.lane.b32.xlu0 %v1405, 8
        %v1515 = vpop.permute.xlu0 %1514
        %1524 = vst.msk [vmem:[%s1483 + $0x1] sm:$0xff] %vm795, %v1501
        %1525 = vst.msk [vmem:[%s1483 + $0x11] sm:$0xff] %vm795, %v1503
        %1526 = vst.msk [vmem:[%s1483 + $0x21] sm:$0xff] %vm795, %v1505
        %1527 = vst.msk [vmem:[%s1483 + $0x31] sm:$0xff] %vm795, %v1507
        %1528 = vst.msk [vmem:[%s1483 + $0x41] sm:$0xff] %vm795, %v1509
        %1529 = vst.msk [vmem:[%s1483 + $0x51] sm:$0xff] %vm795, %v1511
        %1530 = vst.msk [vmem:[%s1483 + $0x61] sm:$0xff] %vm795, %v1513
        %1531 = vst.msk [vmem:[%s1483 + $0x71] sm:$0xff] %vm795, %v1515
        %v1532 = vld [vmem:[#allocation4] sm:$0xff]
        %v1533 = vld [vmem:[#allocation4 + $0x8] sm:$0x3]
        %v1534 = vld [vmem:[#allocation4 + $0x10] sm:$0xff]
        %v1535 = vld [vmem:[#allocation4 + $0x18] sm:$0x3]
        %v1536 = vld [vmem:[#allocation4 + $0x20] sm:$0xff]
        %v1537 = vld [vmem:[#allocation4 + $0x28] sm:$0x3]
        %v1538 = vld [vmem:[#allocation4 + $0x30] sm:$0xff]
        %v1539 = vld [vmem:[#allocation4 + $0x38] sm:$0x3]
        %v1540 = vld [vmem:[#allocation4 + $0x40] sm:$0xff]
        %v1541 = vld [vmem:[#allocation4 + $0x48] sm:$0x3]
        %v1542 = vld [vmem:[#allocation4 + $0x50] sm:$0xff]
        %v1543 = vld [vmem:[#allocation4 + $0x58] sm:$0x3]
        %v1544 = vld [vmem:[#allocation4 + $0x60] sm:$0xff]
        %v1545 = vld [vmem:[#allocation4 + $0x68] sm:$0x3]
        %v1546 = vld [vmem:[#allocation4 + $0x70] sm:$0xff]
        %v1547 = vld [vmem:[#allocation4 + $0x78] sm:$0x3]
        %v1548 = vld [vmem:[#allocation4 + $0x80] sm:$0xff]
        %v1549 = vld [vmem:[#allocation4 + $0x88] sm:$0x3]
        %v1550 = vld [vmem:[#allocation4 + $0x90] sm:$0xff]
        %v1551 = vld [vmem:[#allocation4 + $0x98] sm:$0x3]
        %v1572 = vcombine.high %v1532, %v1532
        %v1574 = vunpack.c.l.s4 1983009808
        %v1575 = vunpack.c.0.s8 %v1574
        %v1576 = vlaneseq
        %v1577 = vshrl.u32 %v1576, 7
        %v1578 = vsub.s32 %v1575, %v1577
        %v1579 = vrot.slane %v1532, %v1578
        %v1581 = vunpack.c.l.s4 1983009808
        %v1582 = vunpack.c.0.s8 %v1581
        %v1583 = vlaneseq
        %v1584 = vshrl.u32 %v1583, 7
        %v1585 = vsub.s32 %v1582, %v1584
        %v1586 = vrot.slane %v1572, %v1585
        %v1587 = vcombine.high %v1579, %v1579
        %v1588 = vcombine.high %v1586, %v1586
        %v1590 = vunpack.c.l.s4 1983009808
        %v1591 = vunpack.c.0.s8 %v1590
        %v1592 = vlaneseq
        %v1593 = vshrl.u32 %v1592, 7
        %v1594 = vsub.s32 %v1591, %v1593
        %v1595 = vrot.slane %v1533, %v1594
        %v1596 = vcombine.high %v1534, %v1534
        %v1598 = vunpack.c.l.s4 1983009808
        %v1599 = vunpack.c.0.s8 %v1598
        %v1600 = vlaneseq
        %v1601 = vshrl.u32 %v1600, 7
        %v1602 = vsub.s32 %v1599, %v1601
        %v1603 = vrot.slane %v1534, %v1602
        %v1605 = vunpack.c.l.s4 1983009808
        %v1606 = vunpack.c.0.s8 %v1605
        %v1607 = vlaneseq
        %v1608 = vshrl.u32 %v1607, 7
        %v1609 = vsub.s32 %v1606, %v1608
        %v1610 = vrot.slane %v1596, %v1609
        %v1611 = vcombine.high %v1603, %v1603
        %v1612 = vcombine.high %v1610, %v1610
        %v1614 = vunpack.c.l.s4 1983009808
        %v1615 = vunpack.c.0.s8 %v1614
        %v1616 = vlaneseq
        %v1617 = vshrl.u32 %v1616, 7
        %v1618 = vsub.s32 %v1615, %v1617
        %v1619 = vrot.slane %v1535, %v1618
        %v1620 = vcombine.high %v1536, %v1536
        %v1622 = vunpack.c.l.s4 1983009808
        %v1623 = vunpack.c.0.s8 %v1622
        %v1624 = vlaneseq
        %v1625 = vshrl.u32 %v1624, 7
        %v1626 = vsub.s32 %v1623, %v1625
        %v1627 = vrot.slane %v1536, %v1626
        %v1629 = vunpack.c.l.s4 1983009808
        %v1630 = vunpack.c.0.s8 %v1629
        %v1631 = vlaneseq
        %v1632 = vshrl.u32 %v1631, 7
        %v1633 = vsub.s32 %v1630, %v1632
        %v1634 = vrot.slane %v1620, %v1633
        %v1635 = vcombine.high %v1627, %v1627
        %v1636 = vcombine.high %v1634, %v1634
        %v1638 = vunpack.c.l.s4 1983009808
        %v1639 = vunpack.c.0.s8 %v1638
        %v1640 = vlaneseq
        %v1641 = vshrl.u32 %v1640, 7
        %v1642 = vsub.s32 %v1639, %v1641
        %v1643 = vrot.slane %v1537, %v1642
        %v1644 = vcombine.high %v1538, %v1538
        %v1646 = vunpack.c.l.s4 1983009808
        %v1647 = vunpack.c.0.s8 %v1646
        %v1648 = vlaneseq
        %v1649 = vshrl.u32 %v1648, 7
        %v1650 = vsub.s32 %v1647, %v1649
        %v1651 = vrot.slane %v1538, %v1650
        %v1653 = vunpack.c.l.s4 1983009808
        %v1654 = vunpack.c.0.s8 %v1653
        %v1655 = vlaneseq
        %v1656 = vshrl.u32 %v1655, 7
        %v1657 = vsub.s32 %v1654, %v1656
        %v1658 = vrot.slane %v1644, %v1657
        %v1659 = vcombine.high %v1651, %v1651
        %v1660 = vcombine.high %v1658, %v1658
        %v1662 = vunpack.c.l.s4 1983009808
        %v1663 = vunpack.c.0.s8 %v1662
        %v1664 = vlaneseq
        %v1665 = vshrl.u32 %v1664, 7
        %v1666 = vsub.s32 %v1663, %v1665
        %v1667 = vrot.slane %v1539, %v1666
        %v1668 = vcombine.high %v1540, %v1540
        %v1670 = vunpack.c.l.s4 1983009808
        %v1671 = vunpack.c.0.s8 %v1670
        %v1672 = vlaneseq
        %v1673 = vshrl.u32 %v1672, 7
        %v1674 = vsub.s32 %v1671, %v1673
        %v1675 = vrot.slane %v1540, %v1674
        %v1677 = vunpack.c.l.s4 1983009808
        %v1678 = vunpack.c.0.s8 %v1677
        %v1679 = vlaneseq
        %v1680 = vshrl.u32 %v1679, 7
        %v1681 = vsub.s32 %v1678, %v1680
        %v1682 = vrot.slane %v1668, %v1681
        %v1683 = vcombine.high %v1675, %v1675
        %v1684 = vcombine.high %v1682, %v1682
        %v1686 = vunpack.c.l.s4 1983009808
        %v1687 = vunpack.c.0.s8 %v1686
        %v1688 = vlaneseq
        %v1689 = vshrl.u32 %v1688, 7
        %v1690 = vsub.s32 %v1687, %v1689
        %v1691 = vrot.slane %v1541, %v1690
        %v1692 = vcombine.high %v1542, %v1542
        %v1694 = vunpack.c.l.s4 1983009808
        %v1695 = vunpack.c.0.s8 %v1694
        %v1696 = vlaneseq
        %v1697 = vshrl.u32 %v1696, 7
        %v1698 = vsub.s32 %v1695, %v1697
        %v1699 = vrot.slane %v1542, %v1698
        %v1701 = vunpack.c.l.s4 1983009808
        %v1702 = vunpack.c.0.s8 %v1701
        %v1703 = vlaneseq
        %v1704 = vshrl.u32 %v1703, 7
        %v1705 = vsub.s32 %v1702, %v1704
        %v1706 = vrot.slane %v1692, %v1705
        %v1707 = vcombine.high %v1699, %v1699
        %v1708 = vcombine.high %v1706, %v1706
        %v1710 = vunpack.c.l.s4 1983009808
        %v1711 = vunpack.c.0.s8 %v1710
        %v1712 = vlaneseq
        %v1713 = vshrl.u32 %v1712, 7
        %v1714 = vsub.s32 %v1711, %v1713
        %v1715 = vrot.slane %v1543, %v1714
        %v1716 = vcombine.high %v1544, %v1544
        %v1718 = vunpack.c.l.s4 1983009808
        %v1719 = vunpack.c.0.s8 %v1718
        %v1720 = vlaneseq
        %v1721 = vshrl.u32 %v1720, 7
        %v1722 = vsub.s32 %v1719, %v1721
        %v1723 = vrot.slane %v1544, %v1722
        %v1725 = vunpack.c.l.s4 1983009808
        %v1726 = vunpack.c.0.s8 %v1725
        %v1727 = vlaneseq
        %v1728 = vshrl.u32 %v1727, 7
        %v1729 = vsub.s32 %v1726, %v1728
        %v1730 = vrot.slane %v1716, %v1729
        %v1731 = vcombine.high %v1723, %v1723
        %v1732 = vcombine.high %v1730, %v1730
        %v1734 = vunpack.c.l.s4 1983009808
        %v1735 = vunpack.c.0.s8 %v1734
        %v1736 = vlaneseq
        %v1737 = vshrl.u32 %v1736, 7
        %v1738 = vsub.s32 %v1735, %v1737
        %v1739 = vrot.slane %v1545, %v1738
        %v1740 = vcombine.high %v1546, %v1546
        %v1742 = vunpack.c.l.s4 1983009808
        %v1743 = vunpack.c.0.s8 %v1742
        %v1744 = vlaneseq
        %v1745 = vshrl.u32 %v1744, 7
        %v1746 = vsub.s32 %v1743, %v1745
        %v1747 = vrot.slane %v1546, %v1746
        %v1749 = vunpack.c.l.s4 1983009808
        %v1750 = vunpack.c.0.s8 %v1749
        %v1751 = vlaneseq
        %v1752 = vshrl.u32 %v1751, 7
        %v1753 = vsub.s32 %v1750, %v1752
        %v1754 = vrot.slane %v1740, %v1753
        %v1755 = vcombine.high %v1747, %v1747
        %v1756 = vcombine.high %v1754, %v1754
        %v1758 = vunpack.c.l.s4 1983009808
        %v1759 = vunpack.c.0.s8 %v1758
        %v1760 = vlaneseq
        %v1761 = vshrl.u32 %v1760, 7
        %v1762 = vsub.s32 %v1759, %v1761
        %v1763 = vrot.slane %v1547, %v1762
        %v1764 = vcombine.high %v1548, %v1548
        %v1766 = vunpack.c.l.s4 1983009808
        %v1767 = vunpack.c.0.s8 %v1766
        %v1768 = vlaneseq
        %v1769 = vshrl.u32 %v1768, 7
        %v1770 = vsub.s32 %v1767, %v1769
        %v1771 = vrot.slane %v1548, %v1770
        %v1773 = vunpack.c.l.s4 1983009808
        %v1774 = vunpack.c.0.s8 %v1773
        %v1775 = vlaneseq
        %v1776 = vshrl.u32 %v1775, 7
        %v1777 = vsub.s32 %v1774, %v1776
        %v1778 = vrot.slane %v1764, %v1777
        %v1779 = vcombine.high %v1771, %v1771
        %v1780 = vcombine.high %v1778, %v1778
        %v1782 = vunpack.c.l.s4 1983009808
        %v1783 = vunpack.c.0.s8 %v1782
        %v1784 = vlaneseq
        %v1785 = vshrl.u32 %v1784, 7
        %v1786 = vsub.s32 %v1783, %v1785
        %v1787 = vrot.slane %v1549, %v1786
        %v1788 = vcombine.high %v1550, %v1550
        %v1790 = vunpack.c.l.s4 1983009808
        %v1791 = vunpack.c.0.s8 %v1790
        %v1792 = vlaneseq
        %v1793 = vshrl.u32 %v1792, 7
        %v1794 = vsub.s32 %v1791, %v1793
        %v1795 = vrot.slane %v1550, %v1794
        %v1797 = vunpack.c.l.s4 1983009808
        %v1798 = vunpack.c.0.s8 %v1797
        %v1799 = vlaneseq
        %v1800 = vshrl.u32 %v1799, 7
        %v1801 = vsub.s32 %v1798, %v1800
        %v1802 = vrot.slane %v1788, %v1801
        %v1803 = vcombine.high %v1795, %v1795
        %v1804 = vcombine.high %v1802, %v1802
        %v1806 = vunpack.c.l.s4 1983009808
        %v1807 = vunpack.c.0.s8 %v1806
        %v1808 = vlaneseq
        %v1809 = vshrl.u32 %v1808, 7
        %v1810 = vsub.s32 %v1807, %v1809
        %v1811 = vrot.slane %v1551, %v1810
        %v1812 = vlaneseq
        %v1813 = vshrl.u32 %v1812, 7
        %v1814 = vlaneseq
        %v1815 = vand.u32 %v1814, 127
        %v1816 = vmul.u32 %v1813, 2
        %v1817 = vadd.s32 %v1816, 20
        %v1818 = vadd.s32 %v1816, 40
        %v1819 = vadd.s32 %v1816, 60
        %vm1820 = vcmp.eq.s32.totalorder %v1815, %v1816
        %vm1821 = vcmp.eq.s32.totalorder %v1815, %v1817
        %vm1822 = vcmp.eq.s32.totalorder %v1815, %v1818
        %vm1823 = vcmp.eq.s32.totalorder %v1815, %v1819
        %v1824 = vsel %vm1820, 1, 0
        %v1825 = vsel %vm1821, 1, 0
        %v1826 = vsel %vm1822, 1, 0
        %v1827 = vsel %vm1823, 1, 0
        %v1828 = vcvt.s32.f32 %v1824
        %v1829 = vcvt.s32.f32 %v1825
        %v1830 = vcvt.s32.f32 %v1826
        %v1831 = vcvt.s32.f32 %v1827
        %v1836 = vcombine.low %v1828, %v1829
        %v1837 = vcombine.low %v1830, %v1831
        %v1838 = vcombine.low %v1579, %v1587
        %v1839 = vcombine.low %v1586, %v1588
        %v1841 = vunpack.c.l.s4 1983009808
        %v1842 = vunpack.c.0.s8 %v1841
        %v1843 = vlaneseq
        %v1844 = vshrl.u32 %v1843, 7
        %v1845 = vsub.s32 %v1842, %v1844
        %v1846 = vrot.slane %v1838, %v1845
        %v1848 = vunpack.c.l.s4 1983009808
        %v1849 = vunpack.c.0.s8 %v1848
        %v1850 = vlaneseq
        %v1851 = vshrl.u32 %v1850, 7
        %v1852 = vsub.s32 %v1849, %v1851
        %v1853 = vrot.slane %v1839, %v1852
        %v1854 = vcombine.low %v1846, %v1853
        %v1855 = vcombine.low %v1595, %v1603
        %v1856 = vcombine.low %v1611, %v1610
        %v1858 = vunpack.c.l.s4 1983009808
        %v1859 = vunpack.c.0.s8 %v1858
        %v1860 = vlaneseq
        %v1861 = vshrl.u32 %v1860, 7
        %v1862 = vsub.s32 %v1859, %v1861
        %v1863 = vrot.slane %v1855, %v1862
        %v1865 = vunpack.c.l.s4 1983009808
        %v1866 = vunpack.c.0.s8 %v1865
        %v1867 = vlaneseq
        %v1868 = vshrl.u32 %v1867, 7
        %v1869 = vsub.s32 %v1866, %v1868
        %v1870 = vrot.slane %v1856, %v1869
        %v1871 = vcombine.low %v1863, %v1870
        %v1872 = vcombine.low %v1612, %v1619
        %v1873 = vcombine.low %v1627, %v1635
        %v1875 = vunpack.c.l.s4 1983009808
        %v1876 = vunpack.c.0.s8 %v1875
        %v1877 = vlaneseq
        %v1878 = vshrl.u32 %v1877, 7
        %v1879 = vsub.s32 %v1876, %v1878
        %v1880 = vrot.slane %v1872, %v1879
        %v1882 = vunpack.c.l.s4 1983009808
        %v1883 = vunpack.c.0.s8 %v1882
        %v1884 = vlaneseq
        %v1885 = vshrl.u32 %v1884, 7
        %v1886 = vsub.s32 %v1883, %v1885
        %v1887 = vrot.slane %v1873, %v1886
        %v1888 = vcombine.low %v1880, %v1887
        %v1889 = vcombine.low %v1634, %v1636
        %v1890 = vcombine.low %v1643, %v1651
        %v1892 = vunpack.c.l.s4 1983009808
        %v1893 = vunpack.c.0.s8 %v1892
        %v1894 = vlaneseq
        %v1895 = vshrl.u32 %v1894, 7
        %v1896 = vsub.s32 %v1893, %v1895
        %v1897 = vrot.slane %v1889, %v1896
        %v1899 = vunpack.c.l.s4 1983009808
        %v1900 = vunpack.c.0.s8 %v1899
        %v1901 = vlaneseq
        %v1902 = vshrl.u32 %v1901, 7
        %v1903 = vsub.s32 %v1900, %v1902
        %v1904 = vrot.slane %v1890, %v1903
        %v1905 = vcombine.low %v1897, %v1904
        %v1906 = vcombine.low %v1659, %v1658
        %v1907 = vcombine.low %v1660, %v1667
        %v1909 = vunpack.c.l.s4 1983009808
        %v1910 = vunpack.c.0.s8 %v1909
        %v1911 = vlaneseq
        %v1912 = vshrl.u32 %v1911, 7
        %v1913 = vsub.s32 %v1910, %v1912
        %v1914 = vrot.slane %v1906, %v1913
        %v1916 = vunpack.c.l.s4 1983009808
        %v1917 = vunpack.c.0.s8 %v1916
        %v1918 = vlaneseq
        %v1919 = vshrl.u32 %v1918, 7
        %v1920 = vsub.s32 %v1917, %v1919
        %v1921 = vrot.slane %v1907, %v1920
        %v1922 = vcombine.low %v1914, %v1921
        %v1923 = vcombine.low %v1675, %v1683
        %v1924 = vcombine.low %v1682, %v1684
        %v1926 = vunpack.c.l.s4 1983009808
        %v1927 = vunpack.c.0.s8 %v1926
        %v1928 = vlaneseq
        %v1929 = vshrl.u32 %v1928, 7
        %v1930 = vsub.s32 %v1927, %v1929
        %v1931 = vrot.slane %v1923, %v1930
        %v1933 = vunpack.c.l.s4 1983009808
        %v1934 = vunpack.c.0.s8 %v1933
        %v1935 = vlaneseq
        %v1936 = vshrl.u32 %v1935, 7
        %v1937 = vsub.s32 %v1934, %v1936
        %v1938 = vrot.slane %v1924, %v1937
        %v1939 = vcombine.low %v1931, %v1938
        %v1940 = vcombine.low %v1691, %v1699
        %v1941 = vcombine.low %v1707, %v1706
        %v1943 = vunpack.c.l.s4 1983009808
        %v1944 = vunpack.c.0.s8 %v1943
        %v1945 = vlaneseq
        %v1946 = vshrl.u32 %v1945, 7
        %v1947 = vsub.s32 %v1944, %v1946
        %v1948 = vrot.slane %v1940, %v1947
        %v1950 = vunpack.c.l.s4 1983009808
        %v1951 = vunpack.c.0.s8 %v1950
        %v1952 = vlaneseq
        %v1953 = vshrl.u32 %v1952, 7
        %v1954 = vsub.s32 %v1951, %v1953
        %v1955 = vrot.slane %v1941, %v1954
        %v1956 = vcombine.low %v1948, %v1955
        %v1957 = vcombine.low %v1708, %v1715
        %v1958 = vcombine.low %v1723, %v1731
        %v1960 = vunpack.c.l.s4 1983009808
        %v1961 = vunpack.c.0.s8 %v1960
        %v1962 = vlaneseq
        %v1963 = vshrl.u32 %v1962, 7
        %v1964 = vsub.s32 %v1961, %v1963
        %v1965 = vrot.slane %v1957, %v1964
        %v1967 = vunpack.c.l.s4 1983009808
        %v1968 = vunpack.c.0.s8 %v1967
        %v1969 = vlaneseq
        %v1970 = vshrl.u32 %v1969, 7
        %v1971 = vsub.s32 %v1968, %v1970
        %v1972 = vrot.slane %v1958, %v1971
        %v1973 = vcombine.low %v1965, %v1972
        %v1974 = vcombine.low %v1730, %v1732
        %v1975 = vcombine.low %v1739, %v1747
        %v1977 = vunpack.c.l.s4 1983009808
        %v1978 = vunpack.c.0.s8 %v1977
        %v1979 = vlaneseq
        %v1980 = vshrl.u32 %v1979, 7
        %v1981 = vsub.s32 %v1978, %v1980
        %v1982 = vrot.slane %v1974, %v1981
        %v1984 = vunpack.c.l.s4 1983009808
        %v1985 = vunpack.c.0.s8 %v1984
        %v1986 = vlaneseq
        %v1987 = vshrl.u32 %v1986, 7
        %v1988 = vsub.s32 %v1985, %v1987
        %v1989 = vrot.slane %v1975, %v1988
        %v1990 = vcombine.low %v1982, %v1989
        %v1991 = vcombine.low %v1755, %v1754
        %v1992 = vcombine.low %v1756, %v1763
        %v1994 = vunpack.c.l.s4 1983009808
        %v1995 = vunpack.c.0.s8 %v1994
        %v1996 = vlaneseq
        %v1997 = vshrl.u32 %v1996, 7
        %v1998 = vsub.s32 %v1995, %v1997
        %v1999 = vrot.slane %v1991, %v1998
        %v2001 = vunpack.c.l.s4 1983009808
        %v2002 = vunpack.c.0.s8 %v2001
        %v2003 = vlaneseq
        %v2004 = vshrl.u32 %v2003, 7
        %v2005 = vsub.s32 %v2002, %v2004
        %v2006 = vrot.slane %v1992, %v2005
        %v2007 = vcombine.low %v1999, %v2006
        %v2008 = vcombine.low %v1771, %v1779
        %v2009 = vcombine.low %v1778, %v1780
        %v2011 = vunpack.c.l.s4 1983009808
        %v2012 = vunpack.c.0.s8 %v2011
        %v2013 = vlaneseq
        %v2014 = vshrl.u32 %v2013, 7
        %v2015 = vsub.s32 %v2012, %v2014
        %v2016 = vrot.slane %v2008, %v2015
        %v2018 = vunpack.c.l.s4 1983009808
        %v2019 = vunpack.c.0.s8 %v2018
        %v2020 = vlaneseq
        %v2021 = vshrl.u32 %v2020, 7
        %v2022 = vsub.s32 %v2019, %v2021
        %v2023 = vrot.slane %v2009, %v2022
        %v2024 = vcombine.low %v2016, %v2023
        %v2025 = vcombine.low %v1787, %v1795
        %v2026 = vcombine.low %v1803, %v1802
        %v2028 = vunpack.c.l.s4 1983009808
        %v2029 = vunpack.c.0.s8 %v2028
        %v2030 = vlaneseq
        %v2031 = vshrl.u32 %v2030, 7
        %v2032 = vsub.s32 %v2029, %v2031
        %v2033 = vrot.slane %v2025, %v2032
        %v2035 = vunpack.c.l.s4 1983009808
        %v2036 = vunpack.c.0.s8 %v2035
        %v2037 = vlaneseq
        %v2038 = vshrl.u32 %v2037, 7
        %v2039 = vsub.s32 %v2036, %v2038
        %v2040 = vrot.slane %v2026, %v2039
        %v2041 = vcombine.low %v2033, %v2040
        %v2042 = vcombine.low %v1804, %v1811
        %v2044 = vunpack.c.l.s4 1983009808
        %v2045 = vunpack.c.0.s8 %v2044
        %v2046 = vlaneseq
        %v2047 = vshrl.u32 %v2046, 7
        %v2048 = vsub.s32 %v2045, %v2047
        %v2049 = vrot.slane %v2042, %v2048
        %vm2062 = vcmask 818176
        %v2063 = vsel %vm2062, %v1836, 0
        %v2065 = vsel %vm2062, %v1837, 0
        %vm2067 = vcmask 1043456
        %v2068 = vsel %vm2067, %v2049, 0
        %2070 = vmatprep.subr.mxu0 0.0
        %2071 = vmatpush1.msra.mxu0 0.0
        %2072 = vmatprep.subr.mxu0 0.0
        %2073 = vmatpush1.msra.mxu0 0.0
        %2074 = vmatprep.subr.mxu0 0.0
        %2075 = vmatpush1.msra.mxu0 0.0
        %2076 = vmatprep.subr.mxu0 0.0
        %2077 = vmatpush1.msra.mxu0 %v2068
        %2078 = vmatprep.subr.mxu0 0.0
        %2079 = vmatpush1.msra.mxu0 %v2041
        %2080 = vmatprep.subr.mxu0 0.0
        %2081 = vmatpush1.msra.mxu0 %v2024
        %2082 = vmatprep.subr.mxu0 0.0
        %2083 = vmatpush1.msra.mxu0 %v2007
        %2084 = vmatprep.subr.mxu0 0.0
        %2085 = vmatpush1.msra.mxu0 %v1990
        %2086 = vmatprep.subr.mxu0 0.0
        %2087 = vmatpush1.msra.mxu0 %v1973
        %2088 = vmatprep.subr.mxu0 0.0
        %2089 = vmatpush1.msra.mxu0 %v1956
        %2090 = vmatprep.subr.mxu0 0.0
        %2091 = vmatpush1.msra.mxu0 %v1939
        %2092 = vmatprep.subr.mxu0 0.0
        %2093 = vmatpush1.msra.mxu0 %v1922
        %2094 = vmatprep.subr.mxu0 0.0
        %2095 = vmatpush1.msra.mxu0 %v1905
        %2096 = vmatprep.subr.mxu0 0.0
        %2097 = vmatpush1.msra.mxu0 %v1888
        %2098 = vmatprep.subr.mxu0 0.0
        %2099 = vmatpush1.msra.mxu0 %v1871
        %2100 = vmatprep.subr.mxu0 0.0
        %2101 = vmatpush1.msra.mxu0 %v1854
        %2102 = vmatprep.subr.mxu0 0.0
        %2103 = vmatpush2.msra.mxu0 0.0
        %2104 = vmatprep.subr.mxu0 0.0
        %2105 = vmatpush2.msra.mxu0 0.0
        %2106 = vmatprep.subr.mxu0 0.0
        %2107 = vmatpush2.msra.mxu0 0.0
        %2108 = vmatprep.subr.mxu0 0.0
        %2109 = vmatpush2.msra.mxu0 0.0
        %2110 = vmatprep.subr.mxu0 0.0
        %2111 = vmatpush2.msra.mxu0 0.0
        %2112 = vmatprep.subr.mxu0 0.0
        %2113 = vmatpush2.msra.mxu0 0.0
        %2114 = vmatprep.subr.mxu0 0.0
        %2115 = vmatpush2.msra.mxu0 0.0
        %2116 = vmatprep.subr.mxu0 0.0
        %2117 = vmatpush2.msra.mxu0 0.0
        %2118 = vmatprep.subr.mxu0 0.0
        %2119 = vmatpush2.msra.mxu0 0.0
        %2120 = vmatprep.subr.mxu0 0.0
        %2121 = vmatpush2.msra.mxu0 0.0
        %2122 = vmatprep.subr.mxu0 0.0
        %2123 = vmatpush2.msra.mxu0 0.0
        %2124 = vmatprep.subr.mxu0 0.0
        %2125 = vmatpush2.msra.mxu0 0.0
        %2126 = vmatprep.subr.mxu0 0.0
        %2127 = vmatpush2.msra.mxu0 0.0
        %2128 = vmatprep.subr.mxu0 0.0
        %2129 = vmatpush2.msra.mxu0 0.0
        %2130 = vmatprep.subr.mxu0 0.0
        %2131 = vmatpush2.msra.mxu0 0.0
        %2132 = vmatprep.subr.mxu0 0.0
        %2133 = vmatpush2.msra.mxu0 0.0
        %2134 = vmatprep.mubr.f32.mxu0 0.0
        %2135 = vmatmul.mubr.f32.gmra.mxu0 %v2063
        %v2136 = vpop.f32.mrf.mxu0
        %v2137 = vadd.f32 0.0, %v2136
        %v2138 = vpop.f32.mrf.mxu0
        %2139 = vmatprep.mubr.f32.mxu0 0.0
        %2140 = vmatmul.mubr.f32.gmra.mxu0 %v2065
        %v2141 = vpop.f32.mrf.mxu0
        %v2142 = vadd.f32 0.0, %v2141
        %v2143 = vpop.f32.mrf.mxu0
        %2144 = vdwg.mxu0
        %2145 = vst.msk [vmem:[#allocation8] sm:$0xff] %vm393, %v2137
        %2146 = vst.msk [vmem:[#allocation8 + $0x10] sm:$0xff] %vm393, %v2142
        %v2147 = vadd.s32 %v1816, 1
        %v2148 = vadd.s32 %v2147, 20
        %v2149 = vadd.s32 %v2147, 40
        %v2150 = vadd.s32 %v2147, 60
        %vm2151 = vcmp.eq.s32.totalorder %v1815, %v2147
        %vm2152 = vcmp.eq.s32.totalorder %v1815, %v2148
        %vm2153 = vcmp.eq.s32.totalorder %v1815, %v2149
        %vm2154 = vcmp.eq.s32.totalorder %v1815, %v2150
        %v2155 = vsel %vm2151, 1, 0
        %v2156 = vsel %vm2152, 1, 0
        %v2157 = vsel %vm2153, 1, 0
        %v2158 = vsel %vm2154, 1, 0
        %v2159 = vcvt.s32.f32 %v2155
        %v2160 = vcvt.s32.f32 %v2156
        %v2161 = vcvt.s32.f32 %v2157
        %v2162 = vcvt.s32.f32 %v2158
        %v2167 = vcombine.low %v2159, %v2160
        %v2168 = vcombine.low %v2161, %v2162
        %v2169 = vsel %vm2062, %v2167, 0
        %v2171 = vsel %vm2062, %v2168, 0
        %2173 = vmatprep.subr.mxu0 0.0
        %2174 = vmatpush1.msra.mxu0 0.0
        %2175 = vmatprep.subr.mxu0 0.0
        %2176 = vmatpush1.msra.mxu0 0.0
        %2177 = vmatprep.subr.mxu0 0.0
        %2178 = vmatpush1.msra.mxu0 0.0
        %2179 = vmatprep.subr.mxu0 0.0
        %2180 = vmatpush1.msra.mxu0 %v2068
        %2181 = vmatprep.subr.mxu0 0.0
        %2182 = vmatpush1.msra.mxu0 %v2041
        %2183 = vmatprep.subr.mxu0 0.0
        %2184 = vmatpush1.msra.mxu0 %v2024
        %2185 = vmatprep.subr.mxu0 0.0
        %2186 = vmatpush1.msra.mxu0 %v2007
        %2187 = vmatprep.subr.mxu0 0.0
        %2188 = vmatpush1.msra.mxu0 %v1990
        %2189 = vmatprep.subr.mxu0 0.0
        %2190 = vmatpush1.msra.mxu0 %v1973
        %2191 = vmatprep.subr.mxu0 0.0
        %2192 = vmatpush1.msra.mxu0 %v1956
        %2193 = vmatprep.subr.mxu0 0.0
        %2194 = vmatpush1.msra.mxu0 %v1939
        %2195 = vmatprep.subr.mxu0 0.0
        %2196 = vmatpush1.msra.mxu0 %v1922
        %2197 = vmatprep.subr.mxu0 0.0
        %2198 = vmatpush1.msra.mxu0 %v1905
        %2199 = vmatprep.subr.mxu0 0.0
        %2200 = vmatpush1.msra.mxu0 %v1888
        %2201 = vmatprep.subr.mxu0 0.0
        %2202 = vmatpush1.msra.mxu0 %v1871
        %2203 = vmatprep.subr.mxu0 0.0
        %2204 = vmatpush1.msra.mxu0 %v1854
        %2205 = vmatprep.subr.mxu0 0.0
        %2206 = vmatpush2.msra.mxu0 0.0
        %2207 = vmatprep.subr.mxu0 0.0
        %2208 = vmatpush2.msra.mxu0 0.0
        %2209 = vmatprep.subr.mxu0 0.0
        %2210 = vmatpush2.msra.mxu0 0.0
        %2211 = vmatprep.subr.mxu0 0.0
        %2212 = vmatpush2.msra.mxu0 0.0
        %2213 = vmatprep.subr.mxu0 0.0
        %2214 = vmatpush2.msra.mxu0 0.0
        %2215 = vmatprep.subr.mxu0 0.0
        %2216 = vmatpush2.msra.mxu0 0.0
        %2217 = vmatprep.subr.mxu0 0.0
        %2218 = vmatpush2.msra.mxu0 0.0
        %2219 = vmatprep.subr.mxu0 0.0
        %2220 = vmatpush2.msra.mxu0 0.0
        %2221 = vmatprep.subr.mxu0 0.0
        %2222 = vmatpush2.msra.mxu0 0.0
        %2223 = vmatprep.subr.mxu0 0.0
        %2224 = vmatpush2.msra.mxu0 0.0
        %2225 = vmatprep.subr.mxu0 0.0
        %2226 = vmatpush2.msra.mxu0 0.0
        %2227 = vmatprep.subr.mxu0 0.0
        %2228 = vmatpush2.msra.mxu0 0.0
        %2229 = vmatprep.subr.mxu0 0.0
        %2230 = vmatpush2.msra.mxu0 0.0
        %2231 = vmatprep.subr.mxu0 0.0
        %2232 = vmatpush2.msra.mxu0 0.0
        %2233 = vmatprep.subr.mxu0 0.0
        %2234 = vmatpush2.msra.mxu0 0.0
        %2235 = vmatprep.subr.mxu0 0.0
        %2236 = vmatpush2.msra.mxu0 0.0
        %2237 = vmatprep.mubr.f32.mxu0 0.0
        %2238 = vmatmul.mubr.f32.gmra.mxu0 %v2169
        %v2239 = vpop.f32.mrf.mxu0
        %v2240 = vadd.f32 0.0, %v2239
        %v2241 = vpop.f32.mrf.mxu0
        %2242 = vmatprep.mubr.f32.mxu0 0.0
        %2243 = vmatmul.mubr.f32.gmra.mxu0 %v2171
        %v2244 = vpop.f32.mrf.mxu0
        %v2245 = vadd.f32 0.0, %v2244
        %v2246 = vpop.f32.mrf.mxu0
        %2247 = vdwg.mxu0
        %2250 = vrot.lane.b32.xlu0 %v2240, 16
        %v2251 = vpop.permute.xlu0 %2250
        %2252 = vrot.lane.b32.xlu0 %v2245, 16
        %v2253 = vpop.permute.xlu0 %2252
        %2256 = vst.msk [vmem:[#allocation8] sm:$0xff] %vm442, %v2251
        %2257 = vst.msk [vmem:[#allocation8 + $0x10] sm:$0xff] %vm442, %v2253
        %v2258 = vadd.s32 %v1816, 2
        %v2259 = vadd.s32 %v2258, 20
        %v2260 = vadd.s32 %v2258, 40
        %v2261 = vadd.s32 %v2258, 60
        %vm2262 = vcmp.eq.s32.totalorder %v1815, %v2258
        %vm2263 = vcmp.eq.s32.totalorder %v1815, %v2259
        %vm2264 = vcmp.eq.s32.totalorder %v1815, %v2260
        %vm2265 = vcmp.eq.s32.totalorder %v1815, %v2261
        %v2266 = vsel %vm2262, 1, 0
        %v2267 = vsel %vm2263, 1, 0
        %v2268 = vsel %vm2264, 1, 0
        %v2269 = vsel %vm2265, 1, 0
        %v2270 = vcvt.s32.f32 %v2266
        %v2271 = vcvt.s32.f32 %v2267
        %v2272 = vcvt.s32.f32 %v2268
        %v2273 = vcvt.s32.f32 %v2269
        %v2278 = vcombine.low %v2270, %v2271
        %v2279 = vcombine.low %v2272, %v2273
        %v2280 = vsel %vm2062, %v2278, 0
        %v2282 = vsel %vm2062, %v2279, 0
        %2284 = vmatprep.subr.mxu0 0.0
        %2285 = vmatpush1.msra.mxu0 0.0
        %2286 = vmatprep.subr.mxu0 0.0
        %2287 = vmatpush1.msra.mxu0 0.0
        %2288 = vmatprep.subr.mxu0 0.0
        %2289 = vmatpush1.msra.mxu0 0.0
        %2290 = vmatprep.subr.mxu0 0.0
        %2291 = vmatpush1.msra.mxu0 %v2068
        %2292 = vmatprep.subr.mxu0 0.0
        %2293 = vmatpush1.msra.mxu0 %v2041
        %2294 = vmatprep.subr.mxu0 0.0
        %2295 = vmatpush1.msra.mxu0 %v2024
        %2296 = vmatprep.subr.mxu0 0.0
        %2297 = vmatpush1.msra.mxu0 %v2007
        %2298 = vmatprep.subr.mxu0 0.0
        %2299 = vmatpush1.msra.mxu0 %v1990
        %2300 = vmatprep.subr.mxu0 0.0
        %2301 = vmatpush1.msra.mxu0 %v1973
        %2302 = vmatprep.subr.mxu0 0.0
        %2303 = vmatpush1.msra.mxu0 %v1956
        %2304 = vmatprep.subr.mxu0 0.0
        %2305 = vmatpush1.msra.mxu0 %v1939
        %2306 = vmatprep.subr.mxu0 0.0
        %2307 = vmatpush1.msra.mxu0 %v1922
        %2308 = vmatprep.subr.mxu0 0.0
        %2309 = vmatpush1.msra.mxu0 %v1905
        %2310 = vmatprep.subr.mxu0 0.0
        %2311 = vmatpush1.msra.mxu0 %v1888
        %2312 = vmatprep.subr.mxu0 0.0
        %2313 = vmatpush1.msra.mxu0 %v1871
        %2314 = vmatprep.subr.mxu0 0.0
        %2315 = vmatpush1.msra.mxu0 %v1854
        %2316 = vmatprep.subr.mxu0 0.0
        %2317 = vmatpush2.msra.mxu0 0.0
        %2318 = vmatprep.subr.mxu0 0.0
        %2319 = vmatpush2.msra.mxu0 0.0
        %2320 = vmatprep.subr.mxu0 0.0
        %2321 = vmatpush2.msra.mxu0 0.0
        %2322 = vmatprep.subr.mxu0 0.0
        %2323 = vmatpush2.msra.mxu0 0.0
        %2324 = vmatprep.subr.mxu0 0.0
        %2325 = vmatpush2.msra.mxu0 0.0
        %2326 = vmatprep.subr.mxu0 0.0
        %2327 = vmatpush2.msra.mxu0 0.0
        %2328 = vmatprep.subr.mxu0 0.0
        %2329 = vmatpush2.msra.mxu0 0.0
        %2330 = vmatprep.subr.mxu0 0.0
        %2331 = vmatpush2.msra.mxu0 0.0
        %2332 = vmatprep.subr.mxu0 0.0
        %2333 = vmatpush2.msra.mxu0 0.0
        %2334 = vmatprep.subr.mxu0 0.0
        %2335 = vmatpush2.msra.mxu0 0.0
        %2336 = vmatprep.subr.mxu0 0.0
        %2337 = vmatpush2.msra.mxu0 0.0
        %2338 = vmatprep.subr.mxu0 0.0
        %2339 = vmatpush2.msra.mxu0 0.0
        %2340 = vmatprep.subr.mxu0 0.0
        %2341 = vmatpush2.msra.mxu0 0.0
        %2342 = vmatprep.subr.mxu0 0.0
        %2343 = vmatpush2.msra.mxu0 0.0
        %2344 = vmatprep.subr.mxu0 0.0
        %2345 = vmatpush2.msra.mxu0 0.0
        %2346 = vmatprep.subr.mxu0 0.0
        %2347 = vmatpush2.msra.mxu0 0.0
        %2348 = vmatprep.mubr.f32.mxu0 0.0
        %2349 = vmatmul.mubr.f32.gmra.mxu0 %v2280
        %v2350 = vpop.f32.mrf.mxu0
        %v2351 = vadd.f32 0.0, %v2350
        %v2352 = vpop.f32.mrf.mxu0
        %2353 = vmatprep.mubr.f32.mxu0 0.0
        %2354 = vmatmul.mubr.f32.gmra.mxu0 %v2282
        %v2355 = vpop.f32.mrf.mxu0
        %v2356 = vadd.f32 0.0, %v2355
        %v2357 = vpop.f32.mrf.mxu0
        %2358 = vdwg.mxu0
        %2361 = vrot.lane.b32.xlu0 %v2351, 32
        %v2362 = vpop.permute.xlu0 %2361
        %2363 = vrot.lane.b32.xlu0 %v2356, 32
        %v2364 = vpop.permute.xlu0 %2363
        %2367 = vst.msk [vmem:[#allocation8] sm:$0xff] %vm492, %v2362
        %2368 = vst.msk [vmem:[#allocation8 + $0x10] sm:$0xff] %vm492, %v2364
        %v2369 = vadd.s32 %v1816, 10
        %v2370 = vadd.s32 %v1816, 30
        %v2371 = vadd.s32 %v1816, 50
        %v2372 = vadd.s32 %v1816, 70
        %vm2373 = vcmp.eq.s32.totalorder %v1815, %v2369
        %vm2374 = vcmp.eq.s32.totalorder %v1815, %v2370
        %vm2375 = vcmp.eq.s32.totalorder %v1815, %v2371
        %vm2376 = vcmp.eq.s32.totalorder %v1815, %v2372
        %v2377 = vsel %vm2373, 1, 0
        %v2378 = vsel %vm2374, 1, 0
        %v2379 = vsel %vm2375, 1, 0
        %v2380 = vsel %vm2376, 1, 0
        %v2381 = vcvt.s32.f32 %v2377
        %v2382 = vcvt.s32.f32 %v2378
        %v2383 = vcvt.s32.f32 %v2379
        %v2384 = vcvt.s32.f32 %v2380
        %v2389 = vcombine.low %v2381, %v2382
        %v2390 = vcombine.low %v2383, %v2384
        %v2391 = vsel %vm2062, %v2389, 0
        %v2393 = vsel %vm2062, %v2390, 0
        %2395 = vmatprep.subr.mxu0 0.0
        %2396 = vmatpush1.msra.mxu0 0.0
        %2397 = vmatprep.subr.mxu0 0.0
        %2398 = vmatpush1.msra.mxu0 0.0
        %2399 = vmatprep.subr.mxu0 0.0
        %2400 = vmatpush1.msra.mxu0 0.0
        %2401 = vmatprep.subr.mxu0 0.0
        %2402 = vmatpush1.msra.mxu0 %v2068
        %2403 = vmatprep.subr.mxu0 0.0
        %2404 = vmatpush1.msra.mxu0 %v2041
        %2405 = vmatprep.subr.mxu0 0.0
        %2406 = vmatpush1.msra.mxu0 %v2024
        %2407 = vmatprep.subr.mxu0 0.0
        %2408 = vmatpush1.msra.mxu0 %v2007
        %2409 = vmatprep.subr.mxu0 0.0
        %2410 = vmatpush1.msra.mxu0 %v1990
        %2411 = vmatprep.subr.mxu0 0.0
        %2412 = vmatpush1.msra.mxu0 %v1973
        %2413 = vmatprep.subr.mxu0 0.0
        %2414 = vmatpush1.msra.mxu0 %v1956
        %2415 = vmatprep.subr.mxu0 0.0
        %2416 = vmatpush1.msra.mxu0 %v1939
        %2417 = vmatprep.subr.mxu0 0.0
        %2418 = vmatpush1.msra.mxu0 %v1922
        %2419 = vmatprep.subr.mxu0 0.0
        %2420 = vmatpush1.msra.mxu0 %v1905
        %2421 = vmatprep.subr.mxu0 0.0
        %2422 = vmatpush1.msra.mxu0 %v1888
        %2423 = vmatprep.subr.mxu0 0.0
        %2424 = vmatpush1.msra.mxu0 %v1871
        %2425 = vmatprep.subr.mxu0 0.0
        %2426 = vmatpush1.msra.mxu0 %v1854
        %2427 = vmatprep.subr.mxu0 0.0
        %2428 = vmatpush2.msra.mxu0 0.0
        %2429 = vmatprep.subr.mxu0 0.0
        %2430 = vmatpush2.msra.mxu0 0.0
        %2431 = vmatprep.subr.mxu0 0.0
        %2432 = vmatpush2.msra.mxu0 0.0
        %2433 = vmatprep.subr.mxu0 0.0
        %2434 = vmatpush2.msra.mxu0 0.0
        %2435 = vmatprep.subr.mxu0 0.0
        %2436 = vmatpush2.msra.mxu0 0.0
        %2437 = vmatprep.subr.mxu0 0.0
        %2438 = vmatpush2.msra.mxu0 0.0
        %2439 = vmatprep.subr.mxu0 0.0
        %2440 = vmatpush2.msra.mxu0 0.0
        %2441 = vmatprep.subr.mxu0 0.0
        %2442 = vmatpush2.msra.mxu0 0.0
        %2443 = vmatprep.subr.mxu0 0.0
        %2444 = vmatpush2.msra.mxu0 0.0
        %2445 = vmatprep.subr.mxu0 0.0
        %2446 = vmatpush2.msra.mxu0 0.0
        %2447 = vmatprep.subr.mxu0 0.0
        %2448 = vmatpush2.msra.mxu0 0.0
        %2449 = vmatprep.subr.mxu0 0.0
        %2450 = vmatpush2.msra.mxu0 0.0
        %2451 = vmatprep.subr.mxu0 0.0
        %2452 = vmatpush2.msra.mxu0 0.0
        %2453 = vmatprep.subr.mxu0 0.0
        %2454 = vmatpush2.msra.mxu0 0.0
        %2455 = vmatprep.subr.mxu0 0.0
        %2456 = vmatpush2.msra.mxu0 0.0
        %2457 = vmatprep.subr.mxu0 0.0
        %2458 = vmatpush2.msra.mxu0 0.0
        %2459 = vmatprep.mubr.f32.mxu0 0.0
        %2460 = vmatmul.mubr.f32.gmra.mxu0 %v2391
        %v2461 = vpop.f32.mrf.mxu0
        %v2462 = vadd.f32 0.0, %v2461
        %v2463 = vpop.f32.mrf.mxu0
        %2464 = vmatprep.mubr.f32.mxu0 0.0
        %2465 = vmatmul.mubr.f32.gmra.mxu0 %v2393
        %v2466 = vpop.f32.mrf.mxu0
        %v2467 = vadd.f32 0.0, %v2466
        %v2468 = vpop.f32.mrf.mxu0
        %2469 = vdwg.mxu0
        %2472 = vrot.lane.b32.xlu0 %v2462, 48
        %v2473 = vpop.permute.xlu0 %2472
        %2474 = vrot.lane.b32.xlu0 %v2467, 48
        %v2475 = vpop.permute.xlu0 %2474
        %2478 = vst.msk [vmem:[#allocation8] sm:$0xff] %vm541, %v2473
        %2479 = vst.msk [vmem:[#allocation8 + $0x10] sm:$0xff] %vm541, %v2475
        %v2480 = vadd.s32 %v2147, 10
        %v2481 = vadd.s32 %v2147, 30
        %v2482 = vadd.s32 %v2147, 50
        %v2483 = vadd.s32 %v2147, 70
        %vm2484 = vcmp.eq.s32.totalorder %v1815, %v2480
        %vm2485 = vcmp.eq.s32.totalorder %v1815, %v2481
        %vm2486 = vcmp.eq.s32.totalorder %v1815, %v2482
        %vm2487 = vcmp.eq.s32.totalorder %v1815, %v2483
        %v2488 = vsel %vm2484, 1, 0
        %v2489 = vsel %vm2485, 1, 0
        %v2490 = vsel %vm2486, 1, 0
        %v2491 = vsel %vm2487, 1, 0
        %v2492 = vcvt.s32.f32 %v2488
        %v2493 = vcvt.s32.f32 %v2489
        %v2494 = vcvt.s32.f32 %v2490
        %v2495 = vcvt.s32.f32 %v2491
        %v2500 = vcombine.low %v2492, %v2493
        %v2501 = vcombine.low %v2494, %v2495
        %v2502 = vsel %vm2062, %v2500, 0
        %v2504 = vsel %vm2062, %v2501, 0
        %2506 = vmatprep.subr.mxu0 0.0
        %2507 = vmatpush1.msra.mxu0 0.0
        %2508 = vmatprep.subr.mxu0 0.0
        %2509 = vmatpush1.msra.mxu0 0.0
        %2510 = vmatprep.subr.mxu0 0.0
        %2511 = vmatpush1.msra.mxu0 0.0
        %2512 = vmatprep.subr.mxu0 0.0
        %2513 = vmatpush1.msra.mxu0 %v2068
        %2514 = vmatprep.subr.mxu0 0.0
        %2515 = vmatpush1.msra.mxu0 %v2041
        %2516 = vmatprep.subr.mxu0 0.0
        %2517 = vmatpush1.msra.mxu0 %v2024
        %2518 = vmatprep.subr.mxu0 0.0
        %2519 = vmatpush1.msra.mxu0 %v2007
        %2520 = vmatprep.subr.mxu0 0.0
        %2521 = vmatpush1.msra.mxu0 %v1990
        %2522 = vmatprep.subr.mxu0 0.0
        %2523 = vmatpush1.msra.mxu0 %v1973
        %2524 = vmatprep.subr.mxu0 0.0
        %2525 = vmatpush1.msra.mxu0 %v1956
        %2526 = vmatprep.subr.mxu0 0.0
        %2527 = vmatpush1.msra.mxu0 %v1939
        %2528 = vmatprep.subr.mxu0 0.0
        %2529 = vmatpush1.msra.mxu0 %v1922
        %2530 = vmatprep.subr.mxu0 0.0
        %2531 = vmatpush1.msra.mxu0 %v1905
        %2532 = vmatprep.subr.mxu0 0.0
        %2533 = vmatpush1.msra.mxu0 %v1888
        %2534 = vmatprep.subr.mxu0 0.0
        %2535 = vmatpush1.msra.mxu0 %v1871
        %2536 = vmatprep.subr.mxu0 0.0
        %2537 = vmatpush1.msra.mxu0 %v1854
        %2538 = vmatprep.subr.mxu0 0.0
        %2539 = vmatpush2.msra.mxu0 0.0
        %2540 = vmatprep.subr.mxu0 0.0
        %2541 = vmatpush2.msra.mxu0 0.0
        %2542 = vmatprep.subr.mxu0 0.0
        %2543 = vmatpush2.msra.mxu0 0.0
        %2544 = vmatprep.subr.mxu0 0.0
        %2545 = vmatpush2.msra.mxu0 0.0
        %2546 = vmatprep.subr.mxu0 0.0
        %2547 = vmatpush2.msra.mxu0 0.0
        %2548 = vmatprep.subr.mxu0 0.0
        %2549 = vmatpush2.msra.mxu0 0.0
        %2550 = vmatprep.subr.mxu0 0.0
        %2551 = vmatpush2.msra.mxu0 0.0
        %2552 = vmatprep.subr.mxu0 0.0
        %2553 = vmatpush2.msra.mxu0 0.0
        %2554 = vmatprep.subr.mxu0 0.0
        %2555 = vmatpush2.msra.mxu0 0.0
        %2556 = vmatprep.subr.mxu0 0.0
        %2557 = vmatpush2.msra.mxu0 0.0
        %2558 = vmatprep.subr.mxu0 0.0
        %2559 = vmatpush2.msra.mxu0 0.0
        %2560 = vmatprep.subr.mxu0 0.0
        %2561 = vmatpush2.msra.mxu0 0.0
        %2562 = vmatprep.subr.mxu0 0.0
        %2563 = vmatpush2.msra.mxu0 0.0
        %2564 = vmatprep.subr.mxu0 0.0
        %2565 = vmatpush2.msra.mxu0 0.0
        %2566 = vmatprep.subr.mxu0 0.0
        %2567 = vmatpush2.msra.mxu0 0.0
        %2568 = vmatprep.subr.mxu0 0.0
        %2569 = vmatpush2.msra.mxu0 0.0
        %2570 = vmatprep.mubr.f32.mxu0 0.0
        %2571 = vmatmul.mubr.f32.gmra.mxu0 %v2502
        %v2572 = vpop.f32.mrf.mxu0
        %v2573 = vadd.f32 0.0, %v2572
        %v2574 = vpop.f32.mrf.mxu0
        %2575 = vmatprep.mubr.f32.mxu0 0.0
        %2576 = vmatmul.mubr.f32.gmra.mxu0 %v2504
        %v2577 = vpop.f32.mrf.mxu0
        %v2578 = vadd.f32 0.0, %v2577
        %v2579 = vpop.f32.mrf.mxu0
        %2580 = vdwg.mxu0
        %2583 = vrot.lane.b32.xlu0 %v2573, 64
        %v2584 = vpop.permute.xlu0 %2583
        %2585 = vrot.lane.b32.xlu0 %v2578, 64
        %v2586 = vpop.permute.xlu0 %2585
        %vm2589 = vcmask 654848
        %2590 = vst.msk [vmem:[#allocation8] sm:$0xff] %vm2589, %v2584
        %2591 = vst.msk [vmem:[#allocation8 + $0x10] sm:$0xff] %vm2589, %v2586
        %v2592 = vadd.s32 %v2258, 10
        %v2593 = vadd.s32 %v2258, 30
        %v2594 = vadd.s32 %v2258, 50
        %v2595 = vadd.s32 %v2258, 70
        %vm2596 = vcmp.eq.s32.totalorder %v1815, %v2592
        %vm2597 = vcmp.eq.s32.totalorder %v1815, %v2593
        %vm2598 = vcmp.eq.s32.totalorder %v1815, %v2594
        %vm2599 = vcmp.eq.s32.totalorder %v1815, %v2595
        %v2600 = vsel %vm2596, 1, 0
        %v2601 = vsel %vm2597, 1, 0
        %v2602 = vsel %vm2598, 1, 0
        %v2603 = vsel %vm2599, 1, 0
        %v2604 = vcvt.s32.f32 %v2600
        %v2605 = vcvt.s32.f32 %v2601
        %v2606 = vcvt.s32.f32 %v2602
        %v2607 = vcvt.s32.f32 %v2603
        %v2612 = vcombine.low %v2604, %v2605
        %v2613 = vcombine.low %v2606, %v2607
        %v2614 = vsel %vm2062, %v2612, 0
        %v2616 = vsel %vm2062, %v2613, 0
        %2618 = vmatprep.subr.mxu0 0.0
        %2619 = vmatpush1.msra.mxu0 0.0
        %2620 = vmatprep.subr.mxu0 0.0
        %2621 = vmatpush1.msra.mxu0 0.0
        %2622 = vmatprep.subr.mxu0 0.0
        %2623 = vmatpush1.msra.mxu0 0.0
        %2624 = vmatprep.subr.mxu0 0.0
        %2625 = vmatpush1.msra.mxu0 %v2068
        %2626 = vmatprep.subr.mxu0 0.0
        %2627 = vmatpush1.msra.mxu0 %v2041
        %2628 = vmatprep.subr.mxu0 0.0
        %2629 = vmatpush1.msra.mxu0 %v2024
        %2630 = vmatprep.subr.mxu0 0.0
        %2631 = vmatpush1.msra.mxu0 %v2007
        %2632 = vmatprep.subr.mxu0 0.0
        %2633 = vmatpush1.msra.mxu0 %v1990
        %2634 = vmatprep.subr.mxu0 0.0
        %2635 = vmatpush1.msra.mxu0 %v1973
        %2636 = vmatprep.subr.mxu0 0.0
        %2637 = vmatpush1.msra.mxu0 %v1956
        %2638 = vmatprep.subr.mxu0 0.0
        %2639 = vmatpush1.msra.mxu0 %v1939
        %2640 = vmatprep.subr.mxu0 0.0
        %2641 = vmatpush1.msra.mxu0 %v1922
        %2642 = vmatprep.subr.mxu0 0.0
        %2643 = vmatpush1.msra.mxu0 %v1905
        %2644 = vmatprep.subr.mxu0 0.0
        %2645 = vmatpush1.msra.mxu0 %v1888
        %2646 = vmatprep.subr.mxu0 0.0
        %2647 = vmatpush1.msra.mxu0 %v1871
        %2648 = vmatprep.subr.mxu0 0.0
        %2649 = vmatpush1.msra.mxu0 %v1854
        %2650 = vmatprep.subr.mxu0 0.0
        %2651 = vmatpush2.msra.mxu0 0.0
        %2652 = vmatprep.subr.mxu0 0.0
        %2653 = vmatpush2.msra.mxu0 0.0
        %2654 = vmatprep.subr.mxu0 0.0
        %2655 = vmatpush2.msra.mxu0 0.0
        %2656 = vmatprep.subr.mxu0 0.0
        %2657 = vmatpush2.msra.mxu0 0.0
        %2658 = vmatprep.subr.mxu0 0.0
        %2659 = vmatpush2.msra.mxu0 0.0
        %2660 = vmatprep.subr.mxu0 0.0
        %2661 = vmatpush2.msra.mxu0 0.0
        %2662 = vmatprep.subr.mxu0 0.0
        %2663 = vmatpush2.msra.mxu0 0.0
        %2664 = vmatprep.subr.mxu0 0.0
        %2665 = vmatpush2.msra.mxu0 0.0
        %2666 = vmatprep.subr.mxu0 0.0
        %2667 = vmatpush2.msra.mxu0 0.0
        %2668 = vmatprep.subr.mxu0 0.0
        %2669 = vmatpush2.msra.mxu0 0.0
        %2670 = vmatprep.subr.mxu0 0.0
        %2671 = vmatpush2.msra.mxu0 0.0
        %2672 = vmatprep.subr.mxu0 0.0
        %2673 = vmatpush2.msra.mxu0 0.0
        %2674 = vmatprep.subr.mxu0 0.0
        %2675 = vmatpush2.msra.mxu0 0.0
        %2676 = vmatprep.subr.mxu0 0.0
        %2677 = vmatpush2.msra.mxu0 0.0
        %2678 = vmatprep.subr.mxu0 0.0
        %2679 = vmatpush2.msra.mxu0 0.0
        %2680 = vmatprep.subr.mxu0 0.0
        %2681 = vmatpush2.msra.mxu0 0.0
        %2682 = vmatprep.mubr.f32.mxu0 0.0
        %2683 = vmatmul.mubr.f32.gmra.mxu0 %v2614
        %v2684 = vpop.f32.mrf.mxu0
        %v2685 = vadd.f32 0.0, %v2684
        %v2686 = vpop.f32.mrf.mxu0
        %2687 = vmatprep.mubr.f32.mxu0 0.0
        %2688 = vmatmul.mubr.f32.gmra.mxu0 %v2616
        %v2689 = vpop.f32.mrf.mxu0
        %v2690 = vadd.f32 0.0, %v2689
        %v2691 = vpop.f32.mrf.mxu0
        %2692 = vdwg.mxu0
        %2695 = vrot.lane.b32.xlu0 %v2685, 80
        %v2696 = vpop.permute.xlu0 %2695
        %2697 = vrot.lane.b32.xlu0 %v2690, 80
        %v2698 = vpop.permute.xlu0 %2697
        %vm2701 = vcmask 786048
        %2702 = vst.msk [vmem:[#allocation8] sm:$0xff] %vm2701, %v2696
        %2703 = vst.msk [vmem:[#allocation8 + $0x10] sm:$0xff] %vm2701, %v2698
        %v2704 = vadd.s32 %v1816, 80
        %vm2705 = vcmp.eq.s32.totalorder %v1815, %v2704
        %v2706 = vsel %vm2705, 1, 0
        %v2707 = vcvt.s32.f32 %v2706
        %v2709 = vcombine.low %v1829, %v1830
        %v2710 = vcombine.low %v1831, %v2707
        %v2711 = vsel %vm2062, %v2709, 0
        %v2713 = vsel %vm2062, %v2710, 0
        %2715 = vmatprep.subr.mxu0 0.0
        %2716 = vmatpush1.msra.mxu0 0.0
        %2717 = vmatprep.subr.mxu0 0.0
        %2718 = vmatpush1.msra.mxu0 0.0
        %2719 = vmatprep.subr.mxu0 0.0
        %2720 = vmatpush1.msra.mxu0 0.0
        %2721 = vmatprep.subr.mxu0 0.0
        %2722 = vmatpush1.msra.mxu0 %v2068
        %2723 = vmatprep.subr.mxu0 0.0
        %2724 = vmatpush1.msra.mxu0 %v2041
        %2725 = vmatprep.subr.mxu0 0.0
        %2726 = vmatpush1.msra.mxu0 %v2024
        %2727 = vmatprep.subr.mxu0 0.0
        %2728 = vmatpush1.msra.mxu0 %v2007
        %2729 = vmatprep.subr.mxu0 0.0
        %2730 = vmatpush1.msra.mxu0 %v1990
        %2731 = vmatprep.subr.mxu0 0.0
        %2732 = vmatpush1.msra.mxu0 %v1973
        %2733 = vmatprep.subr.mxu0 0.0
        %2734 = vmatpush1.msra.mxu0 %v1956
        %2735 = vmatprep.subr.mxu0 0.0
        %2736 = vmatpush1.msra.mxu0 %v1939
        %2737 = vmatprep.subr.mxu0 0.0
        %2738 = vmatpush1.msra.mxu0 %v1922
        %2739 = vmatprep.subr.mxu0 0.0
        %2740 = vmatpush1.msra.mxu0 %v1905
        %2741 = vmatprep.subr.mxu0 0.0
        %2742 = vmatpush1.msra.mxu0 %v1888
        %2743 = vmatprep.subr.mxu0 0.0
        %2744 = vmatpush1.msra.mxu0 %v1871
        %2745 = vmatprep.subr.mxu0 0.0
        %2746 = vmatpush1.msra.mxu0 %v1854
        %2747 = vmatprep.subr.mxu0 0.0
        %2748 = vmatpush2.msra.mxu0 0.0
        %2749 = vmatprep.subr.mxu0 0.0
        %2750 = vmatpush2.msra.mxu0 0.0
        %2751 = vmatprep.subr.mxu0 0.0
        %2752 = vmatpush2.msra.mxu0 0.0
        %2753 = vmatprep.subr.mxu0 0.0
        %2754 = vmatpush2.msra.mxu0 0.0
        %2755 = vmatprep.subr.mxu0 0.0
        %2756 = vmatpush2.msra.mxu0 0.0
        %2757 = vmatprep.subr.mxu0 0.0
        %2758 = vmatpush2.msra.mxu0 0.0
        %2759 = vmatprep.subr.mxu0 0.0
        %2760 = vmatpush2.msra.mxu0 0.0
        %2761 = vmatprep.subr.mxu0 0.0
        %2762 = vmatpush2.msra.mxu0 0.0
        %2763 = vmatprep.subr.mxu0 0.0
        %2764 = vmatpush2.msra.mxu0 0.0
        %2765 = vmatprep.subr.mxu0 0.0
        %2766 = vmatpush2.msra.mxu0 0.0
        %2767 = vmatprep.subr.mxu0 0.0
        %2768 = vmatpush2.msra.mxu0 0.0
        %2769 = vmatprep.subr.mxu0 0.0
        %2770 = vmatpush2.msra.mxu0 0.0
        %2771 = vmatprep.subr.mxu0 0.0
        %2772 = vmatpush2.msra.mxu0 0.0
        %2773 = vmatprep.subr.mxu0 0.0
        %2774 = vmatpush2.msra.mxu0 0.0
        %2775 = vmatprep.subr.mxu0 0.0
        %2776 = vmatpush2.msra.mxu0 0.0
        %2777 = vmatprep.subr.mxu0 0.0
        %2778 = vmatpush2.msra.mxu0 0.0
        %2779 = vmatprep.mubr.f32.mxu0 0.0
        %2780 = vmatmul.mubr.f32.gmra.mxu0 %v2711
        %v2781 = vpop.f32.mrf.mxu0
        %v2782 = vadd.f32 0.0, %v2781
        %v2783 = vpop.f32.mrf.mxu0
        %2784 = vmatprep.mubr.f32.mxu0 0.0
        %2785 = vmatmul.mubr.f32.gmra.mxu0 %v2713
        %v2786 = vpop.f32.mrf.mxu0
        %v2787 = vadd.f32 0.0, %v2786
        %v2788 = vpop.f32.mrf.mxu0
        %2789 = vdwg.mxu0
        %2792 = vrot.lane.b32.xlu0 %v2782, 96
        %v2793 = vpop.permute.xlu0 %2792
        %2794 = vrot.lane.b32.xlu0 %v2787, 96
        %v2795 = vpop.permute.xlu0 %2794
        %vm2798 = vcmask 917248
        %2799 = vst.msk [vmem:[#allocation8] sm:$0xff] %vm2798, %v2793
        %2800 = vst.msk [vmem:[#allocation8 + $0x10] sm:$0xff] %vm2798, %v2795
        %v2801 = vadd.s32 %v2147, 80
        %vm2802 = vcmp.eq.s32.totalorder %v1815, %v2801
        %v2803 = vsel %vm2802, 1, 0
        %v2804 = vcvt.s32.f32 %v2803
        %v2806 = vcombine.low %v2160, %v2161
        %v2807 = vcombine.low %v2162, %v2804
        %v2808 = vsel %vm2062, %v2806, 0
        %v2810 = vsel %vm2062, %v2807, 0
        %2812 = vmatprep.subr.mxu0 0.0
        %2813 = vmatpush1.msra.mxu0 0.0
        %2814 = vmatprep.subr.mxu0 0.0
        %2815 = vmatpush1.msra.mxu0 0.0
        %2816 = vmatprep.subr.mxu0 0.0
        %2817 = vmatpush1.msra.mxu0 0.0
        %2818 = vmatprep.subr.mxu0 0.0
        %2819 = vmatpush1.msra.mxu0 %v2068
        %2820 = vmatprep.subr.mxu0 0.0
        %2821 = vmatpush1.msra.mxu0 %v2041
        %2822 = vmatprep.subr.mxu0 0.0
        %2823 = vmatpush1.msra.mxu0 %v2024
        %2824 = vmatprep.subr.mxu0 0.0
        %2825 = vmatpush1.msra.mxu0 %v2007
        %2826 = vmatprep.subr.mxu0 0.0
        %2827 = vmatpush1.msra.mxu0 %v1990
        %2828 = vmatprep.subr.mxu0 0.0
        %2829 = vmatpush1.msra.mxu0 %v1973
        %2830 = vmatprep.subr.mxu0 0.0
        %2831 = vmatpush1.msra.mxu0 %v1956
        %2832 = vmatprep.subr.mxu0 0.0
        %2833 = vmatpush1.msra.mxu0 %v1939
        %2834 = vmatprep.subr.mxu0 0.0
        %2835 = vmatpush1.msra.mxu0 %v1922
        %2836 = vmatprep.subr.mxu0 0.0
        %2837 = vmatpush1.msra.mxu0 %v1905
        %2838 = vmatprep.subr.mxu0 0.0
        %2839 = vmatpush1.msra.mxu0 %v1888
        %2840 = vmatprep.subr.mxu0 0.0
        %2841 = vmatpush1.msra.mxu0 %v1871
        %2842 = vmatprep.subr.mxu0 0.0
        %2843 = vmatpush1.msra.mxu0 %v1854
        %2844 = vmatprep.subr.mxu0 0.0
        %2845 = vmatpush2.msra.mxu0 0.0
        %2846 = vmatprep.subr.mxu0 0.0
        %2847 = vmatpush2.msra.mxu0 0.0
        %2848 = vmatprep.subr.mxu0 0.0
        %2849 = vmatpush2.msra.mxu0 0.0
        %2850 = vmatprep.subr.mxu0 0.0
        %2851 = vmatpush2.msra.mxu0 0.0
        %2852 = vmatprep.subr.mxu0 0.0
        %2853 = vmatpush2.msra.mxu0 0.0
        %2854 = vmatprep.subr.mxu0 0.0
        %2855 = vmatpush2.msra.mxu0 0.0
        %2856 = vmatprep.subr.mxu0 0.0
        %2857 = vmatpush2.msra.mxu0 0.0
        %2858 = vmatprep.subr.mxu0 0.0
        %2859 = vmatpush2.msra.mxu0 0.0
        %2860 = vmatprep.subr.mxu0 0.0
        %2861 = vmatpush2.msra.mxu0 0.0
        %2862 = vmatprep.subr.mxu0 0.0
        %2863 = vmatpush2.msra.mxu0 0.0
        %2864 = vmatprep.subr.mxu0 0.0
        %2865 = vmatpush2.msra.mxu0 0.0
        %2866 = vmatprep.subr.mxu0 0.0
        %2867 = vmatpush2.msra.mxu0 0.0
        %2868 = vmatprep.subr.mxu0 0.0
        %2869 = vmatpush2.msra.mxu0 0.0
        %2870 = vmatprep.subr.mxu0 0.0
        %2871 = vmatpush2.msra.mxu0 0.0
        %2872 = vmatprep.subr.mxu0 0.0
        %2873 = vmatpush2.msra.mxu0 0.0
        %2874 = vmatprep.subr.mxu0 0.0
        %2875 = vmatpush2.msra.mxu0 0.0
        %2876 = vmatprep.mubr.f32.mxu0 0.0
        %2877 = vmatmul.mubr.f32.gmra.mxu0 %v2808
        %v2878 = vpop.f32.mrf.mxu0
        %v2879 = vadd.f32 0.0, %v2878
        %v2880 = vpop.f32.mrf.mxu0
        %2881 = vmatprep.mubr.f32.mxu0 0.0
        %2882 = vmatmul.mubr.f32.gmra.mxu0 %v2810
        %v2883 = vpop.f32.mrf.mxu0
        %v2884 = vadd.f32 0.0, %v2883
        %v2885 = vpop.f32.mrf.mxu0
        %2886 = vdwg.mxu0
        %2889 = vrot.lane.b32.xlu0 %v2879, 112
        %v2890 = vpop.permute.xlu0 %2889
        %2891 = vrot.lane.b32.xlu0 %v2884, 112
        %v2892 = vpop.permute.xlu0 %2891
        %vm2895 = vcmask 1048448
        %2896 = vst.msk [vmem:[#allocation8] sm:$0xff] %vm2895, %v2890
        %2897 = vst.msk [vmem:[#allocation8 + $0x10] sm:$0xff] %vm2895, %v2892
        %v2898 = vadd.s32 %v2258, 80
        %vm2899 = vcmp.eq.s32.totalorder %v1815, %v2898
        %v2900 = vsel %vm2899, 1, 0
        %v2901 = vcvt.s32.f32 %v2900
        %v2903 = vcombine.low %v2271, %v2272
        %v2904 = vcombine.low %v2273, %v2901
        %v2905 = vsel %vm2062, %v2903, 0
        %v2907 = vsel %vm2062, %v2904, 0
        %2909 = vmatprep.subr.mxu0 0.0
        %2910 = vmatpush1.msra.mxu0 0.0
        %2911 = vmatprep.subr.mxu0 0.0
        %2912 = vmatpush1.msra.mxu0 0.0
        %2913 = vmatprep.subr.mxu0 0.0
        %2914 = vmatpush1.msra.mxu0 0.0
        %2915 = vmatprep.subr.mxu0 0.0
        %2916 = vmatpush1.msra.mxu0 %v2068
        %2917 = vmatprep.subr.mxu0 0.0
        %2918 = vmatpush1.msra.mxu0 %v2041
        %2919 = vmatprep.subr.mxu0 0.0
        %2920 = vmatpush1.msra.mxu0 %v2024
        %2921 = vmatprep.subr.mxu0 0.0
        %2922 = vmatpush1.msra.mxu0 %v2007
        %2923 = vmatprep.subr.mxu0 0.0
        %2924 = vmatpush1.msra.mxu0 %v1990
        %2925 = vmatprep.subr.mxu0 0.0
        %2926 = vmatpush1.msra.mxu0 %v1973
        %2927 = vmatprep.subr.mxu0 0.0
        %2928 = vmatpush1.msra.mxu0 %v1956
        %2929 = vmatprep.subr.mxu0 0.0
        %2930 = vmatpush1.msra.mxu0 %v1939
        %2931 = vmatprep.subr.mxu0 0.0
        %2932 = vmatpush1.msra.mxu0 %v1922
        %2933 = vmatprep.subr.mxu0 0.0
        %2934 = vmatpush1.msra.mxu0 %v1905
        %2935 = vmatprep.subr.mxu0 0.0
        %2936 = vmatpush1.msra.mxu0 %v1888
        %2937 = vmatprep.subr.mxu0 0.0
        %2938 = vmatpush1.msra.mxu0 %v1871
        %2939 = vmatprep.subr.mxu0 0.0
        %2940 = vmatpush1.msra.mxu0 %v1854
        %2941 = vmatprep.subr.mxu0 0.0
        %2942 = vmatpush2.msra.mxu0 0.0
        %2943 = vmatprep.subr.mxu0 0.0
        %2944 = vmatpush2.msra.mxu0 0.0
        %2945 = vmatprep.subr.mxu0 0.0
        %2946 = vmatpush2.msra.mxu0 0.0
        %2947 = vmatprep.subr.mxu0 0.0
        %2948 = vmatpush2.msra.mxu0 0.0
        %2949 = vmatprep.subr.mxu0 0.0
        %2950 = vmatpush2.msra.mxu0 0.0
        %2951 = vmatprep.subr.mxu0 0.0
        %2952 = vmatpush2.msra.mxu0 0.0
        %2953 = vmatprep.subr.mxu0 0.0
        %2954 = vmatpush2.msra.mxu0 0.0
        %2955 = vmatprep.subr.mxu0 0.0
        %2956 = vmatpush2.msra.mxu0 0.0
        %2957 = vmatprep.subr.mxu0 0.0
        %2958 = vmatpush2.msra.mxu0 0.0
        %2959 = vmatprep.subr.mxu0 0.0
        %2960 = vmatpush2.msra.mxu0 0.0
        %2961 = vmatprep.subr.mxu0 0.0
        %2962 = vmatpush2.msra.mxu0 0.0
        %2963 = vmatprep.subr.mxu0 0.0
        %2964 = vmatpush2.msra.mxu0 0.0
        %2965 = vmatprep.subr.mxu0 0.0
        %2966 = vmatpush2.msra.mxu0 0.0
        %2967 = vmatprep.subr.mxu0 0.0
        %2968 = vmatpush2.msra.mxu0 0.0
        %2969 = vmatprep.subr.mxu0 0.0
        %2970 = vmatpush2.msra.mxu0 0.0
        %2971 = vmatprep.subr.mxu0 0.0
        %2972 = vmatpush2.msra.mxu0 0.0
        %2973 = vmatprep.mubr.f32.mxu0 0.0
        %2974 = vmatmul.mubr.f32.gmra.mxu0 %v2905
        %v2975 = vpop.f32.mrf.mxu0
        %v2976 = vadd.f32 0.0, %v2975
        %v2977 = vpop.f32.mrf.mxu0
        %2978 = vmatprep.mubr.f32.mxu0 0.0
        %2979 = vmatmul.mubr.f32.gmra.mxu0 %v2907
        %v2980 = vpop.f32.mrf.mxu0
        %v2981 = vadd.f32 0.0, %v2980
        %v2982 = vpop.f32.mrf.mxu0
        %2983 = vdwg.mxu0
        %2984 = vst.msk [vmem:[#allocation8 + $0x8] sm:$0xff] %vm393, %v2976
        %2985 = vst.msk [vmem:[#allocation8 + $0x18] sm:$0xff] %vm393, %v2981
        %v2986 = vld [vmem:[#allocation8] sm:$0xff]
        %v2987 = vld [vmem:[#allocation8 + $0x8] sm:$0xff]
        %v2988 = vld [vmem:[#allocation8 + $0x10] sm:$0xff]
        %v2989 = vld [vmem:[#allocation8 + $0x18] sm:$0xff]
        %v2990 = vld [vmem:[%s7] sm:$0xff]
        %v2991 = vld [vmem:[%s7 + $0x8] sm:$0xff]
        %v2992 = vld [vmem:[%s7 + $0x10] sm:$0xff]
        %v2993 = vld [vmem:[%s7 + $0x18] sm:$0xff]
        %v2994 = vld [vmem:[%s7 + $0x20] sm:$0xff]
        %v2995 = vld [vmem:[%s7 + $0x28] sm:$0xff]
        %v2996 = vld [vmem:[%s7 + $0x30] sm:$0xff]
        %v2997 = vld [vmem:[%s7 + $0x38] sm:$0xff]
        %v2998 = vld [vmem:[%s7 + $0x40] sm:$0xff]
        %v2999 = vld [vmem:[%s7 + $0x48] sm:$0xff]
        %v3000 = vld [vmem:[%s7 + $0x50] sm:$0xff]
        %v3001 = vld [vmem:[%s7 + $0x58] sm:$0xff]
        %v3002 = vld [vmem:[%s7 + $0x60] sm:$0xff]
        %v3003 = vld [vmem:[%s7 + $0x68] sm:$0xff]
        %v3004 = vld [vmem:[%s7 + $0x70] sm:$0xff]
        %v3005 = vld [vmem:[%s7 + $0x78] sm:$0xff]
        %v3006 = vld [vmem:[%s7 + $0x80] sm:$0xff]
        %v3007 = vld [vmem:[%s7 + $0x88] sm:$0xff]
        %v3008 = vld [vmem:[%s8] sm:$0x1]
        %v3010 = vlaneseq
        %v3011 = vshrl.u32 %v3010, 7
        %v3012 = vsub.s32 0, %v3011
        %v3013 = vrot.slane %v3008, %v3012
        %v3016 = vsel %vm393, %v2987, 0
        %v3019 = vsel %vm393, %v2989, 0
        %3021 = vmatprep.subr.mxu0 0.0
        %3022 = vmatpush1.msra.mxu0 %v3005
        %3023 = vmatprep.subr.mxu0 0.0
        %3024 = vmatpush1.msra.mxu0 %v3004
        %3025 = vmatprep.subr.mxu0 0.0
        %3026 = vmatpush1.msra.mxu0 %v3003
        %3027 = vmatprep.subr.mxu0 0.0
        %3028 = vmatpush1.msra.mxu0 %v3002
        %3029 = vmatprep.subr.mxu0 0.0
        %3030 = vmatpush1.msra.mxu0 %v3001
        %3031 = vmatprep.subr.mxu0 0.0
        %3032 = vmatpush1.msra.mxu0 %v3000
        %3033 = vmatprep.subr.mxu0 0.0
        %3034 = vmatpush1.msra.mxu0 %v2999
        %3035 = vmatprep.subr.mxu0 0.0
        %3036 = vmatpush1.msra.mxu0 %v2998
        %3037 = vmatprep.subr.mxu0 0.0
        %3038 = vmatpush1.msra.mxu0 %v2997
        %3039 = vmatprep.subr.mxu0 0.0
        %3040 = vmatpush1.msra.mxu0 %v2996
        %3041 = vmatprep.subr.mxu0 0.0
        %3042 = vmatpush1.msra.mxu0 %v2995
        %3043 = vmatprep.subr.mxu0 0.0
        %3044 = vmatpush1.msra.mxu0 %v2994
        %3045 = vmatprep.subr.mxu0 0.0
        %3046 = vmatpush1.msra.mxu0 %v2993
        %3047 = vmatprep.subr.mxu0 0.0
        %3048 = vmatpush1.msra.mxu0 %v2992
        %3049 = vmatprep.subr.mxu0 0.0
        %3050 = vmatpush1.msra.mxu0 %v2991
        %3051 = vmatprep.subr.mxu0 0.0
        %3052 = vmatpush1.msra.mxu0 %v2990
        %3053 = vmatprep.subr.mxu0 0.0
        %3054 = vmatpush2.msra.mxu0 0.0
        %3055 = vmatprep.subr.mxu0 0.0
        %3056 = vmatpush2.msra.mxu0 0.0
        %3057 = vmatprep.subr.mxu0 0.0
        %3058 = vmatpush2.msra.mxu0 0.0
        %3059 = vmatprep.subr.mxu0 0.0
        %3060 = vmatpush2.msra.mxu0 0.0
        %3061 = vmatprep.subr.mxu0 0.0
        %3062 = vmatpush2.msra.mxu0 0.0
        %3063 = vmatprep.subr.mxu0 0.0
        %3064 = vmatpush2.msra.mxu0 0.0
        %3065 = vmatprep.subr.mxu0 0.0
        %3066 = vmatpush2.msra.mxu0 0.0
        %3067 = vmatprep.subr.mxu0 0.0
        %3068 = vmatpush2.msra.mxu0 0.0
        %3069 = vmatprep.subr.mxu0 0.0
        %3070 = vmatpush2.msra.mxu0 0.0
        %3071 = vmatprep.subr.mxu0 0.0
        %3072 = vmatpush2.msra.mxu0 0.0
        %3073 = vmatprep.subr.mxu0 0.0
        %3074 = vmatpush2.msra.mxu0 0.0
        %3075 = vmatprep.subr.mxu0 0.0
        %3076 = vmatpush2.msra.mxu0 0.0
        %3077 = vmatprep.subr.mxu0 0.0
        %3078 = vmatpush2.msra.mxu0 0.0
        %3079 = vmatprep.subr.mxu0 0.0
        %3080 = vmatpush2.msra.mxu0 0.0
        %3081 = vmatprep.subr.mxu0 0.0
        %3082 = vmatpush2.msra.mxu0 %v3007
        %3083 = vmatprep.subr.mxu0 0.0
        %3084 = vmatpush2.msra.mxu0 %v3006
        %3085 = vmatprep.mubr.f32.mxu0 %v3016
        %3086 = vmatmul.mubr.f32.gmra.mxu0 %v2986
        %v3087 = vpop.f32.mrf.mxu0
        %v3088 = vadd.f32 %v3013, %v3087
        %v3089 = vpop.f32.mrf.mxu0
        %3090 = vmatprep.mubr.f32.mxu0 %v3019
        %3091 = vmatmul.mubr.f32.gmra.mxu0 %v2988
        %v3092 = vpop.f32.mrf.mxu0
        %v3093 = vadd.f32 %v3013, %v3092
        %v3094 = vpop.f32.mrf.mxu0
        %3095 = vdwg.mxu0
        %v3096 = vmax.f32 %v3088, 0.0
        %v3097 = vmax.f32 %v3093, 0.0
        %v3098 = vld [vmem:[%s9] sm:$0xff]
        %v3099 = vld [vmem:[%s10] sm:$0x1]
        %v3101 = vlaneseq
        %v3102 = vshrl.u32 %v3101, 7
        %v3103 = vsub.s32 0, %v3102
        %v3104 = vrot.slane %v3099, %v3103
        %v3107 = vsel %vm711, %v3096, 0
        %v3110 = vsel %vm711, %v3097, 0
        %3112 = vmatprep.subr.mxu0 0.0
        %3113 = vmatpush1.msra.mxu0 0.0
        %3114 = vmatprep.subr.mxu0 0.0
        %3115 = vmatpush1.msra.mxu0 0.0
        %3116 = vmatprep.subr.mxu0 0.0
        %3117 = vmatpush1.msra.mxu0 0.0
        %3118 = vmatprep.subr.mxu0 0.0
        %3119 = vmatpush1.msra.mxu0 0.0
        %3120 = vmatprep.subr.mxu0 0.0
        %3121 = vmatpush1.msra.mxu0 0.0
        %3122 = vmatprep.subr.mxu0 0.0
        %3123 = vmatpush1.msra.mxu0 0.0
        %3124 = vmatprep.subr.mxu0 0.0
        %3125 = vmatpush1.msra.mxu0 0.0
        %3126 = vmatprep.subr.mxu0 0.0
        %3127 = vmatpush1.msra.mxu0 0.0
        %3128 = vmatprep.subr.mxu0 0.0
        %3129 = vmatpush1.msra.mxu0 0.0
        %3130 = vmatprep.subr.mxu0 0.0
        %3131 = vmatpush1.msra.mxu0 0.0
        %3132 = vmatprep.subr.mxu0 0.0
        %3133 = vmatpush1.msra.mxu0 0.0
        %3134 = vmatprep.subr.mxu0 0.0
        %3135 = vmatpush1.msra.mxu0 0.0
        %3136 = vmatprep.subr.mxu0 0.0
        %3137 = vmatpush1.msra.mxu0 0.0
        %3138 = vmatprep.subr.mxu0 0.0
        %3139 = vmatpush1.msra.mxu0 0.0
        %3140 = vmatprep.subr.mxu0 0.0
        %3141 = vmatpush1.msra.mxu0 0.0
        %3142 = vmatprep.subr.mxu0 0.0
        %3143 = vmatpush1.msra.mxu0 %v3098
        %3144 = vmatprep.subr.mxu0 0.0
        %3145 = vmatpush2.msra.mxu0 0.0
        %3146 = vmatprep.subr.mxu0 0.0
        %3147 = vmatpush2.msra.mxu0 0.0
        %3148 = vmatprep.subr.mxu0 0.0
        %3149 = vmatpush2.msra.mxu0 0.0
        %3150 = vmatprep.subr.mxu0 0.0
        %3151 = vmatpush2.msra.mxu0 0.0
        %3152 = vmatprep.subr.mxu0 0.0
        %3153 = vmatpush2.msra.mxu0 0.0
        %3154 = vmatprep.subr.mxu0 0.0
        %3155 = vmatpush2.msra.mxu0 0.0
        %3156 = vmatprep.subr.mxu0 0.0
        %3157 = vmatpush2.msra.mxu0 0.0
        %3158 = vmatprep.subr.mxu0 0.0
        %3159 = vmatpush2.msra.mxu0 0.0
        %3160 = vmatprep.subr.mxu0 0.0
        %3161 = vmatpush2.msra.mxu0 0.0
        %3162 = vmatprep.subr.mxu0 0.0
        %3163 = vmatpush2.msra.mxu0 0.0
        %3164 = vmatprep.subr.mxu0 0.0
        %3165 = vmatpush2.msra.mxu0 0.0
        %3166 = vmatprep.subr.mxu0 0.0
        %3167 = vmatpush2.msra.mxu0 0.0
        %3168 = vmatprep.subr.mxu0 0.0
        %3169 = vmatpush2.msra.mxu0 0.0
        %3170 = vmatprep.subr.mxu0 0.0
        %3171 = vmatpush2.msra.mxu0 0.0
        %3172 = vmatprep.subr.mxu0 0.0
        %3173 = vmatpush2.msra.mxu0 0.0
        %3174 = vmatprep.subr.mxu0 0.0
        %3175 = vmatpush2.msra.mxu0 0.0
        %3176 = vmatprep.mubr.f32.mxu0 0.0
        %3177 = vmatmul.mubr.f32.gmra.mxu0 %v3107
        %v3178 = vpop.f32.mrf.mxu0
        %v3179 = vadd.f32 %v3104, %v3178
        %v3180 = vpop.f32.mrf.mxu0
        %3181 = vmatprep.mubr.f32.mxu0 0.0
        %3182 = vmatmul.mubr.f32.gmra.mxu0 %v3110
        %v3183 = vpop.f32.mrf.mxu0
        %v3184 = vadd.f32 %v3104, %v3183
        %v3185 = vpop.f32.mrf.mxu0
        %3186 = vdwg.mxu0
        %v3187 = vmax.f32 %v3179, 0.0
        %v3188 = vmax.f32 %v3184, 0.0
        %3189 = vst.msk [vmem:[%s379] sm:$0xff] %vm393, %v3187
        %3190 = vst.msk [vmem:[%s379 + $0x8] sm:$0xff] %vm393, %v3188
        %s3191 = sand.u32 %s269, 1
        %s3192 = scalar_lea.sflag [#allocation10], %s3191
        %s3193 = sand.u32 %s269, 1
        %s3194 = smul.addr %s3193, 16
        %s3195 = scalar_lea.vmem [#allocation9], %s3194
        // Predicated region
        $region65: #{hgstem_forward.1} parent=63 // pred_check
          %p3196 = pneg %p279
        $region66: #{hgstem_forward.1} parent=63 // pred_check_branch
          %3198 = sbr.rel (%p3196) target = $region68
        $region67: #{hgstem_forward.1} parent=63 // pred_region
          %s3200 = ssub.s32 256, 256
          %3201 = vsyncadd %s3192, %s3200
          %s3202 = smul.addr %s25, 2
          %s3203 = smul.addr %s3202, 128
          %s3204 = scalar_lea.hbm %s11, %s3203
          %s3205 = sshll.u32 %s3195, 4
          %s3206 = int_to_ptr.vmem [resolvable:$true] %s3205
          %3211 = dma.vmem_to_hbm [thread:$0]  %s3206, 256, %s3204, %s3192, 128, 128, 8
        $region68: #{hgstem_forward.1} parent=63 // pred_fallthru
          _
      $region64: #{hgstem_forward.1} parent=5 // pred_fallthru
        _
      %p3212 = scmp.le.s32.totalorder 2, %s20
      // Predicated region
      $region69: #{hgstem_forward.1} parent=5 // pred_check
        %p3213 = pneg %p3212
      $region70: #{hgstem_forward.1} parent=5 // pred_check_branch
        %3215 = sbr.rel (%p3213) target = $region72
      $region71: #{hgstem_forward.1} parent=5 // pred_region
        %s3216 = ssub.s32 %s20, 2
        // Predicated region
        $region73: #{hgstem_forward.1} parent=71 // pred_check
          %p3217 = pneg %p285
        $region74: #{hgstem_forward.1} parent=71 // pred_check_branch
          %3219 = sbr.rel (%p3217) target = $region76
        $region75: #{hgstem_forward.1} parent=71 // pred_region
          %s3220 = sand.u32 %s270, 1
          %s3221 = scalar_lea.sflag [#allocation10], %s3220
          %s3222 = sand.u32 %s270, 1
          %s3223 = smul.addr %s3222, 16
          %s3224 = scalar_lea.vmem [#allocation9], %s3223
          %3225 = dma.done %s3221, 256
        $region76: #{hgstem_forward.1} parent=71 // pred_fallthru
          _
      $region72: #{hgstem_forward.1} parent=5 // pred_fallthru
        _
    $region6: #{hgstem_forward.1} parent=1 // loop_footer
      %s24 = sadd.s32 1, %s20
    $region7: #{hgstem_forward.1} parent=1 // loop_footer_branch
      %19 = sbr.rel target = $region3
    $region8: #{hgstem_forward.1} parent=1 // loop_exit
      _
    %3226 = vsyncpa [#allocation10], 1
    %s3227 = scalar_lea.sflag [#allocation10], 1
    %3228 = vsyncpa %s3227, 1

</llo_original>
